<compile_context>
chip_gen: v6e
topology: v6e:2x2x1
jax: 0.10.0
libtpu: 0.0.40
codegen_flags: <defaults>
</compile_context>

<pallas_src>
import functools
import math

import jax
import jax.numpy as jnp
from jax import lax
from jax.experimental import pallas as pl
from jax.experimental.pallas import tpu as pltpu


OUT_LANES = 128       # lane-dense output width (wrapper slices column 0)
BATCH_ALIGN = 16      # native bf16 sublane tile; keeps all blocks layout-native


# ------------------------------- helpers ----------------------------------- #

def _round_up(x, m):
    return (x + m - 1) // m * m


def _pad_gate_cols(w, H, Hp):
    """(..., 4H) with gates [i,f,g,o] each H wide -> (..., 4Hp), gate k at k*Hp."""
    if H == Hp:
        return w
    parts = []
    for g in range(4):
        gate = w[..., g * H:(g + 1) * H]
        pad = [(0, 0)] * (w.ndim - 1) + [(0, Hp - H)]
        parts.append(jnp.pad(gate, pad))
    return jnp.concatenate(parts, axis=-1)


def _pad_rows(w, Rp):
    R = w.shape[0]
    if R == Rp:
        return w
    return jnp.pad(w, ((0, Rp - R), (0, 0)))


# ----------------------------- fused Pallas kernel -------------------------- #

def make_fused_kernel(num_layers, T, Bt, Hp):
    """Kernel over one batch tile: all LSTM layers + fc head, fully in VMEM."""

    def kernel(*refs):
        pos = 0
        gx0_ref = refs[pos]; pos += 1                     # (T, Bt, 4Hp) f32, precomputed in XLA
        w_ih_refs, w_hh_refs, b_refs = [], [], []
        for l in range(num_layers):
            if l == 0:
                w_ih_refs.append(None)
                b_refs.append(None)
                w_hh_refs.append(refs[pos]); pos += 1     # (Hp, 4Hp) bf16
            else:
                w_ih_refs.append(refs[pos])               # (Hp, 4Hp) bf16
                w_hh_refs.append(refs[pos + 1])           # (Hp, 4Hp) bf16
                b_refs.append(refs[pos + 2])              # (1, 4Hp)  f32
                pos += 3
        fc_w_ref = refs[pos]                              # (1, Hp) f32
        fc_b_ref = refs[pos + 1]                          # (1,)    f32 in SMEM
        out_ref = refs[pos + 2]                           # (Bt, OUT_LANES) f32
        pos += 3
        gx_scr = seq_scr = None
        if num_layers >= 2:
            gx_scr = refs[pos]                            # (T, Bt, 4Hp) f32 scratch
            seq_scr = refs[pos + 1]                       # (T, Bt, Hp)  bf16 scratch

        # Full unroll only while the serial chain is short; partial unroll keeps
        # LLO scheduling visibility at bounded code size for long T.
        unroll = True if T <= 16 else 8

        h_last = None
        for l in range(num_layers):
            w_hh = w_hh_refs[l][...]                      # load once per layer

            if l == 0:
                gx_read = lambda t: gx0_ref[t]            # XLA-hoisted projection
            else:
                # Hoisted input projection for this layer: one well-shaped
                # (T*Bt, Hp) @ (Hp, 4Hp) matmul for ALL timesteps.
                inp = seq_scr[...].reshape(T * Bt, Hp)    # bf16 hidden sequence
                gx = jnp.dot(inp, w_ih_refs[l][...],
                             preferred_element_type=jnp.float32) + b_refs[l][...]
                gx_scr[...] = gx.reshape(T, Bt, 4 * Hp)
                gx_read = lambda t: gx_scr[t]

            write_seq = l != num_layers - 1

            def step(t, carry, _w_hh=w_hh, _gx_read=gx_read, _write_seq=write_seq):
                h, c = carry                              # carried in vregs
                g = _gx_read(t) + jnp.dot(h.astype(jnp.bfloat16), _w_hh,
                                          preferred_element_type=jnp.float32)
                # Gate slices are 128-lane aligned (Hp multiple of 128) -> view only.
                i_g = jax.nn.sigmoid(g[:, 0 * Hp:1 * Hp])
                f_g = jax.nn.sigmoid(g[:, 1 * Hp:2 * Hp])
                g_g = jnp.tanh(g[:, 2 * Hp:3 * Hp])
                o_g = jax.nn.sigmoid(g[:, 3 * Hp:4 * Hp])
                c_new = f_g * c + i_g * g_g
                h_new = o_g * jnp.tanh(c_new)
                if _write_seq:                            # next layer's input (bf16)
                    seq_scr[t] = h_new.astype(jnp.bfloat16)
                return (h_new, c_new)

            h0 = jnp.zeros((Bt, Hp), jnp.float32)
            c0 = jnp.zeros((Bt, Hp), jnp.float32)
            h_last, _ = lax.fori_loop(0, T, step, (h0, c0), unroll=unroll)

        # fc head: VPU multiply + lane reduction (no MXU fill/drain for a single
        # output column); store 128 lanes dense, wrapper slices column 0.
        y = jnp.sum(h_last * fc_w_ref[...], axis=-1, keepdims=True) + fc_b_ref[0]
        out_ref[...] = jnp.broadcast_to(y, (Bt, OUT_LANES))

    return kernel


# ------------------------------ JAX wrapper --------------------------------- #

@functools.partial(jax.jit, static_argnames=("d_feat",))
def lstm_model_forward(x, params, d_feat):
    """Mirrors LSTMModel.forward: (B, d_feat*T) -> (B,) (scalar if B==1)."""
    B = x.shape[0]
    T = x.shape[1] // d_feat
    num_layers = len(params["lstm"])
    Hp = params["lstm"][0]["w_hh"].shape[0]

    # (B, d_feat*T) -> (B, d_feat, T) -> time-major (T, B, d_feat)
    xr = jnp.transpose(x.reshape(B, d_feat, T), (2, 0, 1))

    # Layer-0 input projection hoisted to XLA with the TRUE feature width
    # (no padding of d_feat to 128 lanes -> no inflated DMA / matmul K).
    w_ih0 = params["lstm"][0]["w_ih"]          # (d_feat, 4Hp) f32
    b0 = params["lstm"][0]["b"]                # (1, 4Hp)      f32
    gx0 = jnp.einsum("tbd,dg->tbg", xr, w_ih0) + b0      # (T, B, 4Hp) f32

    # ---- batch tiling ------------------------------------------------------
    B_pad = _round_up(B, BATCH_ALIGN)
    if B_pad <= BATCH_ALIGN:
        Bt = B_pad
    else:
        # >= 2 tiles for v7x megacore, each tile as large as possible (<=256 rows).
        Bt = min(256, _round_up((B_pad + 1) // 2, BATCH_ALIGN))

    def vmem_footprint(bt):
        f = 2 * T * bt * 4 * Hp * 4                      # gx0 blocks (double-buffered)
        f += 2 * bt * OUT_LANES * 4                      # output blocks
        if num_layers >= 2:
            f += T * bt * 4 * Hp * 4                     # gx scratch (f32)
            f += T * bt * Hp * 2                         # inter-layer hidden seq (bf16)
        f += num_layers * Hp * 4 * Hp * 2                # w_hh (bf16, resident once)
        f += (num_layers - 1) * (Hp * 4 * Hp * 2 + 4 * Hp * 4)   # w_ih + b
        f += Hp * 4                                      # fc row
        return f

    VMEM_BUDGET = 40 * 1024 * 1024                       # conservative: fits v7x 64 MiB/TC
    while Bt > BATCH_ALIGN and vmem_footprint(Bt) > VMEM_BUDGET:
        Bt = _round_up(Bt // 2, BATCH_ALIGN)
    # TODO(synk): for very large T*H the hoisted gx scratch should be T-chunked
    # (extra "arbitrary" grid axis) to stay inside v7x's 64 MiB VMEM.

    B_pad = _round_up(B_pad, Bt)
    grid = (B_pad // Bt,)
    gx0 = jnp.pad(gx0, ((0, 0), (0, B_pad - B), (0, 0)))

    kernel = make_fused_kernel(num_layers, T, Bt, Hp)

    # Weights/biases are constant across the grid: pass them whole-array resident
    # in VMEM (no per-tile pipelining / double-buffering); fc bias scalar in SMEM.
    vmem_resident = pl.BlockSpec(memory_space=pltpu.MemorySpace.VMEM)
    smem_resident = pl.BlockSpec(memory_space=pltpu.MemorySpace.SMEM)

    inputs = [gx0]
    in_specs = [pl.BlockSpec((T, Bt, 4 * Hp), lambda b: (0, b, 0))]
    for l, layer in enumerate(params["lstm"]):
        if l == 0:
            inputs.append(layer["w_hh"])
            in_specs.append(vmem_resident)
        else:
            inputs += [layer["w_ih"], layer["w_hh"], layer["b"]]
            in_specs += [vmem_resident, vmem_resident, vmem_resident]
    inputs += [params["fc_w"], params["fc_b"]]
    in_specs += [vmem_resident, smem_resident]

    scratch_shapes = []
    if num_layers >= 2:
        scratch_shapes = [
            pltpu.VMEM((T, Bt, 4 * Hp), jnp.float32),    # hoisted h @ W_ih + b
            pltpu.VMEM((T, Bt, Hp), jnp.bfloat16),       # inter-layer hidden sequence
        ]

    vmem_limit = int(min(48 * 1024 * 1024,
                         max(16 * 1024 * 1024, 2 * vmem_footprint(Bt))))

    out = pl.pallas_call(
        kernel,
        out_shape=jax.ShapeDtypeStruct((B_pad, OUT_LANES), jnp.float32),
        grid=grid,
        in_specs=in_specs,
        out_specs=pl.BlockSpec((Bt, OUT_LANES), lambda b: (b, 0)),
        scratch_shapes=scratch_shapes,
        compiler_params=pltpu.CompilerParams(
            dimension_semantics=("parallel",),           # batch tiles -> 2 TCs on v7x
            vmem_limit_bytes=vmem_limit,
        ),
    )(*inputs)

    return jnp.squeeze(out[:B, 0])                       # matches torch .squeeze()


# --------------------------- Parameter creation ----------------------------- #

def init_params(key, d_feat, hidden_size, num_layers):
    """PyTorch-equivalent weights, stored transposed + gate-padded; recurrent
    weights in bf16 for the MXU, layer-0 input weights unpadded f32 (XLA side)."""
    H = hidden_size
    Hp = _round_up(H, 128)
    k = 1.0 / math.sqrt(H)

    layers = []
    for layer_idx in range(num_layers):
        d_in = d_feat if layer_idx == 0 else H
        key, k1, k2, k3, k4 = jax.random.split(key, 5)
        # PyTorch stores (4H, D); we store transposed (D, 4H). Gate order i,f,g,o.
        w_ih = jax.random.uniform(k1, (d_in, 4 * H), jnp.float32, -k, k)
        w_hh = jax.random.uniform(k2, (H, 4 * H), jnp.float32, -k, k)
        b_ih = jax.random.uniform(k3, (4 * H,), jnp.float32, -k, k)
        b_hh = jax.random.uniform(k4, (4 * H,), jnp.float32, -k, k)
        b = _pad_gate_cols((b_ih + b_hh).reshape(1, 4 * H), H, Hp)     # f32 (1, 4Hp)
        w_ih_p = _pad_gate_cols(w_ih, H, Hp)                           # (d_in, 4Hp)
        w_hh_p = _pad_rows(_pad_gate_cols(w_hh, H, Hp), Hp).astype(jnp.bfloat16)
        if layer_idx == 0:
            # Layer-0 projection runs in XLA: keep rows unpadded (true d_feat), f32.
            layers.append({"w_ih": w_ih_p, "w_hh": w_hh_p, "b": b})
        else:
            layers.append({"w_ih": _pad_rows(w_ih_p, Hp).astype(jnp.bfloat16),
                           "w_hh": w_hh_p, "b": b})
        # TODO(synk): inter-layer dropout not applied (inference semantics).
    # TODO(synk): packed-gate (4H in one 128-lane vreg) layout for tiny H left
    # unimplemented; per-gate 128-lane padding kept for robust lane alignment.

    key, k5, k6 = jax.random.split(key, 3)
    fc_w = jax.random.uniform(k5, (1, H), jnp.float32, -k, k)
    fc_w = jnp.pad(fc_w, ((0, 0), (0, Hp - H)))                        # (1, Hp) row
    fc_b = jax.random.uniform(k6, (1,), jnp.float32, -k, k)            # scalar (SMEM)
    return {"lstm": layers, "fc_w": fc_w, "fc_b": fc_b}


# ----------------------------------- Main ----------------------------------- #

if __name__ == "__main__":
    B, d_feat, T = 2, 4, 8
    hidden_size, num_layers = 32, 2

    key = jax.random.PRNGKey(0)
    key, kx, kp = jax.random.split(key, 3)

    # Input matches the module's expectation: (B, d_feat * T) flattened features.
    x = jax.random.normal(kx, (B, d_feat * T), dtype=jnp.float32)
    params = init_params(kp, d_feat, hidden_size, num_layers)

    out = lstm_model_forward(x, params, d_feat)
    out = jax.block_until_ready(out)

    assert out.shape == (B,), out.shape
    assert bool(jnp.all(jnp.isfinite(out)))
    print("KERNEL_OK")
</pallas_src>

<mosaic_0001>
module attributes {stable_mosaic.version = 11 : i64} {
  func.func @kernel(%arg0: i32, %arg1: memref<8x16x512xf32, #tpu.memory_space<vmem>>, %arg2: memref<128x512xbf16, #tpu.memory_space<vmem>>, %arg3: memref<128x512xbf16, #tpu.memory_space<vmem>>, %arg4: memref<128x512xbf16, #tpu.memory_space<vmem>>, %arg5: memref<1x512xf32, #tpu.memory_space<vmem>>, %arg6: memref<1x128xf32, #tpu.memory_space<vmem>>, %arg7: memref<1xf32, #tpu.memory_space<smem>>, %arg8: memref<16x128xf32, #tpu.memory_space<vmem>>, %arg9: memref<8x16x512xf32, #tpu.memory_space<vmem>>, %arg10: memref<8x16x128xbf16, #tpu.memory_space<vmem>>) attributes {dimension_semantics = [#tpu.dimension_semantics<parallel>], iteration_bounds = array<i64: 1>, scalar_prefetch = 0 : i64, scratch_operands = 2 : i64, tpu.core_type = #tpu.core_type<tc>, window_params = [{transform_indices = @transform_0, window_bounds = array<i64: 8, 16, 512>}, {pipeline_mode = #tpu.pipeline_mode<synchronous>, transform_indices = @transform_1, window_bounds = array<i64: 128, 512>}, {pipeline_mode = #tpu.pipeline_mode<synchronous>, transform_indices = @transform_2, window_bounds = array<i64: 128, 512>}, {pipeline_mode = #tpu.pipeline_mode<synchronous>, transform_indices = @transform_3, window_bounds = array<i64: 128, 512>}, {pipeline_mode = #tpu.pipeline_mode<synchronous>, transform_indices = @transform_4, window_bounds = array<i64: 1, 512>}, {pipeline_mode = #tpu.pipeline_mode<synchronous>, transform_indices = @transform_5, window_bounds = array<i64: 1, 128>}, {transform_indices = @transform_6, window_bounds = array<i64: 1>}, {transform_indices = @transform_7, window_bounds = array<i64: 16, 128>}]} {
    %c0 = arith.constant 0 : index
    %c0_0 = arith.constant 0 : index
    %0 = vector.load %arg2[%c0, %c0_0] : memref<128x512xbf16, #tpu.memory_space<vmem>>, vector<128x512xbf16>
    %cst = arith.constant 0.000000e+00 : f32
    %1 = vector.broadcast %cst : f32 to vector<16x128xf32>
    %cst_1 = arith.constant 0.000000e+00 : f32
    %2 = vector.broadcast %cst_1 : f32 to vector<16x128xf32>
    %c0_i32 = arith.constant 0 : i32
    %3 = arith.index_cast %c0_i32 : i32 to index
    %c0_2 = arith.constant 0 : index
    %c0_3 = arith.constant 0 : index
    %4 = vector.load %arg1[%3, %c0_2, %c0_3] : memref<8x16x512xf32, #tpu.memory_space<vmem>>, vector<1x16x512xf32>
    %5 = vector.shape_cast %4 : vector<1x16x512xf32> to vector<16x512xf32>
    %6 = arith.truncf %1 : vector<16x128xf32> to vector<16x128xbf16>
    %cst_4 = arith.constant dense<0.000000e+00> : vector<16x512xf32>
    %7 = tpu.matmul %6, %0, %cst_4 {dimension_numbers = #tpu.dot_dimension_numbers<[1], [0], [0], [1], [0, 0, 1, 1], [], []>} : vector<16x128xbf16>, vector<128x512xbf16>, vector<16x512xf32> -> vector<16x512xf32>
    %8 = arith.addf %5, %7 : vector<16x512xf32>
    %9 = vector.extract_strided_slice %8 {offsets = [0, 0], sizes = [16, 128], strides = [1, 1]} : vector<16x512xf32> to vector<16x128xf32>
    %10 = arith.negf %9 : vector<16x128xf32>
    %11 = math.exp %10 : vector<16x128xf32>
    %cst_5 = arith.constant 1.000000e+00 : f32
    %12 = vector.broadcast %cst_5 : f32 to vector<16x128xf32>
    %13 = arith.addf %12, %11 : vector<16x128xf32>
    %14 = arith.divf %12, %13 : vector<16x128xf32>
    %15 = vector.extract_strided_slice %8 {offsets = [0, 128], sizes = [16, 128], strides = [1, 1]} : vector<16x512xf32> to vector<16x128xf32>
    %16 = arith.negf %15 : vector<16x128xf32>
    %17 = math.exp %16 : vector<16x128xf32>
    %cst_6 = arith.constant 1.000000e+00 : f32
    %18 = vector.broadcast %cst_6 : f32 to vector<16x128xf32>
    %19 = arith.addf %18, %17 : vector<16x128xf32>
    %20 = arith.divf %18, %19 : vector<16x128xf32>
    %21 = vector.extract_strided_slice %8 {offsets = [0, 256], sizes = [16, 128], strides = [1, 1]} : vector<16x512xf32> to vector<16x128xf32>
    %22 = math.tanh %21 : vector<16x128xf32>
    %23 = vector.extract_strided_slice %8 {offsets = [0, 384], sizes = [16, 128], strides = [1, 1]} : vector<16x512xf32> to vector<16x128xf32>
    %24 = arith.negf %23 : vector<16x128xf32>
    %25 = math.exp %24 : vector<16x128xf32>
    %cst_7 = arith.constant 1.000000e+00 : f32
    %26 = vector.broadcast %cst_7 : f32 to vector<16x128xf32>
    %27 = arith.addf %26, %25 : vector<16x128xf32>
    %28 = arith.divf %26, %27 : vector<16x128xf32>
    %29 = arith.mulf %20, %2 : vector<16x128xf32>
    %30 = arith.mulf %14, %22 : vector<16x128xf32>
    %31 = arith.addf %29, %30 : vector<16x128xf32>
    %32 = math.tanh %31 : vector<16x128xf32>
    %33 = arith.mulf %28, %32 : vector<16x128xf32>
    %34 = arith.truncf %33 : vector<16x128xf32> to vector<16x128xbf16>
    %35 = arith.index_cast %c0_i32 : i32 to index
    %c0_8 = arith.constant 0 : index
    %c0_9 = arith.constant 0 : index
    %36 = vector.load %arg10[%35, %c0_8, %c0_9] : memref<8x16x128xbf16, #tpu.memory_space<vmem>>, vector<1x16x128xbf16>
    %37 = vector.shape_cast %36 : vector<1x16x128xbf16> to vector<16x128xbf16>
    %38 = vector.shape_cast %34 : vector<16x128xbf16> to vector<1x16x128xbf16>
    tpu.vector_store %arg10[%35, %c0_8, %c0_9], %38 {strides = array<i32>} : memref<8x16x128xbf16, #tpu.memory_space<vmem>>, vector<1x16x128xbf16>,
    %c1_i32 = arith.constant 1 : i32
    %39 = arith.index_cast %c1_i32 : i32 to index
    %c0_10 = arith.constant 0 : index
    %c0_11 = arith.constant 0 : index
    %40 = vector.load %arg1[%39, %c0_10, %c0_11] : memref<8x16x512xf32, #tpu.memory_space<vmem>>, vector<1x16x512xf32>
    %41 = vector.shape_cast %40 : vector<1x16x512xf32> to vector<16x512xf32>
    %42 = arith.truncf %33 : vector<16x128xf32> to vector<16x128xbf16>
    %cst_12 = arith.constant dense<0.000000e+00> : vector<16x512xf32>
    %43 = tpu.matmul %42, %0, %cst_12 {dimension_numbers = #tpu.dot_dimension_numbers<[1], [0], [0], [1], [0, 0, 1, 1], [], []>} : vector<16x128xbf16>, vector<128x512xbf16>, vector<16x512xf32> -> vector<16x512xf32>
    %44 = arith.addf %41, %43 : vector<16x512xf32>
    %45 = vector.extract_strided_slice %44 {offsets = [0, 0], sizes = [16, 128], strides = [1, 1]} : vector<16x512xf32> to vector<16x128xf32>
    %46 = arith.negf %45 : vector<16x128xf32>
    %47 = math.exp %46 : vector<16x128xf32>
    %cst_13 = arith.constant 1.000000e+00 : f32
    %48 = vector.broadcast %cst_13 : f32 to vector<16x128xf32>
    %49 = arith.addf %48, %47 : vector<16x128xf32>
    %50 = arith.divf %48, %49 : vector<16x128xf32>
    %51 = vector.extract_strided_slice %44 {offsets = [0, 128], sizes = [16, 128], strides = [1, 1]} : vector<16x512xf32> to vector<16x128xf32>
    %52 = arith.negf %51 : vector<16x128xf32>
    %53 = math.exp %52 : vector<16x128xf32>
    %cst_14 = arith.constant 1.000000e+00 : f32
    %54 = vector.broadcast %cst_14 : f32 to vector<16x128xf32>
    %55 = arith.addf %54, %53 : vector<16x128xf32>
    %56 = arith.divf %54, %55 : vector<16x128xf32>
    %57 = vector.extract_strided_slice %44 {offsets = [0, 256], sizes = [16, 128], strides = [1, 1]} : vector<16x512xf32> to vector<16x128xf32>
    %58 = math.tanh %57 : vector<16x128xf32>
    %59 = vector.extract_strided_slice %44 {offsets = [0, 384], sizes = [16, 128], strides = [1, 1]} : vector<16x512xf32> to vector<16x128xf32>
    %60 = arith.negf %59 : vector<16x128xf32>
    %61 = math.exp %60 : vector<16x128xf32>
    %cst_15 = arith.constant 1.000000e+00 : f32
    %62 = vector.broadcast %cst_15 : f32 to vector<16x128xf32>
    %63 = arith.addf %62, %61 : vector<16x128xf32>
    %64 = arith.divf %62, %63 : vector<16x128xf32>
    %65 = arith.mulf %56, %31 : vector<16x128xf32>
    %66 = arith.mulf %50, %58 : vector<16x128xf32>
    %67 = arith.addf %65, %66 : vector<16x128xf32>
    %68 = math.tanh %67 : vector<16x128xf32>
    %69 = arith.mulf %64, %68 : vector<16x128xf32>
    %70 = arith.truncf %69 : vector<16x128xf32> to vector<16x128xbf16>
    %71 = arith.index_cast %c1_i32 : i32 to index
    %c0_16 = arith.constant 0 : index
    %c0_17 = arith.constant 0 : index
    %72 = vector.load %arg10[%71, %c0_16, %c0_17] : memref<8x16x128xbf16, #tpu.memory_space<vmem>>, vector<1x16x128xbf16>
    %73 = vector.shape_cast %72 : vector<1x16x128xbf16> to vector<16x128xbf16>
    %74 = vector.shape_cast %70 : vector<16x128xbf16> to vector<1x16x128xbf16>
    tpu.vector_store %arg10[%71, %c0_16, %c0_17], %74 {strides = array<i32>} : memref<8x16x128xbf16, #tpu.memory_space<vmem>>, vector<1x16x128xbf16>,
    %c2_i32 = arith.constant 2 : i32
    %75 = arith.index_cast %c2_i32 : i32 to index
    %c0_18 = arith.constant 0 : index
    %c0_19 = arith.constant 0 : index
    %76 = vector.load %arg1[%75, %c0_18, %c0_19] : memref<8x16x512xf32, #tpu.memory_space<vmem>>, vector<1x16x512xf32>
    %77 = vector.shape_cast %76 : vector<1x16x512xf32> to vector<16x512xf32>
    %78 = arith.truncf %69 : vector<16x128xf32> to vector<16x128xbf16>
    %cst_20 = arith.constant dense<0.000000e+00> : vector<16x512xf32>
    %79 = tpu.matmul %78, %0, %cst_20 {dimension_numbers = #tpu.dot_dimension_numbers<[1], [0], [0], [1], [0, 0, 1, 1], [], []>} : vector<16x128xbf16>, vector<128x512xbf16>, vector<16x512xf32> -> vector<16x512xf32>
    %80 = arith.addf %77, %79 : vector<16x512xf32>
    %81 = vector.extract_strided_slice %80 {offsets = [0, 0], sizes = [16, 128], strides = [1, 1]} : vector<16x512xf32> to vector<16x128xf32>
    %82 = arith.negf %81 : vector<16x128xf32>
    %83 = math.exp %82 : vector<16x128xf32>
    %cst_21 = arith.constant 1.000000e+00 : f32
    %84 = vector.broadcast %cst_21 : f32 to vector<16x128xf32>
    %85 = arith.addf %84, %83 : vector<16x128xf32>
    %86 = arith.divf %84, %85 : vector<16x128xf32>
    %87 = vector.extract_strided_slice %80 {offsets = [0, 128], sizes = [16, 128], strides = [1, 1]} : vector<16x512xf32> to vector<16x128xf32>
    %88 = arith.negf %87 : vector<16x128xf32>
    %89 = math.exp %88 : vector<16x128xf32>
    %cst_22 = arith.constant 1.000000e+00 : f32
    %90 = vector.broadcast %cst_22 : f32 to vector<16x128xf32>
    %91 = arith.addf %90, %89 : vector<16x128xf32>
    %92 = arith.divf %90, %91 : vector<16x128xf32>
    %93 = vector.extract_strided_slice %80 {offsets = [0, 256], sizes = [16, 128], strides = [1, 1]} : vector<16x512xf32> to vector<16x128xf32>
    %94 = math.tanh %93 : vector<16x128xf32>
    %95 = vector.extract_strided_slice %80 {offsets = [0, 384], sizes = [16, 128], strides = [1, 1]} : vector<16x512xf32> to vector<16x128xf32>
    %96 = arith.negf %95 : vector<16x128xf32>
    %97 = math.exp %96 : vector<16x128xf32>
    %cst_23 = arith.constant 1.000000e+00 : f32
    %98 = vector.broadcast %cst_23 : f32 to vector<16x128xf32>
    %99 = arith.addf %98, %97 : vector<16x128xf32>
    %100 = arith.divf %98, %99 : vector<16x128xf32>
    %101 = arith.mulf %92, %67 : vector<16x128xf32>
    %102 = arith.mulf %86, %94 : vector<16x128xf32>
    %103 = arith.addf %101, %102 : vector<16x128xf32>
    %104 = math.tanh %103 : vector<16x128xf32>
    %105 = arith.mulf %100, %104 : vector<16x128xf32>
    %106 = arith.truncf %105 : vector<16x128xf32> to vector<16x128xbf16>
    %107 = arith.index_cast %c2_i32 : i32 to index
    %c0_24 = arith.constant 0 : index
    %c0_25 = arith.constant 0 : index
    %108 = vector.load %arg10[%107, %c0_24, %c0_25] : memref<8x16x128xbf16, #tpu.memory_space<vmem>>, vector<1x16x128xbf16>
    %109 = vector.shape_cast %108 : vector<1x16x128xbf16> to vector<16x128xbf16>
    %110 = vector.shape_cast %106 : vector<16x128xbf16> to vector<1x16x128xbf16>
    tpu.vector_store %arg10[%107, %c0_24, %c0_25], %110 {strides = array<i32>} : memref<8x16x128xbf16, #tpu.memory_space<vmem>>, vector<1x16x128xbf16>,
    %c3_i32 = arith.constant 3 : i32
    %111 = arith.index_cast %c3_i32 : i32 to index
    %c0_26 = arith.constant 0 : index
    %c0_27 = arith.constant 0 : index
    %112 = vector.load %arg1[%111, %c0_26, %c0_27] : memref<8x16x512xf32, #tpu.memory_space<vmem>>, vector<1x16x512xf32>
    %113 = vector.shape_cast %112 : vector<1x16x512xf32> to vector<16x512xf32>
    %114 = arith.truncf %105 : vector<16x128xf32> to vector<16x128xbf16>
    %cst_28 = arith.constant dense<0.000000e+00> : vector<16x512xf32>
    %115 = tpu.matmul %114, %0, %cst_28 {dimension_numbers = #tpu.dot_dimension_numbers<[1], [0], [0], [1], [0, 0, 1, 1], [], []>} : vector<16x128xbf16>, vector<128x512xbf16>, vector<16x512xf32> -> vector<16x512xf32>
    %116 = arith.addf %113, %115 : vector<16x512xf32>
    %117 = vector.extract_strided_slice %116 {offsets = [0, 0], sizes = [16, 128], strides = [1, 1]} : vector<16x512xf32> to vector<16x128xf32>
    %118 = arith.negf %117 : vector<16x128xf32>
    %119 = math.exp %118 : vector<16x128xf32>
    %cst_29 = arith.constant 1.000000e+00 : f32
    %120 = vector.broadcast %cst_29 : f32 to vector<16x128xf32>
    %121 = arith.addf %120, %119 : vector<16x128xf32>
    %122 = arith.divf %120, %121 : vector<16x128xf32>
    %123 = vector.extract_strided_slice %116 {offsets = [0, 128], sizes = [16, 128], strides = [1, 1]} : vector<16x512xf32> to vector<16x128xf32>
    %124 = arith.negf %123 : vector<16x128xf32>
    %125 = math.exp %124 : vector<16x128xf32>
    %cst_30 = arith.constant 1.000000e+00 : f32
    %126 = vector.broadcast %cst_30 : f32 to vector<16x128xf32>
    %127 = arith.addf %126, %125 : vector<16x128xf32>
    %128 = arith.divf %126, %127 : vector<16x128xf32>
    %129 = vector.extract_strided_slice %116 {offsets = [0, 256], sizes = [16, 128], strides = [1, 1]} : vector<16x512xf32> to vector<16x128xf32>
    %130 = math.tanh %129 : vector<16x128xf32>
    %131 = vector.extract_strided_slice %116 {offsets = [0, 384], sizes = [16, 128], strides = [1, 1]} : vector<16x512xf32> to vector<16x128xf32>
    %132 = arith.negf %131 : vector<16x128xf32>
    %133 = math.exp %132 : vector<16x128xf32>
    %cst_31 = arith.constant 1.000000e+00 : f32
    %134 = vector.broadcast %cst_31 : f32 to vector<16x128xf32>
    %135 = arith.addf %134, %133 : vector<16x128xf32>
    %136 = arith.divf %134, %135 : vector<16x128xf32>
    %137 = arith.mulf %128, %103 : vector<16x128xf32>
    %138 = arith.mulf %122, %130 : vector<16x128xf32>
    %139 = arith.addf %137, %138 : vector<16x128xf32>
    %140 = math.tanh %139 : vector<16x128xf32>
    %141 = arith.mulf %136, %140 : vector<16x128xf32>
    %142 = arith.truncf %141 : vector<16x128xf32> to vector<16x128xbf16>
    %143 = arith.index_cast %c3_i32 : i32 to index
    %c0_32 = arith.constant 0 : index
    %c0_33 = arith.constant 0 : index
    %144 = vector.load %arg10[%143, %c0_32, %c0_33] : memref<8x16x128xbf16, #tpu.memory_space<vmem>>, vector<1x16x128xbf16>
    %145 = vector.shape_cast %144 : vector<1x16x128xbf16> to vector<16x128xbf16>
    %146 = vector.shape_cast %142 : vector<16x128xbf16> to vector<1x16x128xbf16>
    tpu.vector_store %arg10[%143, %c0_32, %c0_33], %146 {strides = array<i32>} : memref<8x16x128xbf16, #tpu.memory_space<vmem>>, vector<1x16x128xbf16>,
    %c4_i32 = arith.constant 4 : i32
    %147 = arith.index_cast %c4_i32 : i32 to index
    %c0_34 = arith.constant 0 : index
    %c0_35 = arith.constant 0 : index
    %148 = vector.load %arg1[%147, %c0_34, %c0_35] : memref<8x16x512xf32, #tpu.memory_space<vmem>>, vector<1x16x512xf32>
    %149 = vector.shape_cast %148 : vector<1x16x512xf32> to vector<16x512xf32>
    %150 = arith.truncf %141 : vector<16x128xf32> to vector<16x128xbf16>
    %cst_36 = arith.constant dense<0.000000e+00> : vector<16x512xf32>
    %151 = tpu.matmul %150, %0, %cst_36 {dimension_numbers = #tpu.dot_dimension_numbers<[1], [0], [0], [1], [0, 0, 1, 1], [], []>} : vector<16x128xbf16>, vector<128x512xbf16>, vector<16x512xf32> -> vector<16x512xf32>
    %152 = arith.addf %149, %151 : vector<16x512xf32>
    %153 = vector.extract_strided_slice %152 {offsets = [0, 0], sizes = [16, 128], strides = [1, 1]} : vector<16x512xf32> to vector<16x128xf32>
    %154 = arith.negf %153 : vector<16x128xf32>
    %155 = math.exp %154 : vector<16x128xf32>
    %cst_37 = arith.constant 1.000000e+00 : f32
    %156 = vector.broadcast %cst_37 : f32 to vector<16x128xf32>
    %157 = arith.addf %156, %155 : vector<16x128xf32>
    %158 = arith.divf %156, %157 : vector<16x128xf32>
    %159 = vector.extract_strided_slice %152 {offsets = [0, 128], sizes = [16, 128], strides = [1, 1]} : vector<16x512xf32> to vector<16x128xf32>
    %160 = arith.negf %159 : vector<16x128xf32>
    %161 = math.exp %160 : vector<16x128xf32>
    %cst_38 = arith.constant 1.000000e+00 : f32
    %162 = vector.broadcast %cst_38 : f32 to vector<16x128xf32>
    %163 = arith.addf %162, %161 : vector<16x128xf32>
    %164 = arith.divf %162, %163 : vector<16x128xf32>
    %165 = vector.extract_strided_slice %152 {offsets = [0, 256], sizes = [16, 128], strides = [1, 1]} : vector<16x512xf32> to vector<16x128xf32>
    %166 = math.tanh %165 : vector<16x128xf32>
    %167 = vector.extract_strided_slice %152 {offsets = [0, 384], sizes = [16, 128], strides = [1, 1]} : vector<16x512xf32> to vector<16x128xf32>
    %168 = arith.negf %167 : vector<16x128xf32>
    %169 = math.exp %168 : vector<16x128xf32>
    %cst_39 = arith.constant 1.000000e+00 : f32
    %170 = vector.broadcast %cst_39 : f32 to vector<16x128xf32>
    %171 = arith.addf %170, %169 : vector<16x128xf32>
    %172 = arith.divf %170, %171 : vector<16x128xf32>
    %173 = arith.mulf %164, %139 : vector<16x128xf32>
    %174 = arith.mulf %158, %166 : vector<16x128xf32>
    %175 = arith.addf %173, %174 : vector<16x128xf32>
    %176 = math.tanh %175 : vector<16x128xf32>
    %177 = arith.mulf %172, %176 : vector<16x128xf32>
    %178 = arith.truncf %177 : vector<16x128xf32> to vector<16x128xbf16>
    %179 = arith.index_cast %c4_i32 : i32 to index
    %c0_40 = arith.constant 0 : index
    %c0_41 = arith.constant 0 : index
    %180 = vector.load %arg10[%179, %c0_40, %c0_41] : memref<8x16x128xbf16, #tpu.memory_space<vmem>>, vector<1x16x128xbf16>
    %181 = vector.shape_cast %180 : vector<1x16x128xbf16> to vector<16x128xbf16>
    %182 = vector.shape_cast %178 : vector<16x128xbf16> to vector<1x16x128xbf16>
    tpu.vector_store %arg10[%179, %c0_40, %c0_41], %182 {strides = array<i32>} : memref<8x16x128xbf16, #tpu.memory_space<vmem>>, vector<1x16x128xbf16>,
    %c5_i32 = arith.constant 5 : i32
    %183 = arith.index_cast %c5_i32 : i32 to index
    %c0_42 = arith.constant 0 : index
    %c0_43 = arith.constant 0 : index
    %184 = vector.load %arg1[%183, %c0_42, %c0_43] : memref<8x16x512xf32, #tpu.memory_space<vmem>>, vector<1x16x512xf32>
    %185 = vector.shape_cast %184 : vector<1x16x512xf32> to vector<16x512xf32>
    %186 = arith.truncf %177 : vector<16x128xf32> to vector<16x128xbf16>
    %cst_44 = arith.constant dense<0.000000e+00> : vector<16x512xf32>
    %187 = tpu.matmul %186, %0, %cst_44 {dimension_numbers = #tpu.dot_dimension_numbers<[1], [0], [0], [1], [0, 0, 1, 1], [], []>} : vector<16x128xbf16>, vector<128x512xbf16>, vector<16x512xf32> -> vector<16x512xf32>
    %188 = arith.addf %185, %187 : vector<16x512xf32>
    %189 = vector.extract_strided_slice %188 {offsets = [0, 0], sizes = [16, 128], strides = [1, 1]} : vector<16x512xf32> to vector<16x128xf32>
    %190 = arith.negf %189 : vector<16x128xf32>
    %191 = math.exp %190 : vector<16x128xf32>
    %cst_45 = arith.constant 1.000000e+00 : f32
    %192 = vector.broadcast %cst_45 : f32 to vector<16x128xf32>
    %193 = arith.addf %192, %191 : vector<16x128xf32>
    %194 = arith.divf %192, %193 : vector<16x128xf32>
    %195 = vector.extract_strided_slice %188 {offsets = [0, 128], sizes = [16, 128], strides = [1, 1]} : vector<16x512xf32> to vector<16x128xf32>
    %196 = arith.negf %195 : vector<16x128xf32>
    %197 = math.exp %196 : vector<16x128xf32>
    %cst_46 = arith.constant 1.000000e+00 : f32
    %198 = vector.broadcast %cst_46 : f32 to vector<16x128xf32>
    %199 = arith.addf %198, %197 : vector<16x128xf32>
    %200 = arith.divf %198, %199 : vector<16x128xf32>
    %201 = vector.extract_strided_slice %188 {offsets = [0, 256], sizes = [16, 128], strides = [1, 1]} : vector<16x512xf32> to vector<16x128xf32>
    %202 = math.tanh %201 : vector<16x128xf32>
    %203 = vector.extract_strided_slice %188 {offsets = [0, 384], sizes = [16, 128], strides = [1, 1]} : vector<16x512xf32> to vector<16x128xf32>
    %204 = arith.negf %203 : vector<16x128xf32>
    %205 = math.exp %204 : vector<16x128xf32>
    %cst_47 = arith.constant 1.000000e+00 : f32
    %206 = vector.broadcast %cst_47 : f32 to vector<16x128xf32>
    %207 = arith.addf %206, %205 : vector<16x128xf32>
    %208 = arith.divf %206, %207 : vector<16x128xf32>
    %209 = arith.mulf %200, %175 : vector<16x128xf32>
    %210 = arith.mulf %194, %202 : vector<16x128xf32>
    %211 = arith.addf %209, %210 : vector<16x128xf32>
    %212 = math.tanh %211 : vector<16x128xf32>
    %213 = arith.mulf %208, %212 : vector<16x128xf32>
    %214 = arith.truncf %213 : vector<16x128xf32> to vector<16x128xbf16>
    %215 = arith.index_cast %c5_i32 : i32 to index
    %c0_48 = arith.constant 0 : index
    %c0_49 = arith.constant 0 : index
    %216 = vector.load %arg10[%215, %c0_48, %c0_49] : memref<8x16x128xbf16, #tpu.memory_space<vmem>>, vector<1x16x128xbf16>
    %217 = vector.shape_cast %216 : vector<1x16x128xbf16> to vector<16x128xbf16>
    %218 = vector.shape_cast %214 : vector<16x128xbf16> to vector<1x16x128xbf16>
    tpu.vector_store %arg10[%215, %c0_48, %c0_49], %218 {strides = array<i32>} : memref<8x16x128xbf16, #tpu.memory_space<vmem>>, vector<1x16x128xbf16>,
    %c6_i32 = arith.constant 6 : i32
    %219 = arith.index_cast %c6_i32 : i32 to index
    %c0_50 = arith.constant 0 : index
    %c0_51 = arith.constant 0 : index
    %220 = vector.load %arg1[%219, %c0_50, %c0_51] : memref<8x16x512xf32, #tpu.memory_space<vmem>>, vector<1x16x512xf32>
    %221 = vector.shape_cast %220 : vector<1x16x512xf32> to vector<16x512xf32>
    %222 = arith.truncf %213 : vector<16x128xf32> to vector<16x128xbf16>
    %cst_52 = arith.constant dense<0.000000e+00> : vector<16x512xf32>
    %223 = tpu.matmul %222, %0, %cst_52 {dimension_numbers = #tpu.dot_dimension_numbers<[1], [0], [0], [1], [0, 0, 1, 1], [], []>} : vector<16x128xbf16>, vector<128x512xbf16>, vector<16x512xf32> -> vector<16x512xf32>
    %224 = arith.addf %221, %223 : vector<16x512xf32>
    %225 = vector.extract_strided_slice %224 {offsets = [0, 0], sizes = [16, 128], strides = [1, 1]} : vector<16x512xf32> to vector<16x128xf32>
    %226 = arith.negf %225 : vector<16x128xf32>
    %227 = math.exp %226 : vector<16x128xf32>
    %cst_53 = arith.constant 1.000000e+00 : f32
    %228 = vector.broadcast %cst_53 : f32 to vector<16x128xf32>
    %229 = arith.addf %228, %227 : vector<16x128xf32>
    %230 = arith.divf %228, %229 : vector<16x128xf32>
    %231 = vector.extract_strided_slice %224 {offsets = [0, 128], sizes = [16, 128], strides = [1, 1]} : vector<16x512xf32> to vector<16x128xf32>
    %232 = arith.negf %231 : vector<16x128xf32>
    %233 = math.exp %232 : vector<16x128xf32>
    %cst_54 = arith.constant 1.000000e+00 : f32
    %234 = vector.broadcast %cst_54 : f32 to vector<16x128xf32>
    %235 = arith.addf %234, %233 : vector<16x128xf32>
    %236 = arith.divf %234, %235 : vector<16x128xf32>
    %237 = vector.extract_strided_slice %224 {offsets = [0, 256], sizes = [16, 128], strides = [1, 1]} : vector<16x512xf32> to vector<16x128xf32>
    %238 = math.tanh %237 : vector<16x128xf32>
    %239 = vector.extract_strided_slice %224 {offsets = [0, 384], sizes = [16, 128], strides = [1, 1]} : vector<16x512xf32> to vector<16x128xf32>
    %240 = arith.negf %239 : vector<16x128xf32>
    %241 = math.exp %240 : vector<16x128xf32>
    %cst_55 = arith.constant 1.000000e+00 : f32
    %242 = vector.broadcast %cst_55 : f32 to vector<16x128xf32>
    %243 = arith.addf %242, %241 : vector<16x128xf32>
    %244 = arith.divf %242, %243 : vector<16x128xf32>
    %245 = arith.mulf %236, %211 : vector<16x128xf32>
    %246 = arith.mulf %230, %238 : vector<16x128xf32>
    %247 = arith.addf %245, %246 : vector<16x128xf32>
    %248 = math.tanh %247 : vector<16x128xf32>
    %249 = arith.mulf %244, %248 : vector<16x128xf32>
    %250 = arith.truncf %249 : vector<16x128xf32> to vector<16x128xbf16>
    %251 = arith.index_cast %c6_i32 : i32 to index
    %c0_56 = arith.constant 0 : index
    %c0_57 = arith.constant 0 : index
    %252 = vector.load %arg10[%251, %c0_56, %c0_57] : memref<8x16x128xbf16, #tpu.memory_space<vmem>>, vector<1x16x128xbf16>
    %253 = vector.shape_cast %252 : vector<1x16x128xbf16> to vector<16x128xbf16>
    %254 = vector.shape_cast %250 : vector<16x128xbf16> to vector<1x16x128xbf16>
    tpu.vector_store %arg10[%251, %c0_56, %c0_57], %254 {strides = array<i32>} : memref<8x16x128xbf16, #tpu.memory_space<vmem>>, vector<1x16x128xbf16>,
    %c7_i32 = arith.constant 7 : i32
    %255 = arith.index_cast %c7_i32 : i32 to index
    %c0_58 = arith.constant 0 : index
    %c0_59 = arith.constant 0 : index
    %256 = vector.load %arg1[%255, %c0_58, %c0_59] : memref<8x16x512xf32, #tpu.memory_space<vmem>>, vector<1x16x512xf32>
    %257 = vector.shape_cast %256 : vector<1x16x512xf32> to vector<16x512xf32>
    %258 = arith.truncf %249 : vector<16x128xf32> to vector<16x128xbf16>
    %cst_60 = arith.constant dense<0.000000e+00> : vector<16x512xf32>
    %259 = tpu.matmul %258, %0, %cst_60 {dimension_numbers = #tpu.dot_dimension_numbers<[1], [0], [0], [1], [0, 0, 1, 1], [], []>} : vector<16x128xbf16>, vector<128x512xbf16>, vector<16x512xf32> -> vector<16x512xf32>
    %260 = arith.addf %257, %259 : vector<16x512xf32>
    %261 = vector.extract_strided_slice %260 {offsets = [0, 0], sizes = [16, 128], strides = [1, 1]} : vector<16x512xf32> to vector<16x128xf32>
    %262 = arith.negf %261 : vector<16x128xf32>
    %263 = math.exp %262 : vector<16x128xf32>
    %cst_61 = arith.constant 1.000000e+00 : f32
    %264 = vector.broadcast %cst_61 : f32 to vector<16x128xf32>
    %265 = arith.addf %264, %263 : vector<16x128xf32>
    %266 = arith.divf %264, %265 : vector<16x128xf32>
    %267 = vector.extract_strided_slice %260 {offsets = [0, 128], sizes = [16, 128], strides = [1, 1]} : vector<16x512xf32> to vector<16x128xf32>
    %268 = arith.negf %267 : vector<16x128xf32>
    %269 = math.exp %268 : vector<16x128xf32>
    %cst_62 = arith.constant 1.000000e+00 : f32
    %270 = vector.broadcast %cst_62 : f32 to vector<16x128xf32>
    %271 = arith.addf %270, %269 : vector<16x128xf32>
    %272 = arith.divf %270, %271 : vector<16x128xf32>
    %273 = vector.extract_strided_slice %260 {offsets = [0, 256], sizes = [16, 128], strides = [1, 1]} : vector<16x512xf32> to vector<16x128xf32>
    %274 = math.tanh %273 : vector<16x128xf32>
    %275 = vector.extract_strided_slice %260 {offsets = [0, 384], sizes = [16, 128], strides = [1, 1]} : vector<16x512xf32> to vector<16x128xf32>
    %276 = arith.negf %275 : vector<16x128xf32>
    %277 = math.exp %276 : vector<16x128xf32>
    %cst_63 = arith.constant 1.000000e+00 : f32
    %278 = vector.broadcast %cst_63 : f32 to vector<16x128xf32>
    %279 = arith.addf %278, %277 : vector<16x128xf32>
    %280 = arith.divf %278, %279 : vector<16x128xf32>
    %281 = arith.mulf %272, %247 : vector<16x128xf32>
    %282 = arith.mulf %266, %274 : vector<16x128xf32>
    %283 = arith.addf %281, %282 : vector<16x128xf32>
    %284 = math.tanh %283 : vector<16x128xf32>
    %285 = arith.mulf %280, %284 : vector<16x128xf32>
    %286 = arith.truncf %285 : vector<16x128xf32> to vector<16x128xbf16>
    %287 = arith.index_cast %c7_i32 : i32 to index
    %c0_64 = arith.constant 0 : index
    %c0_65 = arith.constant 0 : index
    %288 = vector.load %arg10[%287, %c0_64, %c0_65] : memref<8x16x128xbf16, #tpu.memory_space<vmem>>, vector<1x16x128xbf16>
    %289 = vector.shape_cast %288 : vector<1x16x128xbf16> to vector<16x128xbf16>
    %290 = vector.shape_cast %286 : vector<16x128xbf16> to vector<1x16x128xbf16>
    tpu.vector_store %arg10[%287, %c0_64, %c0_65], %290 {strides = array<i32>} : memref<8x16x128xbf16, #tpu.memory_space<vmem>>, vector<1x16x128xbf16>,
    %c8_i32 = arith.constant 8 : i32
    %c0_66 = arith.constant 0 : index
    %c0_67 = arith.constant 0 : index
    %291 = vector.load %arg4[%c0_66, %c0_67] : memref<128x512xbf16, #tpu.memory_space<vmem>>, vector<128x512xbf16>
    %c0_68 = arith.constant 0 : index
    %c0_69 = arith.constant 0 : index
    %c0_70 = arith.constant 0 : index
    %292 = vector.load %arg10[%c0_68, %c0_69, %c0_70] : memref<8x16x128xbf16, #tpu.memory_space<vmem>>, vector<8x16x128xbf16>
    %293 = vector.shape_cast %292 : vector<8x16x128xbf16> to vector<128x128xbf16>
    %c0_71 = arith.constant 0 : index
    %c0_72 = arith.constant 0 : index
    %294 = vector.load %arg3[%c0_71, %c0_72] : memref<128x512xbf16, #tpu.memory_space<vmem>>, vector<128x512xbf16>
    %cst_73 = arith.constant dense<0.000000e+00> : vector<128x512xf32>
    %295 = tpu.matmul %293, %294, %cst_73 {dimension_numbers = #tpu.dot_dimension_numbers<[1], [0], [0], [1], [0, 0, 1, 1], [], []>} : vector<128x128xbf16>, vector<128x512xbf16>, vector<128x512xf32> -> vector<128x512xf32>
    %c0_74 = arith.constant 0 : index
    %c0_75 = arith.constant 0 : index
    %296 = vector.load %arg5[%c0_74, %c0_75] : memref<1x512xf32, #tpu.memory_space<vmem>>, vector<1x512xf32>
    %297 = vector.broadcast %296 : vector<1x512xf32> to vector<128x512xf32>
    %298 = arith.addf %295, %297 : vector<128x512xf32>
    %299 = vector.shape_cast %298 : vector<128x512xf32> to vector<8x16x512xf32>
    %c0_76 = arith.constant 0 : index
    %c0_77 = arith.constant 0 : index
    %c0_78 = arith.constant 0 : index
    %300 = vector.load %arg9[%c0_76, %c0_77, %c0_78] : memref<8x16x512xf32, #tpu.memory_space<vmem>>, vector<8x16x512xf32>
    tpu.vector_store %arg9[%c0_76, %c0_77, %c0_78], %299 {strides = array<i32>} : memref<8x16x512xf32, #tpu.memory_space<vmem>>, vector<8x16x512xf32>,
    %cst_79 = arith.constant 0.000000e+00 : f32
    %301 = vector.broadcast %cst_79 : f32 to vector<16x128xf32>
    %cst_80 = arith.constant 0.000000e+00 : f32
    %302 = vector.broadcast %cst_80 : f32 to vector<16x128xf32>
    %c0_i32_81 = arith.constant 0 : i32
    %303 = arith.index_cast %c0_i32_81 : i32 to index
    %c0_82 = arith.constant 0 : index
    %c0_83 = arith.constant 0 : index
    %304 = vector.load %arg9[%303, %c0_82, %c0_83] : memref<8x16x512xf32, #tpu.memory_space<vmem>>, vector<1x16x512xf32>
    %305 = vector.shape_cast %304 : vector<1x16x512xf32> to vector<16x512xf32>
    %306 = arith.truncf %301 : vector<16x128xf32> to vector<16x128xbf16>
    %cst_84 = arith.constant dense<0.000000e+00> : vector<16x512xf32>
    %307 = tpu.matmul %306, %291, %cst_84 {dimension_numbers = #tpu.dot_dimension_numbers<[1], [0], [0], [1], [0, 0, 1, 1], [], []>} : vector<16x128xbf16>, vector<128x512xbf16>, vector<16x512xf32> -> vector<16x512xf32>
    %308 = arith.addf %305, %307 : vector<16x512xf32>
    %309 = vector.extract_strided_slice %308 {offsets = [0, 0], sizes = [16, 128], strides = [1, 1]} : vector<16x512xf32> to vector<16x128xf32>
    %310 = arith.negf %309 : vector<16x128xf32>
    %311 = math.exp %310 : vector<16x128xf32>
    %cst_85 = arith.constant 1.000000e+00 : f32
    %312 = vector.broadcast %cst_85 : f32 to vector<16x128xf32>
    %313 = arith.addf %312, %311 : vector<16x128xf32>
    %314 = arith.divf %312, %313 : vector<16x128xf32>
    %315 = vector.extract_strided_slice %308 {offsets = [0, 128], sizes = [16, 128], strides = [1, 1]} : vector<16x512xf32> to vector<16x128xf32>
    %316 = arith.negf %315 : vector<16x128xf32>
    %317 = math.exp %316 : vector<16x128xf32>
    %cst_86 = arith.constant 1.000000e+00 : f32
    %318 = vector.broadcast %cst_86 : f32 to vector<16x128xf32>
    %319 = arith.addf %318, %317 : vector<16x128xf32>
    %320 = arith.divf %318, %319 : vector<16x128xf32>
    %321 = vector.extract_strided_slice %308 {offsets = [0, 256], sizes = [16, 128], strides = [1, 1]} : vector<16x512xf32> to vector<16x128xf32>
    %322 = math.tanh %321 : vector<16x128xf32>
    %323 = vector.extract_strided_slice %308 {offsets = [0, 384], sizes = [16, 128], strides = [1, 1]} : vector<16x512xf32> to vector<16x128xf32>
    %324 = arith.negf %323 : vector<16x128xf32>
    %325 = math.exp %324 : vector<16x128xf32>
    %cst_87 = arith.constant 1.000000e+00 : f32
    %326 = vector.broadcast %cst_87 : f32 to vector<16x128xf32>
    %327 = arith.addf %326, %325 : vector<16x128xf32>
    %328 = arith.divf %326, %327 : vector<16x128xf32>
    %329 = arith.mulf %320, %302 : vector<16x128xf32>
    %330 = arith.mulf %314, %322 : vector<16x128xf32>
    %331 = arith.addf %329, %330 : vector<16x128xf32>
    %332 = math.tanh %331 : vector<16x128xf32>
    %333 = arith.mulf %328, %332 : vector<16x128xf32>
    %c1_i32_88 = arith.constant 1 : i32
    %334 = arith.index_cast %c1_i32_88 : i32 to index
    %c0_89 = arith.constant 0 : index
    %c0_90 = arith.constant 0 : index
    %335 = vector.load %arg9[%334, %c0_89, %c0_90] : memref<8x16x512xf32, #tpu.memory_space<vmem>>, vector<1x16x512xf32>
    %336 = vector.shape_cast %335 : vector<1x16x512xf32> to vector<16x512xf32>
    %337 = arith.truncf %333 : vector<16x128xf32> to vector<16x128xbf16>
    %cst_91 = arith.constant dense<0.000000e+00> : vector<16x512xf32>
    %338 = tpu.matmul %337, %291, %cst_91 {dimension_numbers = #tpu.dot_dimension_numbers<[1], [0], [0], [1], [0, 0, 1, 1], [], []>} : vector<16x128xbf16>, vector<128x512xbf16>, vector<16x512xf32> -> vector<16x512xf32>
    %339 = arith.addf %336, %338 : vector<16x512xf32>
    %340 = vector.extract_strided_slice %339 {offsets = [0, 0], sizes = [16, 128], strides = [1, 1]} : vector<16x512xf32> to vector<16x128xf32>
    %341 = arith.negf %340 : vector<16x128xf32>
    %342 = math.exp %341 : vector<16x128xf32>
    %cst_92 = arith.constant 1.000000e+00 : f32
    %343 = vector.broadcast %cst_92 : f32 to vector<16x128xf32>
    %344 = arith.addf %343, %342 : vector<16x128xf32>
    %345 = arith.divf %343, %344 : vector<16x128xf32>
    %346 = vector.extract_strided_slice %339 {offsets = [0, 128], sizes = [16, 128], strides = [1, 1]} : vector<16x512xf32> to vector<16x128xf32>
    %347 = arith.negf %346 : vector<16x128xf32>
    %348 = math.exp %347 : vector<16x128xf32>
    %cst_93 = arith.constant 1.000000e+00 : f32
    %349 = vector.broadcast %cst_93 : f32 to vector<16x128xf32>
    %350 = arith.addf %349, %348 : vector<16x128xf32>
    %351 = arith.divf %349, %350 : vector<16x128xf32>
    %352 = vector.extract_strided_slice %339 {offsets = [0, 256], sizes = [16, 128], strides = [1, 1]} : vector<16x512xf32> to vector<16x128xf32>
    %353 = math.tanh %352 : vector<16x128xf32>
    %354 = vector.extract_strided_slice %339 {offsets = [0, 384], sizes = [16, 128], strides = [1, 1]} : vector<16x512xf32> to vector<16x128xf32>
    %355 = arith.negf %354 : vector<16x128xf32>
    %356 = math.exp %355 : vector<16x128xf32>
    %cst_94 = arith.constant 1.000000e+00 : f32
    %357 = vector.broadcast %cst_94 : f32 to vector<16x128xf32>
    %358 = arith.addf %357, %356 : vector<16x128xf32>
    %359 = arith.divf %357, %358 : vector<16x128xf32>
    %360 = arith.mulf %351, %331 : vector<16x128xf32>
    %361 = arith.mulf %345, %353 : vector<16x128xf32>
    %362 = arith.addf %360, %361 : vector<16x128xf32>
    %363 = math.tanh %362 : vector<16x128xf32>
    %364 = arith.mulf %359, %363 : vector<16x128xf32>
    %c2_i32_95 = arith.constant 2 : i32
    %365 = arith.index_cast %c2_i32_95 : i32 to index
    %c0_96 = arith.constant 0 : index
    %c0_97 = arith.constant 0 : index
    %366 = vector.load %arg9[%365, %c0_96, %c0_97] : memref<8x16x512xf32, #tpu.memory_space<vmem>>, vector<1x16x512xf32>
    %367 = vector.shape_cast %366 : vector<1x16x512xf32> to vector<16x512xf32>
    %368 = arith.truncf %364 : vector<16x128xf32> to vector<16x128xbf16>
    %cst_98 = arith.constant dense<0.000000e+00> : vector<16x512xf32>
    %369 = tpu.matmul %368, %291, %cst_98 {dimension_numbers = #tpu.dot_dimension_numbers<[1], [0], [0], [1], [0, 0, 1, 1], [], []>} : vector<16x128xbf16>, vector<128x512xbf16>, vector<16x512xf32> -> vector<16x512xf32>
    %370 = arith.addf %367, %369 : vector<16x512xf32>
    %371 = vector.extract_strided_slice %370 {offsets = [0, 0], sizes = [16, 128], strides = [1, 1]} : vector<16x512xf32> to vector<16x128xf32>
    %372 = arith.negf %371 : vector<16x128xf32>
    %373 = math.exp %372 : vector<16x128xf32>
    %cst_99 = arith.constant 1.000000e+00 : f32
    %374 = vector.broadcast %cst_99 : f32 to vector<16x128xf32>
    %375 = arith.addf %374, %373 : vector<16x128xf32>
    %376 = arith.divf %374, %375 : vector<16x128xf32>
    %377 = vector.extract_strided_slice %370 {offsets = [0, 128], sizes = [16, 128], strides = [1, 1]} : vector<16x512xf32> to vector<16x128xf32>
    %378 = arith.negf %377 : vector<16x128xf32>
    %379 = math.exp %378 : vector<16x128xf32>
    %cst_100 = arith.constant 1.000000e+00 : f32
    %380 = vector.broadcast %cst_100 : f32 to vector<16x128xf32>
    %381 = arith.addf %380, %379 : vector<16x128xf32>
    %382 = arith.divf %380, %381 : vector<16x128xf32>
    %383 = vector.extract_strided_slice %370 {offsets = [0, 256], sizes = [16, 128], strides = [1, 1]} : vector<16x512xf32> to vector<16x128xf32>
    %384 = math.tanh %383 : vector<16x128xf32>
    %385 = vector.extract_strided_slice %370 {offsets = [0, 384], sizes = [16, 128], strides = [1, 1]} : vector<16x512xf32> to vector<16x128xf32>
    %386 = arith.negf %385 : vector<16x128xf32>
    %387 = math.exp %386 : vector<16x128xf32>
    %cst_101 = arith.constant 1.000000e+00 : f32
    %388 = vector.broadcast %cst_101 : f32 to vector<16x128xf32>
    %389 = arith.addf %388, %387 : vector<16x128xf32>
    %390 = arith.divf %388, %389 : vector<16x128xf32>
    %391 = arith.mulf %382, %362 : vector<16x128xf32>
    %392 = arith.mulf %376, %384 : vector<16x128xf32>
    %393 = arith.addf %391, %392 : vector<16x128xf32>
    %394 = math.tanh %393 : vector<16x128xf32>
    %395 = arith.mulf %390, %394 : vector<16x128xf32>
    %c3_i32_102 = arith.constant 3 : i32
    %396 = arith.index_cast %c3_i32_102 : i32 to index
    %c0_103 = arith.constant 0 : index
    %c0_104 = arith.constant 0 : index
    %397 = vector.load %arg9[%396, %c0_103, %c0_104] : memref<8x16x512xf32, #tpu.memory_space<vmem>>, vector<1x16x512xf32>
    %398 = vector.shape_cast %397 : vector<1x16x512xf32> to vector<16x512xf32>
    %399 = arith.truncf %395 : vector<16x128xf32> to vector<16x128xbf16>
    %cst_105 = arith.constant dense<0.000000e+00> : vector<16x512xf32>
    %400 = tpu.matmul %399, %291, %cst_105 {dimension_numbers = #tpu.dot_dimension_numbers<[1], [0], [0], [1], [0, 0, 1, 1], [], []>} : vector<16x128xbf16>, vector<128x512xbf16>, vector<16x512xf32> -> vector<16x512xf32>
    %401 = arith.addf %398, %400 : vector<16x512xf32>
    %402 = vector.extract_strided_slice %401 {offsets = [0, 0], sizes = [16, 128], strides = [1, 1]} : vector<16x512xf32> to vector<16x128xf32>
    %403 = arith.negf %402 : vector<16x128xf32>
    %404 = math.exp %403 : vector<16x128xf32>
    %cst_106 = arith.constant 1.000000e+00 : f32
    %405 = vector.broadcast %cst_106 : f32 to vector<16x128xf32>
    %406 = arith.addf %405, %404 : vector<16x128xf32>
    %407 = arith.divf %405, %406 : vector<16x128xf32>
    %408 = vector.extract_strided_slice %401 {offsets = [0, 128], sizes = [16, 128], strides = [1, 1]} : vector<16x512xf32> to vector<16x128xf32>
    %409 = arith.negf %408 : vector<16x128xf32>
    %410 = math.exp %409 : vector<16x128xf32>
    %cst_107 = arith.constant 1.000000e+00 : f32
    %411 = vector.broadcast %cst_107 : f32 to vector<16x128xf32>
    %412 = arith.addf %411, %410 : vector<16x128xf32>
    %413 = arith.divf %411, %412 : vector<16x128xf32>
    %414 = vector.extract_strided_slice %401 {offsets = [0, 256], sizes = [16, 128], strides = [1, 1]} : vector<16x512xf32> to vector<16x128xf32>
    %415 = math.tanh %414 : vector<16x128xf32>
    %416 = vector.extract_strided_slice %401 {offsets = [0, 384], sizes = [16, 128], strides = [1, 1]} : vector<16x512xf32> to vector<16x128xf32>
    %417 = arith.negf %416 : vector<16x128xf32>
    %418 = math.exp %417 : vector<16x128xf32>
    %cst_108 = arith.constant 1.000000e+00 : f32
    %419 = vector.broadcast %cst_108 : f32 to vector<16x128xf32>
    %420 = arith.addf %419, %418 : vector<16x128xf32>
    %421 = arith.divf %419, %420 : vector<16x128xf32>
    %422 = arith.mulf %413, %393 : vector<16x128xf32>
    %423 = arith.mulf %407, %415 : vector<16x128xf32>
    %424 = arith.addf %422, %423 : vector<16x128xf32>
    %425 = math.tanh %424 : vector<16x128xf32>
    %426 = arith.mulf %421, %425 : vector<16x128xf32>
    %c4_i32_109 = arith.constant 4 : i32
    %427 = arith.index_cast %c4_i32_109 : i32 to index
    %c0_110 = arith.constant 0 : index
    %c0_111 = arith.constant 0 : index
    %428 = vector.load %arg9[%427, %c0_110, %c0_111] : memref<8x16x512xf32, #tpu.memory_space<vmem>>, vector<1x16x512xf32>
    %429 = vector.shape_cast %428 : vector<1x16x512xf32> to vector<16x512xf32>
    %430 = arith.truncf %426 : vector<16x128xf32> to vector<16x128xbf16>
    %cst_112 = arith.constant dense<0.000000e+00> : vector<16x512xf32>
    %431 = tpu.matmul %430, %291, %cst_112 {dimension_numbers = #tpu.dot_dimension_numbers<[1], [0], [0], [1], [0, 0, 1, 1], [], []>} : vector<16x128xbf16>, vector<128x512xbf16>, vector<16x512xf32> -> vector<16x512xf32>
    %432 = arith.addf %429, %431 : vector<16x512xf32>
    %433 = vector.extract_strided_slice %432 {offsets = [0, 0], sizes = [16, 128], strides = [1, 1]} : vector<16x512xf32> to vector<16x128xf32>
    %434 = arith.negf %433 : vector<16x128xf32>
    %435 = math.exp %434 : vector<16x128xf32>
    %cst_113 = arith.constant 1.000000e+00 : f32
    %436 = vector.broadcast %cst_113 : f32 to vector<16x128xf32>
    %437 = arith.addf %436, %435 : vector<16x128xf32>
    %438 = arith.divf %436, %437 : vector<16x128xf32>
    %439 = vector.extract_strided_slice %432 {offsets = [0, 128], sizes = [16, 128], strides = [1, 1]} : vector<16x512xf32> to vector<16x128xf32>
    %440 = arith.negf %439 : vector<16x128xf32>
    %441 = math.exp %440 : vector<16x128xf32>
    %cst_114 = arith.constant 1.000000e+00 : f32
    %442 = vector.broadcast %cst_114 : f32 to vector<16x128xf32>
    %443 = arith.addf %442, %441 : vector<16x128xf32>
    %444 = arith.divf %442, %443 : vector<16x128xf32>
    %445 = vector.extract_strided_slice %432 {offsets = [0, 256], sizes = [16, 128], strides = [1, 1]} : vector<16x512xf32> to vector<16x128xf32>
    %446 = math.tanh %445 : vector<16x128xf32>
    %447 = vector.extract_strided_slice %432 {offsets = [0, 384], sizes = [16, 128], strides = [1, 1]} : vector<16x512xf32> to vector<16x128xf32>
    %448 = arith.negf %447 : vector<16x128xf32>
    %449 = math.exp %448 : vector<16x128xf32>
    %cst_115 = arith.constant 1.000000e+00 : f32
    %450 = vector.broadcast %cst_115 : f32 to vector<16x128xf32>
    %451 = arith.addf %450, %449 : vector<16x128xf32>
    %452 = arith.divf %450, %451 : vector<16x128xf32>
    %453 = arith.mulf %444, %424 : vector<16x128xf32>
    %454 = arith.mulf %438, %446 : vector<16x128xf32>
    %455 = arith.addf %453, %454 : vector<16x128xf32>
    %456 = math.tanh %455 : vector<16x128xf32>
    %457 = arith.mulf %452, %456 : vector<16x128xf32>
    %c5_i32_116 = arith.constant 5 : i32
    %458 = arith.index_cast %c5_i32_116 : i32 to index
    %c0_117 = arith.constant 0 : index
    %c0_118 = arith.constant 0 : index
    %459 = vector.load %arg9[%458, %c0_117, %c0_118] : memref<8x16x512xf32, #tpu.memory_space<vmem>>, vector<1x16x512xf32>
    %460 = vector.shape_cast %459 : vector<1x16x512xf32> to vector<16x512xf32>
    %461 = arith.truncf %457 : vector<16x128xf32> to vector<16x128xbf16>
    %cst_119 = arith.constant dense<0.000000e+00> : vector<16x512xf32>
    %462 = tpu.matmul %461, %291, %cst_119 {dimension_numbers = #tpu.dot_dimension_numbers<[1], [0], [0], [1], [0, 0, 1, 1], [], []>} : vector<16x128xbf16>, vector<128x512xbf16>, vector<16x512xf32> -> vector<16x512xf32>
    %463 = arith.addf %460, %462 : vector<16x512xf32>
    %464 = vector.extract_strided_slice %463 {offsets = [0, 0], sizes = [16, 128], strides = [1, 1]} : vector<16x512xf32> to vector<16x128xf32>
    %465 = arith.negf %464 : vector<16x128xf32>
    %466 = math.exp %465 : vector<16x128xf32>
    %cst_120 = arith.constant 1.000000e+00 : f32
    %467 = vector.broadcast %cst_120 : f32 to vector<16x128xf32>
    %468 = arith.addf %467, %466 : vector<16x128xf32>
    %469 = arith.divf %467, %468 : vector<16x128xf32>
    %470 = vector.extract_strided_slice %463 {offsets = [0, 128], sizes = [16, 128], strides = [1, 1]} : vector<16x512xf32> to vector<16x128xf32>
    %471 = arith.negf %470 : vector<16x128xf32>
    %472 = math.exp %471 : vector<16x128xf32>
    %cst_121 = arith.constant 1.000000e+00 : f32
    %473 = vector.broadcast %cst_121 : f32 to vector<16x128xf32>
    %474 = arith.addf %473, %472 : vector<16x128xf32>
    %475 = arith.divf %473, %474 : vector<16x128xf32>
    %476 = vector.extract_strided_slice %463 {offsets = [0, 256], sizes = [16, 128], strides = [1, 1]} : vector<16x512xf32> to vector<16x128xf32>
    %477 = math.tanh %476 : vector<16x128xf32>
    %478 = vector.extract_strided_slice %463 {offsets = [0, 384], sizes = [16, 128], strides = [1, 1]} : vector<16x512xf32> to vector<16x128xf32>
    %479 = arith.negf %478 : vector<16x128xf32>
    %480 = math.exp %479 : vector<16x128xf32>
    %cst_122 = arith.constant 1.000000e+00 : f32
    %481 = vector.broadcast %cst_122 : f32 to vector<16x128xf32>
    %482 = arith.addf %481, %480 : vector<16x128xf32>
    %483 = arith.divf %481, %482 : vector<16x128xf32>
    %484 = arith.mulf %475, %455 : vector<16x128xf32>
    %485 = arith.mulf %469, %477 : vector<16x128xf32>
    %486 = arith.addf %484, %485 : vector<16x128xf32>
    %487 = math.tanh %486 : vector<16x128xf32>
    %488 = arith.mulf %483, %487 : vector<16x128xf32>
    %c6_i32_123 = arith.constant 6 : i32
    %489 = arith.index_cast %c6_i32_123 : i32 to index
    %c0_124 = arith.constant 0 : index
    %c0_125 = arith.constant 0 : index
    %490 = vector.load %arg9[%489, %c0_124, %c0_125] : memref<8x16x512xf32, #tpu.memory_space<vmem>>, vector<1x16x512xf32>
    %491 = vector.shape_cast %490 : vector<1x16x512xf32> to vector<16x512xf32>
    %492 = arith.truncf %488 : vector<16x128xf32> to vector<16x128xbf16>
    %cst_126 = arith.constant dense<0.000000e+00> : vector<16x512xf32>
    %493 = tpu.matmul %492, %291, %cst_126 {dimension_numbers = #tpu.dot_dimension_numbers<[1], [0], [0], [1], [0, 0, 1, 1], [], []>} : vector<16x128xbf16>, vector<128x512xbf16>, vector<16x512xf32> -> vector<16x512xf32>
    %494 = arith.addf %491, %493 : vector<16x512xf32>
    %495 = vector.extract_strided_slice %494 {offsets = [0, 0], sizes = [16, 128], strides = [1, 1]} : vector<16x512xf32> to vector<16x128xf32>
    %496 = arith.negf %495 : vector<16x128xf32>
    %497 = math.exp %496 : vector<16x128xf32>
    %cst_127 = arith.constant 1.000000e+00 : f32
    %498 = vector.broadcast %cst_127 : f32 to vector<16x128xf32>
    %499 = arith.addf %498, %497 : vector<16x128xf32>
    %500 = arith.divf %498, %499 : vector<16x128xf32>
    %501 = vector.extract_strided_slice %494 {offsets = [0, 128], sizes = [16, 128], strides = [1, 1]} : vector<16x512xf32> to vector<16x128xf32>
    %502 = arith.negf %501 : vector<16x128xf32>
    %503 = math.exp %502 : vector<16x128xf32>
    %cst_128 = arith.constant 1.000000e+00 : f32
    %504 = vector.broadcast %cst_128 : f32 to vector<16x128xf32>
    %505 = arith.addf %504, %503 : vector<16x128xf32>
    %506 = arith.divf %504, %505 : vector<16x128xf32>
    %507 = vector.extract_strided_slice %494 {offsets = [0, 256], sizes = [16, 128], strides = [1, 1]} : vector<16x512xf32> to vector<16x128xf32>
    %508 = math.tanh %507 : vector<16x128xf32>
    %509 = vector.extract_strided_slice %494 {offsets = [0, 384], sizes = [16, 128], strides = [1, 1]} : vector<16x512xf32> to vector<16x128xf32>
    %510 = arith.negf %509 : vector<16x128xf32>
    %511 = math.exp %510 : vector<16x128xf32>
    %cst_129 = arith.constant 1.000000e+00 : f32
    %512 = vector.broadcast %cst_129 : f32 to vector<16x128xf32>
    %513 = arith.addf %512, %511 : vector<16x128xf32>
    %514 = arith.divf %512, %513 : vector<16x128xf32>
    %515 = arith.mulf %506, %486 : vector<16x128xf32>
    %516 = arith.mulf %500, %508 : vector<16x128xf32>
    %517 = arith.addf %515, %516 : vector<16x128xf32>
    %518 = math.tanh %517 : vector<16x128xf32>
    %519 = arith.mulf %514, %518 : vector<16x128xf32>
    %c7_i32_130 = arith.constant 7 : i32
    %520 = arith.index_cast %c7_i32_130 : i32 to index
    %c0_131 = arith.constant 0 : index
    %c0_132 = arith.constant 0 : index
    %521 = vector.load %arg9[%520, %c0_131, %c0_132] : memref<8x16x512xf32, #tpu.memory_space<vmem>>, vector<1x16x512xf32>
    %522 = vector.shape_cast %521 : vector<1x16x512xf32> to vector<16x512xf32>
    %523 = arith.truncf %519 : vector<16x128xf32> to vector<16x128xbf16>
    %cst_133 = arith.constant dense<0.000000e+00> : vector<16x512xf32>
    %524 = tpu.matmul %523, %291, %cst_133 {dimension_numbers = #tpu.dot_dimension_numbers<[1], [0], [0], [1], [0, 0, 1, 1], [], []>} : vector<16x128xbf16>, vector<128x512xbf16>, vector<16x512xf32> -> vector<16x512xf32>
    %525 = arith.addf %522, %524 : vector<16x512xf32>
    %526 = vector.extract_strided_slice %525 {offsets = [0, 0], sizes = [16, 128], strides = [1, 1]} : vector<16x512xf32> to vector<16x128xf32>
    %527 = arith.negf %526 : vector<16x128xf32>
    %528 = math.exp %527 : vector<16x128xf32>
    %cst_134 = arith.constant 1.000000e+00 : f32
    %529 = vector.broadcast %cst_134 : f32 to vector<16x128xf32>
    %530 = arith.addf %529, %528 : vector<16x128xf32>
    %531 = arith.divf %529, %530 : vector<16x128xf32>
    %532 = vector.extract_strided_slice %525 {offsets = [0, 128], sizes = [16, 128], strides = [1, 1]} : vector<16x512xf32> to vector<16x128xf32>
    %533 = arith.negf %532 : vector<16x128xf32>
    %534 = math.exp %533 : vector<16x128xf32>
    %cst_135 = arith.constant 1.000000e+00 : f32
    %535 = vector.broadcast %cst_135 : f32 to vector<16x128xf32>
    %536 = arith.addf %535, %534 : vector<16x128xf32>
    %537 = arith.divf %535, %536 : vector<16x128xf32>
    %538 = vector.extract_strided_slice %525 {offsets = [0, 256], sizes = [16, 128], strides = [1, 1]} : vector<16x512xf32> to vector<16x128xf32>
    %539 = math.tanh %538 : vector<16x128xf32>
    %540 = vector.extract_strided_slice %525 {offsets = [0, 384], sizes = [16, 128], strides = [1, 1]} : vector<16x512xf32> to vector<16x128xf32>
    %541 = arith.negf %540 : vector<16x128xf32>
    %542 = math.exp %541 : vector<16x128xf32>
    %cst_136 = arith.constant 1.000000e+00 : f32
    %543 = vector.broadcast %cst_136 : f32 to vector<16x128xf32>
    %544 = arith.addf %543, %542 : vector<16x128xf32>
    %545 = arith.divf %543, %544 : vector<16x128xf32>
    %546 = arith.mulf %537, %517 : vector<16x128xf32>
    %547 = arith.mulf %531, %539 : vector<16x128xf32>
    %548 = arith.addf %546, %547 : vector<16x128xf32>
    %549 = math.tanh %548 : vector<16x128xf32>
    %550 = arith.mulf %545, %549 : vector<16x128xf32>
    %c8_i32_137 = arith.constant 8 : i32
    %c0_138 = arith.constant 0 : index
    %c0_139 = arith.constant 0 : index
    %551 = vector.load %arg6[%c0_138, %c0_139] : memref<1x128xf32, #tpu.memory_space<vmem>>, vector<1x128xf32>
    %552 = vector.broadcast %551 : vector<1x128xf32> to vector<16x128xf32>
    %553 = arith.mulf %550, %552 : vector<16x128xf32>
    %cst_140 = arith.constant dense<0.000000e+00> : vector<16xf32>
    %554 = vector.multi_reduction <add>, %553, %cst_140 [1] : vector<16x128xf32> to vector<16xf32>
    %555 = vector.shape_cast %554 : vector<16xf32> to vector<16x1xf32>
    %c0_141 = arith.constant 0 : index
    %556 = memref.load %arg7[%c0_141] : memref<1xf32, #tpu.memory_space<smem>>
    %557 = vector.broadcast %556 : f32 to vector<16x1xf32>
    %558 = arith.addf %555, %557 : vector<16x1xf32>
    %559 = vector.shape_cast %558 : vector<16x1xf32> to vector<16x1xf32>
    %560 = vector.broadcast %559 : vector<16x1xf32> to vector<16x128xf32>
    %c0_142 = arith.constant 0 : index
    %c0_143 = arith.constant 0 : index
    %561 = vector.load %arg8[%c0_142, %c0_143] : memref<16x128xf32, #tpu.memory_space<vmem>>, vector<16x128xf32>
    tpu.vector_store %arg8[%c0_142, %c0_143], %560 {strides = array<i32>} : memref<16x128xf32, #tpu.memory_space<vmem>>, vector<16x128xf32>,
    return
  }
  func.func @transform_0(%arg0: i32) -> (i32, i32, i32) {
    %c0_i32 = arith.constant 0 : i32
    %c0_i32_0 = arith.constant 0 : i32
    %c0_i32_1 = arith.constant 0 : i32
    return %c0_i32, %arg0, %c0_i32_0 : i32, i32, i32
  }
  func.func @transform_1(%arg0: i32) -> (i32, i32) {
    %c0_i32 = arith.constant 0 : i32
    %c0_i32_0 = arith.constant 0 : i32
    %c0_i32_1 = arith.constant 0 : i32
    return %c0_i32, %c0_i32_0 : i32, i32
  }
  func.func @transform_2(%arg0: i32) -> (i32, i32) {
    %c0_i32 = arith.constant 0 : i32
    %c0_i32_0 = arith.constant 0 : i32
    %c0_i32_1 = arith.constant 0 : i32
    return %c0_i32, %c0_i32_0 : i32, i32
  }
  func.func @transform_3(%arg0: i32) -> (i32, i32) {
    %c0_i32 = arith.constant 0 : i32
    %c0_i32_0 = arith.constant 0 : i32
    %c0_i32_1 = arith.constant 0 : i32
    return %c0_i32, %c0_i32_0 : i32, i32
  }
  func.func @transform_4(%arg0: i32) -> (i32, i32) {
    %c0_i32 = arith.constant 0 : i32
    %c0_i32_0 = arith.constant 0 : i32
    %c0_i32_1 = arith.constant 0 : i32
    return %c0_i32, %c0_i32_0 : i32, i32
  }
  func.func @transform_5(%arg0: i32) -> (i32, i32) {
    %c0_i32 = arith.constant 0 : i32
    %c0_i32_0 = arith.constant 0 : i32
    %c0_i32_1 = arith.constant 0 : i32
    return %c0_i32, %c0_i32_0 : i32, i32
  }
  func.func @transform_6(%arg0: i32) -> i32 {
    %c0_i32 = arith.constant 0 : i32
    %c0_i32_0 = arith.constant 0 : i32
    return %c0_i32 : i32
  }
  func.func @transform_7(%arg0: i32) -> (i32, i32) {
    %c0_i32 = arith.constant 0 : i32
    %c0_i32_0 = arith.constant 0 : i32
    return %arg0, %c0_i32 : i32, i32
  }
}

</mosaic_0001>

<llo_original>
// kernel: lstm_model_forward.1
$region0: #{lstm_model_forward.1}
  #allocation0 [shape = 'u32[]', space=smem, size = 0x4, offset = 0x4, fixed_abs, tag = 'smem constant byte address 0x4 - core index']
  #allocation1 [shape = 'u32[144,128]{1,0:T(1,128)}', space=vmem, size = 0x12000, scoped, tag = 'internal scratch']
  #allocation2 [shape = 'f32[8,16,512]{2,1,0:T(8,128)}', space=vmem, size = 0x40000, scoped, tag = 'scratch operand']
  #allocation3 [shape = 'bf16[8,16,128]{2,1,0:T(8,128)(2,1)}', space=vmem, size = 0x8000, scoped, tag = 'scratch operand']
  #allocation4 [shape = 'f32[1]{0:T(128)S(6)}', space=smem, size = 0x200, scoped, tag = 'scoped memory for lstm_model_forward.1']
  %s0 = inlined_call_operand.vmem [shape: f32[8,16,512], index: 0, kind: input, shape index: {}]
  %s1 = inlined_call_operand.vmem [shape: bf16[128,512], index: 1, kind: input, shape index: {}]
  %s2 = inlined_call_operand.vmem [shape: bf16[128,512], index: 2, kind: input, shape index: {}]
  %s3 = inlined_call_operand.vmem [shape: bf16[128,512], index: 3, kind: input, shape index: {}]
  %s4 = inlined_call_operand.vmem [shape: f32[1,512], index: 4, kind: input, shape index: {}]
  %s5 = inlined_call_operand.vmem [shape: f32[1,128], index: 5, kind: input, shape index: {}]
  %s6 = inlined_call_operand.<no memory space> [shape: f32[1], index: 6, kind: input, shape index: {}]
  %s7 = inlined_call_operand.vmem [shape: f32[16,128], index: 7, kind: output, shape index: {}]
  %s8 = sld [smem:[#allocation0]]
  $region38: #{lstm_model_forward.1} parent=0
    _
  %s10 = ssub.s32 1, %s8
  %s11 = scalar_select 0, %s10, %s8
  %12 = sst [smem:[#allocation4]] %s6
  // Predicated region
  $region2: #{lstm_model_forward.1} parent=0 // pred_check
    _
  $region3: #{lstm_model_forward.1} parent=0 // pred_check_branch
    %14 = sbr.rel (0) target = $region5
  $region4: #{lstm_model_forward.1} parent=0 // pred_region
    _
  $region5: #{lstm_model_forward.1} parent=0 // pred_fallthru
    _
  // Predicated region
  $region6: #{lstm_model_forward.1} parent=0 // pred_check
    _
  $region7: #{lstm_model_forward.1} parent=0 // pred_check_branch
    %16 = sbr.rel (0) target = $region9
  $region8: #{lstm_model_forward.1} parent=0 // pred_region
    _
  $region9: #{lstm_model_forward.1} parent=0 // pred_fallthru
    _
  // Predicated region
  $region10: #{lstm_model_forward.1} parent=0 // pred_check
    _
  $region11: #{lstm_model_forward.1} parent=0 // pred_check_branch
    %18 = sbr.rel (0) target = $region13
  $region12: #{lstm_model_forward.1} parent=0 // pred_region
    _
  $region13: #{lstm_model_forward.1} parent=0 // pred_fallthru
    _
  // Predicated region
  $region14: #{lstm_model_forward.1} parent=0 // pred_check
    _
  $region15: #{lstm_model_forward.1} parent=0 // pred_check_branch
    %20 = sbr.rel (0) target = $region17
  $region16: #{lstm_model_forward.1} parent=0 // pred_region
    _
  $region17: #{lstm_model_forward.1} parent=0 // pred_fallthru
    _
  // Predicated region
  $region18: #{lstm_model_forward.1} parent=0 // pred_check
    _
  $region19: #{lstm_model_forward.1} parent=0 // pred_check_branch
    %22 = sbr.rel (0) target = $region21
  $region20: #{lstm_model_forward.1} parent=0 // pred_region
    _
  $region21: #{lstm_model_forward.1} parent=0 // pred_fallthru
    _
  // Predicated region
  $region22: #{lstm_model_forward.1} parent=0 // pred_check
    _
  $region23: #{lstm_model_forward.1} parent=0 // pred_check_branch
    %24 = sbr.rel (0) target = $region25
  $region24: #{lstm_model_forward.1} parent=0 // pred_region
    _
  $region25: #{lstm_model_forward.1} parent=0 // pred_fallthru
    _
  // Predicated region
  $region26: #{lstm_model_forward.1} parent=0 // pred_check
    _
  $region27: #{lstm_model_forward.1} parent=0 // pred_check_branch
    %26 = sbr.rel (0) target = $region29
  $region28: #{lstm_model_forward.1} parent=0 // pred_region
    _
  $region29: #{lstm_model_forward.1} parent=0 // pred_fallthru
    _
  %v28 = vld [vmem:[%s1] sm:$0xff]
  %v29 = vld [vmem:[%s1 + $0x8] sm:$0xff]
  %v30 = vld [vmem:[%s1 + $0x10] sm:$0xff]
  %v31 = vld [vmem:[%s1 + $0x18] sm:$0xff]
  %v32 = vld [vmem:[%s1 + $0x20] sm:$0xff]
  %v33 = vld [vmem:[%s1 + $0x28] sm:$0xff]
  %v34 = vld [vmem:[%s1 + $0x30] sm:$0xff]
  %v35 = vld [vmem:[%s1 + $0x38] sm:$0xff]
  %v36 = vld [vmem:[%s1 + $0x40] sm:$0xff]
  %v37 = vld [vmem:[%s1 + $0x48] sm:$0xff]
  %v38 = vld [vmem:[%s1 + $0x50] sm:$0xff]
  %v39 = vld [vmem:[%s1 + $0x58] sm:$0xff]
  %v40 = vld [vmem:[%s1 + $0x60] sm:$0xff]
  %v41 = vld [vmem:[%s1 + $0x68] sm:$0xff]
  %v42 = vld [vmem:[%s1 + $0x70] sm:$0xff]
  %v43 = vld [vmem:[%s1 + $0x78] sm:$0xff]
  %v44 = vld [vmem:[%s1 + $0x80] sm:$0xff]
  %v45 = vld [vmem:[%s1 + $0x88] sm:$0xff]
  %v46 = vld [vmem:[%s1 + $0x90] sm:$0xff]
  %v47 = vld [vmem:[%s1 + $0x98] sm:$0xff]
  %v48 = vld [vmem:[%s1 + $0xa0] sm:$0xff]
  %v49 = vld [vmem:[%s1 + $0xa8] sm:$0xff]
  %v50 = vld [vmem:[%s1 + $0xb0] sm:$0xff]
  %v51 = vld [vmem:[%s1 + $0xb8] sm:$0xff]
  %v52 = vld [vmem:[%s1 + $0xc0] sm:$0xff]
  %v53 = vld [vmem:[%s1 + $0xc8] sm:$0xff]
  %v54 = vld [vmem:[%s1 + $0xd0] sm:$0xff]
  %v55 = vld [vmem:[%s1 + $0xd8] sm:$0xff]
  %v56 = vld [vmem:[%s1 + $0xe0] sm:$0xff]
  %v57 = vld [vmem:[%s1 + $0xe8] sm:$0xff]
  %v58 = vld [vmem:[%s1 + $0xf0] sm:$0xff]
  %v59 = vld [vmem:[%s1 + $0xf8] sm:$0xff]
  %v60 = vld [vmem:[%s0] sm:$0xff]
  %v61 = vld [vmem:[%s0 + $0x8] sm:$0xff]
  %v62 = vld [vmem:[%s0 + $0x10] sm:$0xff]
  %v63 = vld [vmem:[%s0 + $0x18] sm:$0xff]
  %v64 = vld [vmem:[%s0 + $0x20] sm:$0xff]
  %v65 = vld [vmem:[%s0 + $0x28] sm:$0xff]
  %v66 = vld [vmem:[%s0 + $0x30] sm:$0xff]
  %v67 = vld [vmem:[%s0 + $0x38] sm:$0xff]
  %v100 = vunpack.c.l.b16 %v28
  %v101 = vunpack.c.h.b16 %v28
  %v102 = vunpack.c.l.b16 %v29
  %v103 = vunpack.c.h.b16 %v29
  %v104 = vunpack.c.l.b16 %v30
  %v105 = vunpack.c.h.b16 %v30
  %v106 = vunpack.c.l.b16 %v31
  %v107 = vunpack.c.h.b16 %v31
  %v108 = vunpack.c.l.b16 %v32
  %v109 = vunpack.c.h.b16 %v32
  %v110 = vunpack.c.l.b16 %v33
  %v111 = vunpack.c.h.b16 %v33
  %v112 = vunpack.c.l.b16 %v34
  %v113 = vunpack.c.h.b16 %v34
  %v114 = vunpack.c.l.b16 %v35
  %v115 = vunpack.c.h.b16 %v35
  %v116 = vunpack.c.l.b16 %v36
  %v117 = vunpack.c.h.b16 %v36
  %v118 = vunpack.c.l.b16 %v37
  %v119 = vunpack.c.h.b16 %v37
  %v120 = vunpack.c.l.b16 %v38
  %v121 = vunpack.c.h.b16 %v38
  %v122 = vunpack.c.l.b16 %v39
  %v123 = vunpack.c.h.b16 %v39
  %v124 = vunpack.c.l.b16 %v40
  %v125 = vunpack.c.h.b16 %v40
  %v126 = vunpack.c.l.b16 %v41
  %v127 = vunpack.c.h.b16 %v41
  %v128 = vunpack.c.l.b16 %v42
  %v129 = vunpack.c.h.b16 %v42
  %v130 = vunpack.c.l.b16 %v43
  %v131 = vunpack.c.h.b16 %v43
  %v132 = vunpack.c.l.b16 %v44
  %v133 = vunpack.c.h.b16 %v44
  %v134 = vunpack.c.l.b16 %v45
  %v135 = vunpack.c.h.b16 %v45
  %v136 = vunpack.c.l.b16 %v46
  %v137 = vunpack.c.h.b16 %v46
  %v138 = vunpack.c.l.b16 %v47
  %v139 = vunpack.c.h.b16 %v47
  %v140 = vunpack.c.l.b16 %v48
  %v141 = vunpack.c.h.b16 %v48
  %v142 = vunpack.c.l.b16 %v49
  %v143 = vunpack.c.h.b16 %v49
  %v144 = vunpack.c.l.b16 %v50
  %v145 = vunpack.c.h.b16 %v50
  %v146 = vunpack.c.l.b16 %v51
  %v147 = vunpack.c.h.b16 %v51
  %v148 = vunpack.c.l.b16 %v52
  %v149 = vunpack.c.h.b16 %v52
  %v150 = vunpack.c.l.b16 %v53
  %v151 = vunpack.c.h.b16 %v53
  %v152 = vunpack.c.l.b16 %v54
  %v153 = vunpack.c.h.b16 %v54
  %v154 = vunpack.c.l.b16 %v55
  %v155 = vunpack.c.h.b16 %v55
  %v156 = vunpack.c.l.b16 %v56
  %v157 = vunpack.c.h.b16 %v56
  %v158 = vunpack.c.l.b16 %v57
  %v159 = vunpack.c.h.b16 %v57
  %v160 = vunpack.c.l.b16 %v58
  %v161 = vunpack.c.h.b16 %v58
  %v162 = vunpack.c.l.b16 %v59
  %v163 = vunpack.c.h.b16 %v59
  %v164 = vpack.c.b16 %v104, %v100
  %v165 = vpack.c.b16 %v105, %v101
  %v166 = vpack.c.b16 %v106, %v102
  %v167 = vpack.c.b16 %v107, %v103
  %v168 = vpack.c.b16 %v112, %v108
  %v169 = vpack.c.b16 %v113, %v109
  %v170 = vpack.c.b16 %v114, %v110
  %v171 = vpack.c.b16 %v115, %v111
  %v172 = vpack.c.b16 %v120, %v116
  %v173 = vpack.c.b16 %v121, %v117
  %v174 = vpack.c.b16 %v122, %v118
  %v175 = vpack.c.b16 %v123, %v119
  %v176 = vpack.c.b16 %v128, %v124
  %v177 = vpack.c.b16 %v129, %v125
  %v178 = vpack.c.b16 %v130, %v126
  %v179 = vpack.c.b16 %v131, %v127
  %v180 = vpack.c.b16 %v136, %v132
  %v181 = vpack.c.b16 %v137, %v133
  %v182 = vpack.c.b16 %v138, %v134
  %v183 = vpack.c.b16 %v139, %v135
  %v184 = vpack.c.b16 %v144, %v140
  %v185 = vpack.c.b16 %v145, %v141
  %v186 = vpack.c.b16 %v146, %v142
  %v187 = vpack.c.b16 %v147, %v143
  %v188 = vpack.c.b16 %v152, %v148
  %v189 = vpack.c.b16 %v153, %v149
  %v190 = vpack.c.b16 %v154, %v150
  %v191 = vpack.c.b16 %v155, %v151
  %v192 = vpack.c.b16 %v160, %v156
  %v193 = vpack.c.b16 %v161, %v157
  %v194 = vpack.c.b16 %v162, %v158
  %v195 = vpack.c.b16 %v163, %v159
  %228 = vmatprep.subr.bf16.mxu0 %v193
  %229 = vmatpush1.bf16.msra.mxu0 %v192
  %230 = vmatprep.subr.bf16.mxu0 %v189
  %231 = vmatpush1.bf16.msra.mxu0 %v188
  %232 = vmatprep.subr.bf16.mxu0 %v185
  %233 = vmatpush1.bf16.msra.mxu0 %v184
  %234 = vmatprep.subr.bf16.mxu0 %v181
  %235 = vmatpush1.bf16.msra.mxu0 %v180
  %236 = vmatprep.subr.bf16.mxu0 %v177
  %237 = vmatpush1.bf16.msra.mxu0 %v176
  %238 = vmatprep.subr.bf16.mxu0 %v173
  %239 = vmatpush1.bf16.msra.mxu0 %v172
  %240 = vmatprep.subr.bf16.mxu0 %v169
  %241 = vmatpush1.bf16.msra.mxu0 %v168
  %242 = vmatprep.subr.bf16.mxu0 %v165
  %243 = vmatpush1.bf16.msra.mxu0 %v164
  %244 = vmatprep.subr.bf16.mxu0 0
  %245 = vmatpush2.bf16.msra.mxu0 0
  %246 = vmatprep.subr.bf16.mxu0 0
  %247 = vmatpush2.bf16.msra.mxu0 0
  %248 = vmatprep.subr.bf16.mxu0 0
  %249 = vmatpush2.bf16.msra.mxu0 0
  %250 = vmatprep.subr.bf16.mxu0 0
  %251 = vmatpush2.bf16.msra.mxu0 0
  %252 = vmatprep.subr.bf16.mxu0 0
  %253 = vmatpush2.bf16.msra.mxu0 0
  %254 = vmatprep.subr.bf16.mxu0 0
  %255 = vmatpush2.bf16.msra.mxu0 0
  %256 = vmatprep.subr.bf16.mxu0 0
  %257 = vmatpush2.bf16.msra.mxu0 0
  %258 = vmatprep.subr.bf16.mxu0 0
  %259 = vmatpush2.bf16.msra.mxu0 0
  %260 = vmatprep.mubr.bf16.mxu0 0
  %261 = vmatmul.mubr.bf16.gmra.mxu0 0
  %v262 = vpop.f32.mrf.mxu0
  %v263 = vadd.f32 0.0, %v262
  %v264 = vpop.f32.mrf.mxu0
  %v265 = vadd.f32 0.0, %v264
  %v266 = vpop.f32.mrf.mxu0
  %v267 = vadd.f32 0.0, %v266
  %v268 = vpop.f32.mrf.mxu0
  %v269 = vadd.f32 0.0, %v268
  %270 = vdwg.mxu0
  %271 = vmatprep.subr.bf16.mxu0 %v195
  %272 = vmatpush1.bf16.msra.mxu0 %v194
  %273 = vmatprep.subr.bf16.mxu0 %v191
  %274 = vmatpush1.bf16.msra.mxu0 %v190
  %275 = vmatprep.subr.bf16.mxu0 %v187
  %276 = vmatpush1.bf16.msra.mxu0 %v186
  %277 = vmatprep.subr.bf16.mxu0 %v183
  %278 = vmatpush1.bf16.msra.mxu0 %v182
  %279 = vmatprep.subr.bf16.mxu0 %v179
  %280 = vmatpush1.bf16.msra.mxu0 %v178
  %281 = vmatprep.subr.bf16.mxu0 %v175
  %282 = vmatpush1.bf16.msra.mxu0 %v174
  %283 = vmatprep.subr.bf16.mxu0 %v171
  %284 = vmatpush1.bf16.msra.mxu0 %v170
  %285 = vmatprep.subr.bf16.mxu0 %v167
  %286 = vmatpush1.bf16.msra.mxu0 %v166
  %287 = vmatprep.subr.bf16.mxu0 0
  %288 = vmatpush2.bf16.msra.mxu0 0
  %289 = vmatprep.subr.bf16.mxu0 0
  %290 = vmatpush2.bf16.msra.mxu0 0
  %291 = vmatprep.subr.bf16.mxu0 0
  %292 = vmatpush2.bf16.msra.mxu0 0
  %293 = vmatprep.subr.bf16.mxu0 0
  %294 = vmatpush2.bf16.msra.mxu0 0
  %295 = vmatprep.subr.bf16.mxu0 0
  %296 = vmatpush2.bf16.msra.mxu0 0
  %297 = vmatprep.subr.bf16.mxu0 0
  %298 = vmatpush2.bf16.msra.mxu0 0
  %299 = vmatprep.subr.bf16.mxu0 0
  %300 = vmatpush2.bf16.msra.mxu0 0
  %301 = vmatprep.subr.bf16.mxu0 0
  %302 = vmatpush2.bf16.msra.mxu0 0
  %303 = vmatprep.mubr.bf16.mxu0 0
  %304 = vmatmul.mubr.bf16.gmra.mxu0 0
  %v305 = vpop.f32.mrf.mxu0
  %v306 = vadd.f32 0.0, %v305
  %v307 = vpop.f32.mrf.mxu0
  %v308 = vadd.f32 0.0, %v307
  %v309 = vpop.f32.mrf.mxu0
  %v310 = vadd.f32 0.0, %v309
  %v311 = vpop.f32.mrf.mxu0
  %v312 = vadd.f32 0.0, %v311
  %313 = vdwg.mxu0
  %v314 = vadd.f32 %v60, %v263
  %v315 = vadd.f32 %v61, %v265
  %v316 = vadd.f32 %v62, %v306
  %v317 = vadd.f32 %v63, %v308
  %v318 = vadd.f32 %v64, %v267
  %v319 = vadd.f32 %v65, %v269
  %v320 = vadd.f32 %v66, %v310
  %v321 = vadd.f32 %v67, %v312
  %v322 = vxor.u32 %v314, 2147483648
  %v323 = vxor.u32 %v318, 2147483648
  %v324 = vmul.f32 %v322, 1.442695
  %v325 = vpow.pop %v324
  %v326 = vmul.f32 %v323, 1.442695
  %v327 = vpow.pop %v326
  %v328 = vadd.f32 %v325, 1.0
  %v329 = vadd.f32 %v327, 1.0
  %v330 = vrcp.pop %v328
  %v331 = vmul.f32 1.0, %v330
  %v332 = vrcp.pop %v329
  %v333 = vmul.f32 1.0, %v332
  %v334 = vxor.u32 %v315, 2147483648
  %v335 = vxor.u32 %v319, 2147483648
  %v336 = vmul.f32 %v334, 1.442695
  %v337 = vpow.pop %v336
  %v338 = vmul.f32 %v335, 1.442695
  %v339 = vpow.pop %v338
  %v340 = vadd.f32 %v337, 1.0
  %v341 = vadd.f32 %v339, 1.0
  %v342 = vrcp.pop %v340
  %v343 = vmul.f32 1.0, %v342
  %v344 = vrcp.pop %v341
  %v345 = vmul.f32 1.0, %v344
  %v346 = vtanh.pop %v316
  %v347 = vtanh.pop %v320
  %v348 = vxor.u32 %v317, 2147483648
  %v349 = vxor.u32 %v321, 2147483648
  %v350 = vmul.f32 %v348, 1.442695
  %v351 = vpow.pop %v350
  %v352 = vmul.f32 %v349, 1.442695
  %v353 = vpow.pop %v352
  %v354 = vadd.f32 %v351, 1.0
  %v355 = vadd.f32 %v353, 1.0
  %v356 = vrcp.pop %v354
  %v357 = vmul.f32 1.0, %v356
  %v358 = vrcp.pop %v355
  %v359 = vmul.f32 1.0, %v358
  %v360 = vmul.f32 %v343, 0.0
  %v361 = vmul.f32 %v345, 0.0
  %v362 = vmul.f32 %v331, %v346
  %v363 = vmul.f32 %v333, %v347
  %v364 = vadd.f32 %v360, %v362
  %v365 = vadd.f32 %v361, %v363
  %v366 = vtanh.pop %v364
  %v367 = vtanh.pop %v365
  %v368 = vmul.f32 %v357, %v366
  %v369 = vmul.f32 %v359, %v367
  %v370 = vpack.c.bf16 %v369, %v368
  %v372 = vunpack.c.l.b16 %v370
  %v373 = vunpack.c.h.b16 %v370
  %v374 = vpack.c.b16 %v372, %v372
  %v375 = vpack.c.b16 %v373, %v373
  %378 = vst [vmem:[#allocation3] sm:$0xf] %v374
  %379 = vst [vmem:[#allocation3 + $0x4] sm:$0xf] %v375
  %s380 = scalar_lea.vmem %s0, 64
  %v381 = vld [vmem:[%s380] sm:$0xff]
  %v382 = vld [vmem:[%s380 + $0x8] sm:$0xff]
  %v383 = vld [vmem:[%s380 + $0x10] sm:$0xff]
  %v384 = vld [vmem:[%s380 + $0x18] sm:$0xff]
  %v385 = vld [vmem:[%s380 + $0x20] sm:$0xff]
  %v386 = vld [vmem:[%s380 + $0x28] sm:$0xff]
  %v387 = vld [vmem:[%s380 + $0x30] sm:$0xff]
  %v388 = vld [vmem:[%s380 + $0x38] sm:$0xff]
  %389 = vmatprep.subr.bf16.mxu0 %v193
  %390 = vmatpush1.bf16.msra.mxu0 %v192
  %391 = vmatprep.subr.bf16.mxu0 %v189
  %392 = vmatpush1.bf16.msra.mxu0 %v188
  %393 = vmatprep.subr.bf16.mxu0 %v185
  %394 = vmatpush1.bf16.msra.mxu0 %v184
  %395 = vmatprep.subr.bf16.mxu0 %v181
  %396 = vmatpush1.bf16.msra.mxu0 %v180
  %397 = vmatprep.subr.bf16.mxu0 %v177
  %398 = vmatpush1.bf16.msra.mxu0 %v176
  %399 = vmatprep.subr.bf16.mxu0 %v173
  %400 = vmatpush1.bf16.msra.mxu0 %v172
  %401 = vmatprep.subr.bf16.mxu0 %v169
  %402 = vmatpush1.bf16.msra.mxu0 %v168
  %403 = vmatprep.subr.bf16.mxu0 %v165
  %404 = vmatpush1.bf16.msra.mxu0 %v164
  %405 = vmatprep.subr.bf16.mxu0 0
  %406 = vmatpush2.bf16.msra.mxu0 0
  %407 = vmatprep.subr.bf16.mxu0 0
  %408 = vmatpush2.bf16.msra.mxu0 0
  %409 = vmatprep.subr.bf16.mxu0 0
  %410 = vmatpush2.bf16.msra.mxu0 0
  %411 = vmatprep.subr.bf16.mxu0 0
  %412 = vmatpush2.bf16.msra.mxu0 0
  %413 = vmatprep.subr.bf16.mxu0 0
  %414 = vmatpush2.bf16.msra.mxu0 0
  %415 = vmatprep.subr.bf16.mxu0 0
  %416 = vmatpush2.bf16.msra.mxu0 0
  %417 = vmatprep.subr.bf16.mxu0 0
  %418 = vmatpush2.bf16.msra.mxu0 0
  %419 = vmatprep.subr.bf16.mxu0 0
  %420 = vmatpush2.bf16.msra.mxu0 0
  %421 = vmatprep.mubr.bf16.mxu0 0
  %422 = vmatmul.mubr.bf16.gmra.mxu0 %v370
  %v423 = vpop.f32.mrf.mxu0
  %v424 = vadd.f32 0.0, %v423
  %v425 = vpop.f32.mrf.mxu0
  %v426 = vadd.f32 0.0, %v425
  %v427 = vpop.f32.mrf.mxu0
  %v428 = vadd.f32 0.0, %v427
  %v429 = vpop.f32.mrf.mxu0
  %v430 = vadd.f32 0.0, %v429
  %431 = vdwg.mxu0
  %432 = vmatprep.subr.bf16.mxu0 %v195
  %433 = vmatpush1.bf16.msra.mxu0 %v194
  %434 = vmatprep.subr.bf16.mxu0 %v191
  %435 = vmatpush1.bf16.msra.mxu0 %v190
  %436 = vmatprep.subr.bf16.mxu0 %v187
  %437 = vmatpush1.bf16.msra.mxu0 %v186
  %438 = vmatprep.subr.bf16.mxu0 %v183
  %439 = vmatpush1.bf16.msra.mxu0 %v182
  %440 = vmatprep.subr.bf16.mxu0 %v179
  %441 = vmatpush1.bf16.msra.mxu0 %v178
  %442 = vmatprep.subr.bf16.mxu0 %v175
  %443 = vmatpush1.bf16.msra.mxu0 %v174
  %444 = vmatprep.subr.bf16.mxu0 %v171
  %445 = vmatpush1.bf16.msra.mxu0 %v170
  %446 = vmatprep.subr.bf16.mxu0 %v167
  %447 = vmatpush1.bf16.msra.mxu0 %v166
  %448 = vmatprep.subr.bf16.mxu0 0
  %449 = vmatpush2.bf16.msra.mxu0 0
  %450 = vmatprep.subr.bf16.mxu0 0
  %451 = vmatpush2.bf16.msra.mxu0 0
  %452 = vmatprep.subr.bf16.mxu0 0
  %453 = vmatpush2.bf16.msra.mxu0 0
  %454 = vmatprep.subr.bf16.mxu0 0
  %455 = vmatpush2.bf16.msra.mxu0 0
  %456 = vmatprep.subr.bf16.mxu0 0
  %457 = vmatpush2.bf16.msra.mxu0 0
  %458 = vmatprep.subr.bf16.mxu0 0
  %459 = vmatpush2.bf16.msra.mxu0 0
  %460 = vmatprep.subr.bf16.mxu0 0
  %461 = vmatpush2.bf16.msra.mxu0 0
  %462 = vmatprep.subr.bf16.mxu0 0
  %463 = vmatpush2.bf16.msra.mxu0 0
  %464 = vmatprep.mubr.bf16.mxu0 0
  %465 = vmatmul.mubr.bf16.gmra.mxu0 %v370
  %v466 = vpop.f32.mrf.mxu0
  %v467 = vadd.f32 0.0, %v466
  %v468 = vpop.f32.mrf.mxu0
  %v469 = vadd.f32 0.0, %v468
  %v470 = vpop.f32.mrf.mxu0
  %v471 = vadd.f32 0.0, %v470
  %v472 = vpop.f32.mrf.mxu0
  %v473 = vadd.f32 0.0, %v472
  %474 = vdwg.mxu0
  %v475 = vadd.f32 %v381, %v424
  %v476 = vadd.f32 %v382, %v426
  %v477 = vadd.f32 %v383, %v467
  %v478 = vadd.f32 %v384, %v469
  %v479 = vadd.f32 %v385, %v428
  %v480 = vadd.f32 %v386, %v430
  %v481 = vadd.f32 %v387, %v471
  %v482 = vadd.f32 %v388, %v473
  %v483 = vxor.u32 %v475, 2147483648
  %v484 = vxor.u32 %v479, 2147483648
  %v485 = vmul.f32 %v483, 1.442695
  %v486 = vpow.pop %v485
  %v487 = vmul.f32 %v484, 1.442695
  %v488 = vpow.pop %v487
  %v489 = vadd.f32 %v486, 1.0
  %v490 = vadd.f32 %v488, 1.0
  %v491 = vrcp.pop %v489
  %v492 = vmul.f32 1.0, %v491
  %v493 = vrcp.pop %v490
  %v494 = vmul.f32 1.0, %v493
  %v495 = vxor.u32 %v476, 2147483648
  %v496 = vxor.u32 %v480, 2147483648
  %v497 = vmul.f32 %v495, 1.442695
  %v498 = vpow.pop %v497
  %v499 = vmul.f32 %v496, 1.442695
  %v500 = vpow.pop %v499
  %v501 = vadd.f32 %v498, 1.0
  %v502 = vadd.f32 %v500, 1.0
  %v503 = vrcp.pop %v501
  %v504 = vmul.f32 1.0, %v503
  %v505 = vrcp.pop %v502
  %v506 = vmul.f32 1.0, %v505
  %v507 = vtanh.pop %v477
  %v508 = vtanh.pop %v481
  %v509 = vxor.u32 %v478, 2147483648
  %v510 = vxor.u32 %v482, 2147483648
  %v511 = vmul.f32 %v509, 1.442695
  %v512 = vpow.pop %v511
  %v513 = vmul.f32 %v510, 1.442695
  %v514 = vpow.pop %v513
  %v515 = vadd.f32 %v512, 1.0
  %v516 = vadd.f32 %v514, 1.0
  %v517 = vrcp.pop %v515
  %v518 = vmul.f32 1.0, %v517
  %v519 = vrcp.pop %v516
  %v520 = vmul.f32 1.0, %v519
  %v521 = vmul.f32 %v504, %v364
  %v522 = vmul.f32 %v506, %v365
  %v523 = vmul.f32 %v492, %v507
  %v524 = vmul.f32 %v494, %v508
  %v525 = vadd.f32 %v521, %v523
  %v526 = vadd.f32 %v522, %v524
  %v527 = vtanh.pop %v525
  %v528 = vtanh.pop %v526
  %v529 = vmul.f32 %v518, %v527
  %v530 = vmul.f32 %v520, %v528
  %v531 = vpack.c.bf16 %v530, %v529
  %v533 = vunpack.c.l.b16 %v531
  %v534 = vunpack.c.h.b16 %v531
  %v535 = vpack.c.b16 %v533, %v533
  %v536 = vpack.c.b16 %v534, %v534
  %s539 = scalar_lea.vmem [#allocation3], 8
  %540 = vst [vmem:[%s539] sm:$0xf] %v535
  %541 = vst [vmem:[%s539 + $0x4] sm:$0xf] %v536
  %s542 = scalar_lea.vmem %s0, 128
  %v543 = vld [vmem:[%s542] sm:$0xff]
  %v544 = vld [vmem:[%s542 + $0x8] sm:$0xff]
  %v545 = vld [vmem:[%s542 + $0x10] sm:$0xff]
  %v546 = vld [vmem:[%s542 + $0x18] sm:$0xff]
  %v547 = vld [vmem:[%s542 + $0x20] sm:$0xff]
  %v548 = vld [vmem:[%s542 + $0x28] sm:$0xff]
  %v549 = vld [vmem:[%s542 + $0x30] sm:$0xff]
  %v550 = vld [vmem:[%s542 + $0x38] sm:$0xff]
  %551 = vmatprep.subr.bf16.mxu0 %v193
  %552 = vmatpush1.bf16.msra.mxu0 %v192
  %553 = vmatprep.subr.bf16.mxu0 %v189
  %554 = vmatpush1.bf16.msra.mxu0 %v188
  %555 = vmatprep.subr.bf16.mxu0 %v185
  %556 = vmatpush1.bf16.msra.mxu0 %v184
  %557 = vmatprep.subr.bf16.mxu0 %v181
  %558 = vmatpush1.bf16.msra.mxu0 %v180
  %559 = vmatprep.subr.bf16.mxu0 %v177
  %560 = vmatpush1.bf16.msra.mxu0 %v176
  %561 = vmatprep.subr.bf16.mxu0 %v173
  %562 = vmatpush1.bf16.msra.mxu0 %v172
  %563 = vmatprep.subr.bf16.mxu0 %v169
  %564 = vmatpush1.bf16.msra.mxu0 %v168
  %565 = vmatprep.subr.bf16.mxu0 %v165
  %566 = vmatpush1.bf16.msra.mxu0 %v164
  %567 = vmatprep.subr.bf16.mxu0 0
  %568 = vmatpush2.bf16.msra.mxu0 0
  %569 = vmatprep.subr.bf16.mxu0 0
  %570 = vmatpush2.bf16.msra.mxu0 0
  %571 = vmatprep.subr.bf16.mxu0 0
  %572 = vmatpush2.bf16.msra.mxu0 0
  %573 = vmatprep.subr.bf16.mxu0 0
  %574 = vmatpush2.bf16.msra.mxu0 0
  %575 = vmatprep.subr.bf16.mxu0 0
  %576 = vmatpush2.bf16.msra.mxu0 0
  %577 = vmatprep.subr.bf16.mxu0 0
  %578 = vmatpush2.bf16.msra.mxu0 0
  %579 = vmatprep.subr.bf16.mxu0 0
  %580 = vmatpush2.bf16.msra.mxu0 0
  %581 = vmatprep.subr.bf16.mxu0 0
  %582 = vmatpush2.bf16.msra.mxu0 0
  %583 = vmatprep.mubr.bf16.mxu0 0
  %584 = vmatmul.mubr.bf16.gmra.mxu0 %v531
  %v585 = vpop.f32.mrf.mxu0
  %v586 = vadd.f32 0.0, %v585
  %v587 = vpop.f32.mrf.mxu0
  %v588 = vadd.f32 0.0, %v587
  %v589 = vpop.f32.mrf.mxu0
  %v590 = vadd.f32 0.0, %v589
  %v591 = vpop.f32.mrf.mxu0
  %v592 = vadd.f32 0.0, %v591
  %593 = vdwg.mxu0
  %594 = vmatprep.subr.bf16.mxu0 %v195
  %595 = vmatpush1.bf16.msra.mxu0 %v194
  %596 = vmatprep.subr.bf16.mxu0 %v191
  %597 = vmatpush1.bf16.msra.mxu0 %v190
  %598 = vmatprep.subr.bf16.mxu0 %v187
  %599 = vmatpush1.bf16.msra.mxu0 %v186
  %600 = vmatprep.subr.bf16.mxu0 %v183
  %601 = vmatpush1.bf16.msra.mxu0 %v182
  %602 = vmatprep.subr.bf16.mxu0 %v179
  %603 = vmatpush1.bf16.msra.mxu0 %v178
  %604 = vmatprep.subr.bf16.mxu0 %v175
  %605 = vmatpush1.bf16.msra.mxu0 %v174
  %606 = vmatprep.subr.bf16.mxu0 %v171
  %607 = vmatpush1.bf16.msra.mxu0 %v170
  %608 = vmatprep.subr.bf16.mxu0 %v167
  %609 = vmatpush1.bf16.msra.mxu0 %v166
  %610 = vmatprep.subr.bf16.mxu0 0
  %611 = vmatpush2.bf16.msra.mxu0 0
  %612 = vmatprep.subr.bf16.mxu0 0
  %613 = vmatpush2.bf16.msra.mxu0 0
  %614 = vmatprep.subr.bf16.mxu0 0
  %615 = vmatpush2.bf16.msra.mxu0 0
  %616 = vmatprep.subr.bf16.mxu0 0
  %617 = vmatpush2.bf16.msra.mxu0 0
  %618 = vmatprep.subr.bf16.mxu0 0
  %619 = vmatpush2.bf16.msra.mxu0 0
  %620 = vmatprep.subr.bf16.mxu0 0
  %621 = vmatpush2.bf16.msra.mxu0 0
  %622 = vmatprep.subr.bf16.mxu0 0
  %623 = vmatpush2.bf16.msra.mxu0 0
  %624 = vmatprep.subr.bf16.mxu0 0
  %625 = vmatpush2.bf16.msra.mxu0 0
  %626 = vmatprep.mubr.bf16.mxu0 0
  %627 = vmatmul.mubr.bf16.gmra.mxu0 %v531
  %v628 = vpop.f32.mrf.mxu0
  %v629 = vadd.f32 0.0, %v628
  %v630 = vpop.f32.mrf.mxu0
  %v631 = vadd.f32 0.0, %v630
  %v632 = vpop.f32.mrf.mxu0
  %v633 = vadd.f32 0.0, %v632
  %v634 = vpop.f32.mrf.mxu0
  %v635 = vadd.f32 0.0, %v634
  %636 = vdwg.mxu0
  %v637 = vadd.f32 %v543, %v586
  %v638 = vadd.f32 %v544, %v588
  %v639 = vadd.f32 %v545, %v629
  %v640 = vadd.f32 %v546, %v631
  %v641 = vadd.f32 %v547, %v590
  %v642 = vadd.f32 %v548, %v592
  %v643 = vadd.f32 %v549, %v633
  %v644 = vadd.f32 %v550, %v635
  %v645 = vxor.u32 %v637, 2147483648
  %v646 = vxor.u32 %v641, 2147483648
  %v647 = vmul.f32 %v645, 1.442695
  %v648 = vpow.pop %v647
  %v649 = vmul.f32 %v646, 1.442695
  %v650 = vpow.pop %v649
  %v651 = vadd.f32 %v648, 1.0
  %v652 = vadd.f32 %v650, 1.0
  %v653 = vrcp.pop %v651
  %v654 = vmul.f32 1.0, %v653
  %v655 = vrcp.pop %v652
  %v656 = vmul.f32 1.0, %v655
  %v657 = vxor.u32 %v638, 2147483648
  %v658 = vxor.u32 %v642, 2147483648
  %v659 = vmul.f32 %v657, 1.442695
  %v660 = vpow.pop %v659
  %v661 = vmul.f32 %v658, 1.442695
  %v662 = vpow.pop %v661
  %v663 = vadd.f32 %v660, 1.0
  %v664 = vadd.f32 %v662, 1.0
  %v665 = vrcp.pop %v663
  %v666 = vmul.f32 1.0, %v665
  %v667 = vrcp.pop %v664
  %v668 = vmul.f32 1.0, %v667
  %v669 = vtanh.pop %v639
  %v670 = vtanh.pop %v643
  %v671 = vxor.u32 %v640, 2147483648
  %v672 = vxor.u32 %v644, 2147483648
  %v673 = vmul.f32 %v671, 1.442695
  %v674 = vpow.pop %v673
  %v675 = vmul.f32 %v672, 1.442695
  %v676 = vpow.pop %v675
  %v677 = vadd.f32 %v674, 1.0
  %v678 = vadd.f32 %v676, 1.0
  %v679 = vrcp.pop %v677
  %v680 = vmul.f32 1.0, %v679
  %v681 = vrcp.pop %v678
  %v682 = vmul.f32 1.0, %v681
  %v683 = vmul.f32 %v666, %v525
  %v684 = vmul.f32 %v668, %v526
  %v685 = vmul.f32 %v654, %v669
  %v686 = vmul.f32 %v656, %v670
  %v687 = vadd.f32 %v683, %v685
  %v688 = vadd.f32 %v684, %v686
  %v689 = vtanh.pop %v687
  %v690 = vtanh.pop %v688
  %v691 = vmul.f32 %v680, %v689
  %v692 = vmul.f32 %v682, %v690
  %v693 = vpack.c.bf16 %v692, %v691
  %v695 = vunpack.c.l.b16 %v693
  %v696 = vunpack.c.h.b16 %v693
  %v697 = vpack.c.b16 %v695, %v695
  %v698 = vpack.c.b16 %v696, %v696
  %s701 = scalar_lea.vmem [#allocation3], 16
  %702 = vst [vmem:[%s701] sm:$0xf] %v697
  %703 = vst [vmem:[%s701 + $0x4] sm:$0xf] %v698
  %s704 = scalar_lea.vmem %s0, 192
  %v705 = vld [vmem:[%s704] sm:$0xff]
  %v706 = vld [vmem:[%s704 + $0x8] sm:$0xff]
  %v707 = vld [vmem:[%s704 + $0x10] sm:$0xff]
  %v708 = vld [vmem:[%s704 + $0x18] sm:$0xff]
  %v709 = vld [vmem:[%s704 + $0x20] sm:$0xff]
  %v710 = vld [vmem:[%s704 + $0x28] sm:$0xff]
  %v711 = vld [vmem:[%s704 + $0x30] sm:$0xff]
  %v712 = vld [vmem:[%s704 + $0x38] sm:$0xff]
  %713 = vmatprep.subr.bf16.mxu0 %v193
  %714 = vmatpush1.bf16.msra.mxu0 %v192
  %715 = vmatprep.subr.bf16.mxu0 %v189
  %716 = vmatpush1.bf16.msra.mxu0 %v188
  %717 = vmatprep.subr.bf16.mxu0 %v185
  %718 = vmatpush1.bf16.msra.mxu0 %v184
  %719 = vmatprep.subr.bf16.mxu0 %v181
  %720 = vmatpush1.bf16.msra.mxu0 %v180
  %721 = vmatprep.subr.bf16.mxu0 %v177
  %722 = vmatpush1.bf16.msra.mxu0 %v176
  %723 = vmatprep.subr.bf16.mxu0 %v173
  %724 = vmatpush1.bf16.msra.mxu0 %v172
  %725 = vmatprep.subr.bf16.mxu0 %v169
  %726 = vmatpush1.bf16.msra.mxu0 %v168
  %727 = vmatprep.subr.bf16.mxu0 %v165
  %728 = vmatpush1.bf16.msra.mxu0 %v164
  %729 = vmatprep.subr.bf16.mxu0 0
  %730 = vmatpush2.bf16.msra.mxu0 0
  %731 = vmatprep.subr.bf16.mxu0 0
  %732 = vmatpush2.bf16.msra.mxu0 0
  %733 = vmatprep.subr.bf16.mxu0 0
  %734 = vmatpush2.bf16.msra.mxu0 0
  %735 = vmatprep.subr.bf16.mxu0 0
  %736 = vmatpush2.bf16.msra.mxu0 0
  %737 = vmatprep.subr.bf16.mxu0 0
  %738 = vmatpush2.bf16.msra.mxu0 0
  %739 = vmatprep.subr.bf16.mxu0 0
  %740 = vmatpush2.bf16.msra.mxu0 0
  %741 = vmatprep.subr.bf16.mxu0 0
  %742 = vmatpush2.bf16.msra.mxu0 0
  %743 = vmatprep.subr.bf16.mxu0 0
  %744 = vmatpush2.bf16.msra.mxu0 0
  %745 = vmatprep.mubr.bf16.mxu0 0
  %746 = vmatmul.mubr.bf16.gmra.mxu0 %v693
  %v747 = vpop.f32.mrf.mxu0
  %v748 = vadd.f32 0.0, %v747
  %v749 = vpop.f32.mrf.mxu0
  %v750 = vadd.f32 0.0, %v749
  %v751 = vpop.f32.mrf.mxu0
  %v752 = vadd.f32 0.0, %v751
  %v753 = vpop.f32.mrf.mxu0
  %v754 = vadd.f32 0.0, %v753
  %755 = vdwg.mxu0
  %756 = vmatprep.subr.bf16.mxu0 %v195
  %757 = vmatpush1.bf16.msra.mxu0 %v194
  %758 = vmatprep.subr.bf16.mxu0 %v191
  %759 = vmatpush1.bf16.msra.mxu0 %v190
  %760 = vmatprep.subr.bf16.mxu0 %v187
  %761 = vmatpush1.bf16.msra.mxu0 %v186
  %762 = vmatprep.subr.bf16.mxu0 %v183
  %763 = vmatpush1.bf16.msra.mxu0 %v182
  %764 = vmatprep.subr.bf16.mxu0 %v179
  %765 = vmatpush1.bf16.msra.mxu0 %v178
  %766 = vmatprep.subr.bf16.mxu0 %v175
  %767 = vmatpush1.bf16.msra.mxu0 %v174
  %768 = vmatprep.subr.bf16.mxu0 %v171
  %769 = vmatpush1.bf16.msra.mxu0 %v170
  %770 = vmatprep.subr.bf16.mxu0 %v167
  %771 = vmatpush1.bf16.msra.mxu0 %v166
  %772 = vmatprep.subr.bf16.mxu0 0
  %773 = vmatpush2.bf16.msra.mxu0 0
  %774 = vmatprep.subr.bf16.mxu0 0
  %775 = vmatpush2.bf16.msra.mxu0 0
  %776 = vmatprep.subr.bf16.mxu0 0
  %777 = vmatpush2.bf16.msra.mxu0 0
  %778 = vmatprep.subr.bf16.mxu0 0
  %779 = vmatpush2.bf16.msra.mxu0 0
  %780 = vmatprep.subr.bf16.mxu0 0
  %781 = vmatpush2.bf16.msra.mxu0 0
  %782 = vmatprep.subr.bf16.mxu0 0
  %783 = vmatpush2.bf16.msra.mxu0 0
  %784 = vmatprep.subr.bf16.mxu0 0
  %785 = vmatpush2.bf16.msra.mxu0 0
  %786 = vmatprep.subr.bf16.mxu0 0
  %787 = vmatpush2.bf16.msra.mxu0 0
  %788 = vmatprep.mubr.bf16.mxu0 0
  %789 = vmatmul.mubr.bf16.gmra.mxu0 %v693
  %v790 = vpop.f32.mrf.mxu0
  %v791 = vadd.f32 0.0, %v790
  %v792 = vpop.f32.mrf.mxu0
  %v793 = vadd.f32 0.0, %v792
  %v794 = vpop.f32.mrf.mxu0
  %v795 = vadd.f32 0.0, %v794
  %v796 = vpop.f32.mrf.mxu0
  %v797 = vadd.f32 0.0, %v796
  %798 = vdwg.mxu0
  %v799 = vadd.f32 %v705, %v748
  %v800 = vadd.f32 %v706, %v750
  %v801 = vadd.f32 %v707, %v791
  %v802 = vadd.f32 %v708, %v793
  %v803 = vadd.f32 %v709, %v752
  %v804 = vadd.f32 %v710, %v754
  %v805 = vadd.f32 %v711, %v795
  %v806 = vadd.f32 %v712, %v797
  %v807 = vxor.u32 %v799, 2147483648
  %v808 = vxor.u32 %v803, 2147483648
  %v809 = vmul.f32 %v807, 1.442695
  %v810 = vpow.pop %v809
  %v811 = vmul.f32 %v808, 1.442695
  %v812 = vpow.pop %v811
  %v813 = vadd.f32 %v810, 1.0
  %v814 = vadd.f32 %v812, 1.0
  %v815 = vrcp.pop %v813
  %v816 = vmul.f32 1.0, %v815
  %v817 = vrcp.pop %v814
  %v818 = vmul.f32 1.0, %v817
  %v819 = vxor.u32 %v800, 2147483648
  %v820 = vxor.u32 %v804, 2147483648
  %v821 = vmul.f32 %v819, 1.442695
  %v822 = vpow.pop %v821
  %v823 = vmul.f32 %v820, 1.442695
  %v824 = vpow.pop %v823
  %v825 = vadd.f32 %v822, 1.0
  %v826 = vadd.f32 %v824, 1.0
  %v827 = vrcp.pop %v825
  %v828 = vmul.f32 1.0, %v827
  %v829 = vrcp.pop %v826
  %v830 = vmul.f32 1.0, %v829
  %v831 = vtanh.pop %v801
  %v832 = vtanh.pop %v805
  %v833 = vxor.u32 %v802, 2147483648
  %v834 = vxor.u32 %v806, 2147483648
  %v835 = vmul.f32 %v833, 1.442695
  %v836 = vpow.pop %v835
  %v837 = vmul.f32 %v834, 1.442695
  %v838 = vpow.pop %v837
  %v839 = vadd.f32 %v836, 1.0
  %v840 = vadd.f32 %v838, 1.0
  %v841 = vrcp.pop %v839
  %v842 = vmul.f32 1.0, %v841
  %v843 = vrcp.pop %v840
  %v844 = vmul.f32 1.0, %v843
  %v845 = vmul.f32 %v828, %v687
  %v846 = vmul.f32 %v830, %v688
  %v847 = vmul.f32 %v816, %v831
  %v848 = vmul.f32 %v818, %v832
  %v849 = vadd.f32 %v845, %v847
  %v850 = vadd.f32 %v846, %v848
  %v851 = vtanh.pop %v849
  %v852 = vtanh.pop %v850
  %v853 = vmul.f32 %v842, %v851
  %v854 = vmul.f32 %v844, %v852
  %v855 = vpack.c.bf16 %v854, %v853
  %v857 = vunpack.c.l.b16 %v855
  %v858 = vunpack.c.h.b16 %v855
  %v859 = vpack.c.b16 %v857, %v857
  %v860 = vpack.c.b16 %v858, %v858
  %s863 = scalar_lea.vmem [#allocation3], 24
  %864 = vst [vmem:[%s863] sm:$0xf] %v859
  %865 = vst [vmem:[%s863 + $0x4] sm:$0xf] %v860
  %s866 = scalar_lea.vmem %s0, 256
  %v867 = vld [vmem:[%s866] sm:$0xff]
  %v868 = vld [vmem:[%s866 + $0x8] sm:$0xff]
  %v869 = vld [vmem:[%s866 + $0x10] sm:$0xff]
  %v870 = vld [vmem:[%s866 + $0x18] sm:$0xff]
  %v871 = vld [vmem:[%s866 + $0x20] sm:$0xff]
  %v872 = vld [vmem:[%s866 + $0x28] sm:$0xff]
  %v873 = vld [vmem:[%s866 + $0x30] sm:$0xff]
  %v874 = vld [vmem:[%s866 + $0x38] sm:$0xff]
  %875 = vmatprep.subr.bf16.mxu0 %v193
  %876 = vmatpush1.bf16.msra.mxu0 %v192
  %877 = vmatprep.subr.bf16.mxu0 %v189
  %878 = vmatpush1.bf16.msra.mxu0 %v188
  %879 = vmatprep.subr.bf16.mxu0 %v185
  %880 = vmatpush1.bf16.msra.mxu0 %v184
  %881 = vmatprep.subr.bf16.mxu0 %v181
  %882 = vmatpush1.bf16.msra.mxu0 %v180
  %883 = vmatprep.subr.bf16.mxu0 %v177
  %884 = vmatpush1.bf16.msra.mxu0 %v176
  %885 = vmatprep.subr.bf16.mxu0 %v173
  %886 = vmatpush1.bf16.msra.mxu0 %v172
  %887 = vmatprep.subr.bf16.mxu0 %v169
  %888 = vmatpush1.bf16.msra.mxu0 %v168
  %889 = vmatprep.subr.bf16.mxu0 %v165
  %890 = vmatpush1.bf16.msra.mxu0 %v164
  %891 = vmatprep.subr.bf16.mxu0 0
  %892 = vmatpush2.bf16.msra.mxu0 0
  %893 = vmatprep.subr.bf16.mxu0 0
  %894 = vmatpush2.bf16.msra.mxu0 0
  %895 = vmatprep.subr.bf16.mxu0 0
  %896 = vmatpush2.bf16.msra.mxu0 0
  %897 = vmatprep.subr.bf16.mxu0 0
  %898 = vmatpush2.bf16.msra.mxu0 0
  %899 = vmatprep.subr.bf16.mxu0 0
  %900 = vmatpush2.bf16.msra.mxu0 0
  %901 = vmatprep.subr.bf16.mxu0 0
  %902 = vmatpush2.bf16.msra.mxu0 0
  %903 = vmatprep.subr.bf16.mxu0 0
  %904 = vmatpush2.bf16.msra.mxu0 0
  %905 = vmatprep.subr.bf16.mxu0 0
  %906 = vmatpush2.bf16.msra.mxu0 0
  %907 = vmatprep.mubr.bf16.mxu0 0
  %908 = vmatmul.mubr.bf16.gmra.mxu0 %v855
  %v909 = vpop.f32.mrf.mxu0
  %v910 = vadd.f32 0.0, %v909
  %v911 = vpop.f32.mrf.mxu0
  %v912 = vadd.f32 0.0, %v911
  %v913 = vpop.f32.mrf.mxu0
  %v914 = vadd.f32 0.0, %v913
  %v915 = vpop.f32.mrf.mxu0
  %v916 = vadd.f32 0.0, %v915
  %917 = vdwg.mxu0
  %918 = vmatprep.subr.bf16.mxu0 %v195
  %919 = vmatpush1.bf16.msra.mxu0 %v194
  %920 = vmatprep.subr.bf16.mxu0 %v191
  %921 = vmatpush1.bf16.msra.mxu0 %v190
  %922 = vmatprep.subr.bf16.mxu0 %v187
  %923 = vmatpush1.bf16.msra.mxu0 %v186
  %924 = vmatprep.subr.bf16.mxu0 %v183
  %925 = vmatpush1.bf16.msra.mxu0 %v182
  %926 = vmatprep.subr.bf16.mxu0 %v179
  %927 = vmatpush1.bf16.msra.mxu0 %v178
  %928 = vmatprep.subr.bf16.mxu0 %v175
  %929 = vmatpush1.bf16.msra.mxu0 %v174
  %930 = vmatprep.subr.bf16.mxu0 %v171
  %931 = vmatpush1.bf16.msra.mxu0 %v170
  %932 = vmatprep.subr.bf16.mxu0 %v167
  %933 = vmatpush1.bf16.msra.mxu0 %v166
  %934 = vmatprep.subr.bf16.mxu0 0
  %935 = vmatpush2.bf16.msra.mxu0 0
  %936 = vmatprep.subr.bf16.mxu0 0
  %937 = vmatpush2.bf16.msra.mxu0 0
  %938 = vmatprep.subr.bf16.mxu0 0
  %939 = vmatpush2.bf16.msra.mxu0 0
  %940 = vmatprep.subr.bf16.mxu0 0
  %941 = vmatpush2.bf16.msra.mxu0 0
  %942 = vmatprep.subr.bf16.mxu0 0
  %943 = vmatpush2.bf16.msra.mxu0 0
  %944 = vmatprep.subr.bf16.mxu0 0
  %945 = vmatpush2.bf16.msra.mxu0 0
  %946 = vmatprep.subr.bf16.mxu0 0
  %947 = vmatpush2.bf16.msra.mxu0 0
  %948 = vmatprep.subr.bf16.mxu0 0
  %949 = vmatpush2.bf16.msra.mxu0 0
  %950 = vmatprep.mubr.bf16.mxu0 0
  %951 = vmatmul.mubr.bf16.gmra.mxu0 %v855
  %v952 = vpop.f32.mrf.mxu0
  %v953 = vadd.f32 0.0, %v952
  %v954 = vpop.f32.mrf.mxu0
  %v955 = vadd.f32 0.0, %v954
  %v956 = vpop.f32.mrf.mxu0
  %v957 = vadd.f32 0.0, %v956
  %v958 = vpop.f32.mrf.mxu0
  %v959 = vadd.f32 0.0, %v958
  %960 = vdwg.mxu0
  %v961 = vadd.f32 %v867, %v910
  %v962 = vadd.f32 %v868, %v912
  %v963 = vadd.f32 %v869, %v953
  %v964 = vadd.f32 %v870, %v955
  %v965 = vadd.f32 %v871, %v914
  %v966 = vadd.f32 %v872, %v916
  %v967 = vadd.f32 %v873, %v957
  %v968 = vadd.f32 %v874, %v959
  %v969 = vxor.u32 %v961, 2147483648
  %v970 = vxor.u32 %v965, 2147483648
  %v971 = vmul.f32 %v969, 1.442695
  %v972 = vpow.pop %v971
  %v973 = vmul.f32 %v970, 1.442695
  %v974 = vpow.pop %v973
  %v975 = vadd.f32 %v972, 1.0
  %v976 = vadd.f32 %v974, 1.0
  %v977 = vrcp.pop %v975
  %v978 = vmul.f32 1.0, %v977
  %v979 = vrcp.pop %v976
  %v980 = vmul.f32 1.0, %v979
  %v981 = vxor.u32 %v962, 2147483648
  %v982 = vxor.u32 %v966, 2147483648
  %v983 = vmul.f32 %v981, 1.442695
  %v984 = vpow.pop %v983
  %v985 = vmul.f32 %v982, 1.442695
  %v986 = vpow.pop %v985
  %v987 = vadd.f32 %v984, 1.0
  %v988 = vadd.f32 %v986, 1.0
  %v989 = vrcp.pop %v987
  %v990 = vmul.f32 1.0, %v989
  %v991 = vrcp.pop %v988
  %v992 = vmul.f32 1.0, %v991
  %v993 = vtanh.pop %v963
  %v994 = vtanh.pop %v967
  %v995 = vxor.u32 %v964, 2147483648
  %v996 = vxor.u32 %v968, 2147483648
  %v997 = vmul.f32 %v995, 1.442695
  %v998 = vpow.pop %v997
  %v999 = vmul.f32 %v996, 1.442695
  %v1000 = vpow.pop %v999
  %v1001 = vadd.f32 %v998, 1.0
  %v1002 = vadd.f32 %v1000, 1.0
  %v1003 = vrcp.pop %v1001
  %v1004 = vmul.f32 1.0, %v1003
  %v1005 = vrcp.pop %v1002
  %v1006 = vmul.f32 1.0, %v1005
  %v1007 = vmul.f32 %v990, %v849
  %v1008 = vmul.f32 %v992, %v850
  %v1009 = vmul.f32 %v978, %v993
  %v1010 = vmul.f32 %v980, %v994
  %v1011 = vadd.f32 %v1007, %v1009
  %v1012 = vadd.f32 %v1008, %v1010
  %v1013 = vtanh.pop %v1011
  %v1014 = vtanh.pop %v1012
  %v1015 = vmul.f32 %v1004, %v1013
  %v1016 = vmul.f32 %v1006, %v1014
  %v1017 = vpack.c.bf16 %v1016, %v1015
  %v1019 = vunpack.c.l.b16 %v1017
  %v1020 = vunpack.c.h.b16 %v1017
  %v1021 = vpack.c.b16 %v1019, %v1019
  %v1022 = vpack.c.b16 %v1020, %v1020
  %s1025 = scalar_lea.vmem [#allocation3], 32
  %1026 = vst [vmem:[%s1025] sm:$0xf] %v1021
  %1027 = vst [vmem:[%s1025 + $0x4] sm:$0xf] %v1022
  %s1028 = scalar_lea.vmem %s0, 320
  %v1029 = vld [vmem:[%s1028] sm:$0xff]
  %v1030 = vld [vmem:[%s1028 + $0x8] sm:$0xff]
  %v1031 = vld [vmem:[%s1028 + $0x10] sm:$0xff]
  %v1032 = vld [vmem:[%s1028 + $0x18] sm:$0xff]
  %v1033 = vld [vmem:[%s1028 + $0x20] sm:$0xff]
  %v1034 = vld [vmem:[%s1028 + $0x28] sm:$0xff]
  %v1035 = vld [vmem:[%s1028 + $0x30] sm:$0xff]
  %v1036 = vld [vmem:[%s1028 + $0x38] sm:$0xff]
  %1037 = vmatprep.subr.bf16.mxu0 %v193
  %1038 = vmatpush1.bf16.msra.mxu0 %v192
  %1039 = vmatprep.subr.bf16.mxu0 %v189
  %1040 = vmatpush1.bf16.msra.mxu0 %v188
  %1041 = vmatprep.subr.bf16.mxu0 %v185
  %1042 = vmatpush1.bf16.msra.mxu0 %v184
  %1043 = vmatprep.subr.bf16.mxu0 %v181
  %1044 = vmatpush1.bf16.msra.mxu0 %v180
  %1045 = vmatprep.subr.bf16.mxu0 %v177
  %1046 = vmatpush1.bf16.msra.mxu0 %v176
  %1047 = vmatprep.subr.bf16.mxu0 %v173
  %1048 = vmatpush1.bf16.msra.mxu0 %v172
  %1049 = vmatprep.subr.bf16.mxu0 %v169
  %1050 = vmatpush1.bf16.msra.mxu0 %v168
  %1051 = vmatprep.subr.bf16.mxu0 %v165
  %1052 = vmatpush1.bf16.msra.mxu0 %v164
  %1053 = vmatprep.subr.bf16.mxu0 0
  %1054 = vmatpush2.bf16.msra.mxu0 0
  %1055 = vmatprep.subr.bf16.mxu0 0
  %1056 = vmatpush2.bf16.msra.mxu0 0
  %1057 = vmatprep.subr.bf16.mxu0 0
  %1058 = vmatpush2.bf16.msra.mxu0 0
  %1059 = vmatprep.subr.bf16.mxu0 0
  %1060 = vmatpush2.bf16.msra.mxu0 0
  %1061 = vmatprep.subr.bf16.mxu0 0
  %1062 = vmatpush2.bf16.msra.mxu0 0
  %1063 = vmatprep.subr.bf16.mxu0 0
  %1064 = vmatpush2.bf16.msra.mxu0 0
  %1065 = vmatprep.subr.bf16.mxu0 0
  %1066 = vmatpush2.bf16.msra.mxu0 0
  %1067 = vmatprep.subr.bf16.mxu0 0
  %1068 = vmatpush2.bf16.msra.mxu0 0
  %1069 = vmatprep.mubr.bf16.mxu0 0
  %1070 = vmatmul.mubr.bf16.gmra.mxu0 %v1017
  %v1071 = vpop.f32.mrf.mxu0
  %v1072 = vadd.f32 0.0, %v1071
  %v1073 = vpop.f32.mrf.mxu0
  %v1074 = vadd.f32 0.0, %v1073
  %v1075 = vpop.f32.mrf.mxu0
  %v1076 = vadd.f32 0.0, %v1075
  %v1077 = vpop.f32.mrf.mxu0
  %v1078 = vadd.f32 0.0, %v1077
  %1079 = vdwg.mxu0
  %1080 = vmatprep.subr.bf16.mxu0 %v195
  %1081 = vmatpush1.bf16.msra.mxu0 %v194
  %1082 = vmatprep.subr.bf16.mxu0 %v191
  %1083 = vmatpush1.bf16.msra.mxu0 %v190
  %1084 = vmatprep.subr.bf16.mxu0 %v187
  %1085 = vmatpush1.bf16.msra.mxu0 %v186
  %1086 = vmatprep.subr.bf16.mxu0 %v183
  %1087 = vmatpush1.bf16.msra.mxu0 %v182
  %1088 = vmatprep.subr.bf16.mxu0 %v179
  %1089 = vmatpush1.bf16.msra.mxu0 %v178
  %1090 = vmatprep.subr.bf16.mxu0 %v175
  %1091 = vmatpush1.bf16.msra.mxu0 %v174
  %1092 = vmatprep.subr.bf16.mxu0 %v171
  %1093 = vmatpush1.bf16.msra.mxu0 %v170
  %1094 = vmatprep.subr.bf16.mxu0 %v167
  %1095 = vmatpush1.bf16.msra.mxu0 %v166
  %1096 = vmatprep.subr.bf16.mxu0 0
  %1097 = vmatpush2.bf16.msra.mxu0 0
  %1098 = vmatprep.subr.bf16.mxu0 0
  %1099 = vmatpush2.bf16.msra.mxu0 0
  %1100 = vmatprep.subr.bf16.mxu0 0
  %1101 = vmatpush2.bf16.msra.mxu0 0
  %1102 = vmatprep.subr.bf16.mxu0 0
  %1103 = vmatpush2.bf16.msra.mxu0 0
  %1104 = vmatprep.subr.bf16.mxu0 0
  %1105 = vmatpush2.bf16.msra.mxu0 0
  %1106 = vmatprep.subr.bf16.mxu0 0
  %1107 = vmatpush2.bf16.msra.mxu0 0
  %1108 = vmatprep.subr.bf16.mxu0 0
  %1109 = vmatpush2.bf16.msra.mxu0 0
  %1110 = vmatprep.subr.bf16.mxu0 0
  %1111 = vmatpush2.bf16.msra.mxu0 0
  %1112 = vmatprep.mubr.bf16.mxu0 0
  %1113 = vmatmul.mubr.bf16.gmra.mxu0 %v1017
  %v1114 = vpop.f32.mrf.mxu0
  %v1115 = vadd.f32 0.0, %v1114
  %v1116 = vpop.f32.mrf.mxu0
  %v1117 = vadd.f32 0.0, %v1116
  %v1118 = vpop.f32.mrf.mxu0
  %v1119 = vadd.f32 0.0, %v1118
  %v1120 = vpop.f32.mrf.mxu0
  %v1121 = vadd.f32 0.0, %v1120
  %1122 = vdwg.mxu0
  %v1123 = vadd.f32 %v1029, %v1072
  %v1124 = vadd.f32 %v1030, %v1074
  %v1125 = vadd.f32 %v1031, %v1115
  %v1126 = vadd.f32 %v1032, %v1117
  %v1127 = vadd.f32 %v1033, %v1076
  %v1128 = vadd.f32 %v1034, %v1078
  %v1129 = vadd.f32 %v1035, %v1119
  %v1130 = vadd.f32 %v1036, %v1121
  %v1131 = vxor.u32 %v1123, 2147483648
  %v1132 = vxor.u32 %v1127, 2147483648
  %v1133 = vmul.f32 %v1131, 1.442695
  %v1134 = vpow.pop %v1133
  %v1135 = vmul.f32 %v1132, 1.442695
  %v1136 = vpow.pop %v1135
  %v1137 = vadd.f32 %v1134, 1.0
  %v1138 = vadd.f32 %v1136, 1.0
  %v1139 = vrcp.pop %v1137
  %v1140 = vmul.f32 1.0, %v1139
  %v1141 = vrcp.pop %v1138
  %v1142 = vmul.f32 1.0, %v1141
  %v1143 = vxor.u32 %v1124, 2147483648
  %v1144 = vxor.u32 %v1128, 2147483648
  %v1145 = vmul.f32 %v1143, 1.442695
  %v1146 = vpow.pop %v1145
  %v1147 = vmul.f32 %v1144, 1.442695
  %v1148 = vpow.pop %v1147
  %v1149 = vadd.f32 %v1146, 1.0
  %v1150 = vadd.f32 %v1148, 1.0
  %v1151 = vrcp.pop %v1149
  %v1152 = vmul.f32 1.0, %v1151
  %v1153 = vrcp.pop %v1150
  %v1154 = vmul.f32 1.0, %v1153
  %v1155 = vtanh.pop %v1125
  %v1156 = vtanh.pop %v1129
  %v1157 = vxor.u32 %v1126, 2147483648
  %v1158 = vxor.u32 %v1130, 2147483648
  %v1159 = vmul.f32 %v1157, 1.442695
  %v1160 = vpow.pop %v1159
  %v1161 = vmul.f32 %v1158, 1.442695
  %v1162 = vpow.pop %v1161
  %v1163 = vadd.f32 %v1160, 1.0
  %v1164 = vadd.f32 %v1162, 1.0
  %v1165 = vrcp.pop %v1163
  %v1166 = vmul.f32 1.0, %v1165
  %v1167 = vrcp.pop %v1164
  %v1168 = vmul.f32 1.0, %v1167
  %v1169 = vmul.f32 %v1152, %v1011
  %v1170 = vmul.f32 %v1154, %v1012
  %v1171 = vmul.f32 %v1140, %v1155
  %v1172 = vmul.f32 %v1142, %v1156
  %v1173 = vadd.f32 %v1169, %v1171
  %v1174 = vadd.f32 %v1170, %v1172
  %v1175 = vtanh.pop %v1173
  %v1176 = vtanh.pop %v1174
  %v1177 = vmul.f32 %v1166, %v1175
  %v1178 = vmul.f32 %v1168, %v1176
  %v1179 = vpack.c.bf16 %v1178, %v1177
  %v1181 = vunpack.c.l.b16 %v1179
  %v1182 = vunpack.c.h.b16 %v1179
  %v1183 = vpack.c.b16 %v1181, %v1181
  %v1184 = vpack.c.b16 %v1182, %v1182
  %s1187 = scalar_lea.vmem [#allocation3], 40
  %1188 = vst [vmem:[%s1187] sm:$0xf] %v1183
  %1189 = vst [vmem:[%s1187 + $0x4] sm:$0xf] %v1184
  %s1190 = scalar_lea.vmem %s0, 384
  %v1191 = vld [vmem:[%s1190] sm:$0xff]
  %v1192 = vld [vmem:[%s1190 + $0x8] sm:$0xff]
  %v1193 = vld [vmem:[%s1190 + $0x10] sm:$0xff]
  %v1194 = vld [vmem:[%s1190 + $0x18] sm:$0xff]
  %v1195 = vld [vmem:[%s1190 + $0x20] sm:$0xff]
  %v1196 = vld [vmem:[%s1190 + $0x28] sm:$0xff]
  %v1197 = vld [vmem:[%s1190 + $0x30] sm:$0xff]
  %v1198 = vld [vmem:[%s1190 + $0x38] sm:$0xff]
  %1199 = vmatprep.subr.bf16.mxu0 %v193
  %1200 = vmatpush1.bf16.msra.mxu0 %v192
  %1201 = vmatprep.subr.bf16.mxu0 %v189
  %1202 = vmatpush1.bf16.msra.mxu0 %v188
  %1203 = vmatprep.subr.bf16.mxu0 %v185
  %1204 = vmatpush1.bf16.msra.mxu0 %v184
  %1205 = vmatprep.subr.bf16.mxu0 %v181
  %1206 = vmatpush1.bf16.msra.mxu0 %v180
  %1207 = vmatprep.subr.bf16.mxu0 %v177
  %1208 = vmatpush1.bf16.msra.mxu0 %v176
  %1209 = vmatprep.subr.bf16.mxu0 %v173
  %1210 = vmatpush1.bf16.msra.mxu0 %v172
  %1211 = vmatprep.subr.bf16.mxu0 %v169
  %1212 = vmatpush1.bf16.msra.mxu0 %v168
  %1213 = vmatprep.subr.bf16.mxu0 %v165
  %1214 = vmatpush1.bf16.msra.mxu0 %v164
  %1215 = vmatprep.subr.bf16.mxu0 0
  %1216 = vmatpush2.bf16.msra.mxu0 0
  %1217 = vmatprep.subr.bf16.mxu0 0
  %1218 = vmatpush2.bf16.msra.mxu0 0
  %1219 = vmatprep.subr.bf16.mxu0 0
  %1220 = vmatpush2.bf16.msra.mxu0 0
  %1221 = vmatprep.subr.bf16.mxu0 0
  %1222 = vmatpush2.bf16.msra.mxu0 0
  %1223 = vmatprep.subr.bf16.mxu0 0
  %1224 = vmatpush2.bf16.msra.mxu0 0
  %1225 = vmatprep.subr.bf16.mxu0 0
  %1226 = vmatpush2.bf16.msra.mxu0 0
  %1227 = vmatprep.subr.bf16.mxu0 0
  %1228 = vmatpush2.bf16.msra.mxu0 0
  %1229 = vmatprep.subr.bf16.mxu0 0
  %1230 = vmatpush2.bf16.msra.mxu0 0
  %1231 = vmatprep.mubr.bf16.mxu0 0
  %1232 = vmatmul.mubr.bf16.gmra.mxu0 %v1179
  %v1233 = vpop.f32.mrf.mxu0
  %v1234 = vadd.f32 0.0, %v1233
  %v1235 = vpop.f32.mrf.mxu0
  %v1236 = vadd.f32 0.0, %v1235
  %v1237 = vpop.f32.mrf.mxu0
  %v1238 = vadd.f32 0.0, %v1237
  %v1239 = vpop.f32.mrf.mxu0
  %v1240 = vadd.f32 0.0, %v1239
  %1241 = vdwg.mxu0
  %1242 = vmatprep.subr.bf16.mxu0 %v195
  %1243 = vmatpush1.bf16.msra.mxu0 %v194
  %1244 = vmatprep.subr.bf16.mxu0 %v191
  %1245 = vmatpush1.bf16.msra.mxu0 %v190
  %1246 = vmatprep.subr.bf16.mxu0 %v187
  %1247 = vmatpush1.bf16.msra.mxu0 %v186
  %1248 = vmatprep.subr.bf16.mxu0 %v183
  %1249 = vmatpush1.bf16.msra.mxu0 %v182
  %1250 = vmatprep.subr.bf16.mxu0 %v179
  %1251 = vmatpush1.bf16.msra.mxu0 %v178
  %1252 = vmatprep.subr.bf16.mxu0 %v175
  %1253 = vmatpush1.bf16.msra.mxu0 %v174
  %1254 = vmatprep.subr.bf16.mxu0 %v171
  %1255 = vmatpush1.bf16.msra.mxu0 %v170
  %1256 = vmatprep.subr.bf16.mxu0 %v167
  %1257 = vmatpush1.bf16.msra.mxu0 %v166
  %1258 = vmatprep.subr.bf16.mxu0 0
  %1259 = vmatpush2.bf16.msra.mxu0 0
  %1260 = vmatprep.subr.bf16.mxu0 0
  %1261 = vmatpush2.bf16.msra.mxu0 0
  %1262 = vmatprep.subr.bf16.mxu0 0
  %1263 = vmatpush2.bf16.msra.mxu0 0
  %1264 = vmatprep.subr.bf16.mxu0 0
  %1265 = vmatpush2.bf16.msra.mxu0 0
  %1266 = vmatprep.subr.bf16.mxu0 0
  %1267 = vmatpush2.bf16.msra.mxu0 0
  %1268 = vmatprep.subr.bf16.mxu0 0
  %1269 = vmatpush2.bf16.msra.mxu0 0
  %1270 = vmatprep.subr.bf16.mxu0 0
  %1271 = vmatpush2.bf16.msra.mxu0 0
  %1272 = vmatprep.subr.bf16.mxu0 0
  %1273 = vmatpush2.bf16.msra.mxu0 0
  %1274 = vmatprep.mubr.bf16.mxu0 0
  %1275 = vmatmul.mubr.bf16.gmra.mxu0 %v1179
  %v1276 = vpop.f32.mrf.mxu0
  %v1277 = vadd.f32 0.0, %v1276
  %v1278 = vpop.f32.mrf.mxu0
  %v1279 = vadd.f32 0.0, %v1278
  %v1280 = vpop.f32.mrf.mxu0
  %v1281 = vadd.f32 0.0, %v1280
  %v1282 = vpop.f32.mrf.mxu0
  %v1283 = vadd.f32 0.0, %v1282
  %1284 = vdwg.mxu0
  %v1285 = vadd.f32 %v1191, %v1234
  %v1286 = vadd.f32 %v1192, %v1236
  %v1287 = vadd.f32 %v1193, %v1277
  %v1288 = vadd.f32 %v1194, %v1279
  %v1289 = vadd.f32 %v1195, %v1238
  %v1290 = vadd.f32 %v1196, %v1240
  %v1291 = vadd.f32 %v1197, %v1281
  %v1292 = vadd.f32 %v1198, %v1283
  %v1293 = vxor.u32 %v1285, 2147483648
  %v1294 = vxor.u32 %v1289, 2147483648
  %v1295 = vmul.f32 %v1293, 1.442695
  %v1296 = vpow.pop %v1295
  %v1297 = vmul.f32 %v1294, 1.442695
  %v1298 = vpow.pop %v1297
  %v1299 = vadd.f32 %v1296, 1.0
  %v1300 = vadd.f32 %v1298, 1.0
  %v1301 = vrcp.pop %v1299
  %v1302 = vmul.f32 1.0, %v1301
  %v1303 = vrcp.pop %v1300
  %v1304 = vmul.f32 1.0, %v1303
  %v1305 = vxor.u32 %v1286, 2147483648
  %v1306 = vxor.u32 %v1290, 2147483648
  %v1307 = vmul.f32 %v1305, 1.442695
  %v1308 = vpow.pop %v1307
  %v1309 = vmul.f32 %v1306, 1.442695
  %v1310 = vpow.pop %v1309
  %v1311 = vadd.f32 %v1308, 1.0
  %v1312 = vadd.f32 %v1310, 1.0
  %v1313 = vrcp.pop %v1311
  %v1314 = vmul.f32 1.0, %v1313
  %v1315 = vrcp.pop %v1312
  %v1316 = vmul.f32 1.0, %v1315
  %v1317 = vtanh.pop %v1287
  %v1318 = vtanh.pop %v1291
  %v1319 = vxor.u32 %v1288, 2147483648
  %v1320 = vxor.u32 %v1292, 2147483648
  %v1321 = vmul.f32 %v1319, 1.442695
  %v1322 = vpow.pop %v1321
  %v1323 = vmul.f32 %v1320, 1.442695
  %v1324 = vpow.pop %v1323
  %v1325 = vadd.f32 %v1322, 1.0
  %v1326 = vadd.f32 %v1324, 1.0
  %v1327 = vrcp.pop %v1325
  %v1328 = vmul.f32 1.0, %v1327
  %v1329 = vrcp.pop %v1326
  %v1330 = vmul.f32 1.0, %v1329
  %v1331 = vmul.f32 %v1314, %v1173
  %v1332 = vmul.f32 %v1316, %v1174
  %v1333 = vmul.f32 %v1302, %v1317
  %v1334 = vmul.f32 %v1304, %v1318
  %v1335 = vadd.f32 %v1331, %v1333
  %v1336 = vadd.f32 %v1332, %v1334
  %v1337 = vtanh.pop %v1335
  %v1338 = vtanh.pop %v1336
  %v1339 = vmul.f32 %v1328, %v1337
  %v1340 = vmul.f32 %v1330, %v1338
  %v1341 = vpack.c.bf16 %v1340, %v1339
  %v1343 = vunpack.c.l.b16 %v1341
  %v1344 = vunpack.c.h.b16 %v1341
  %v1345 = vpack.c.b16 %v1343, %v1343
  %v1346 = vpack.c.b16 %v1344, %v1344
  %s1349 = scalar_lea.vmem [#allocation3], 48
  %1350 = vst [vmem:[%s1349] sm:$0xf] %v1345
  %1351 = vst [vmem:[%s1349 + $0x4] sm:$0xf] %v1346
  %s1352 = scalar_lea.vmem %s0, 448
  %v1353 = vld [vmem:[%s1352] sm:$0xff]
  %v1354 = vld [vmem:[%s1352 + $0x8] sm:$0xff]
  %v1355 = vld [vmem:[%s1352 + $0x10] sm:$0xff]
  %v1356 = vld [vmem:[%s1352 + $0x18] sm:$0xff]
  %v1357 = vld [vmem:[%s1352 + $0x20] sm:$0xff]
  %v1358 = vld [vmem:[%s1352 + $0x28] sm:$0xff]
  %v1359 = vld [vmem:[%s1352 + $0x30] sm:$0xff]
  %v1360 = vld [vmem:[%s1352 + $0x38] sm:$0xff]
  %1361 = vmatprep.subr.bf16.mxu0 %v193
  %1362 = vmatpush1.bf16.msra.mxu0 %v192
  %1363 = vmatprep.subr.bf16.mxu0 %v189
  %1364 = vmatpush1.bf16.msra.mxu0 %v188
  %1365 = vmatprep.subr.bf16.mxu0 %v185
  %1366 = vmatpush1.bf16.msra.mxu0 %v184
  %1367 = vmatprep.subr.bf16.mxu0 %v181
  %1368 = vmatpush1.bf16.msra.mxu0 %v180
  %1369 = vmatprep.subr.bf16.mxu0 %v177
  %1370 = vmatpush1.bf16.msra.mxu0 %v176
  %1371 = vmatprep.subr.bf16.mxu0 %v173
  %1372 = vmatpush1.bf16.msra.mxu0 %v172
  %1373 = vmatprep.subr.bf16.mxu0 %v169
  %1374 = vmatpush1.bf16.msra.mxu0 %v168
  %1375 = vmatprep.subr.bf16.mxu0 %v165
  %1376 = vmatpush1.bf16.msra.mxu0 %v164
  %1377 = vmatprep.subr.bf16.mxu0 0
  %1378 = vmatpush2.bf16.msra.mxu0 0
  %1379 = vmatprep.subr.bf16.mxu0 0
  %1380 = vmatpush2.bf16.msra.mxu0 0
  %1381 = vmatprep.subr.bf16.mxu0 0
  %1382 = vmatpush2.bf16.msra.mxu0 0
  %1383 = vmatprep.subr.bf16.mxu0 0
  %1384 = vmatpush2.bf16.msra.mxu0 0
  %1385 = vmatprep.subr.bf16.mxu0 0
  %1386 = vmatpush2.bf16.msra.mxu0 0
  %1387 = vmatprep.subr.bf16.mxu0 0
  %1388 = vmatpush2.bf16.msra.mxu0 0
  %1389 = vmatprep.subr.bf16.mxu0 0
  %1390 = vmatpush2.bf16.msra.mxu0 0
  %1391 = vmatprep.subr.bf16.mxu0 0
  %1392 = vmatpush2.bf16.msra.mxu0 0
  %1393 = vmatprep.mubr.bf16.mxu0 0
  %1394 = vmatmul.mubr.bf16.gmra.mxu0 %v1341
  %v1395 = vpop.f32.mrf.mxu0
  %v1396 = vadd.f32 0.0, %v1395
  %v1397 = vpop.f32.mrf.mxu0
  %v1398 = vadd.f32 0.0, %v1397
  %v1399 = vpop.f32.mrf.mxu0
  %v1400 = vadd.f32 0.0, %v1399
  %v1401 = vpop.f32.mrf.mxu0
  %v1402 = vadd.f32 0.0, %v1401
  %1403 = vdwg.mxu0
  %1404 = vmatprep.subr.bf16.mxu0 %v195
  %1405 = vmatpush1.bf16.msra.mxu0 %v194
  %1406 = vmatprep.subr.bf16.mxu0 %v191
  %1407 = vmatpush1.bf16.msra.mxu0 %v190
  %1408 = vmatprep.subr.bf16.mxu0 %v187
  %1409 = vmatpush1.bf16.msra.mxu0 %v186
  %1410 = vmatprep.subr.bf16.mxu0 %v183
  %1411 = vmatpush1.bf16.msra.mxu0 %v182
  %1412 = vmatprep.subr.bf16.mxu0 %v179
  %1413 = vmatpush1.bf16.msra.mxu0 %v178
  %1414 = vmatprep.subr.bf16.mxu0 %v175
  %1415 = vmatpush1.bf16.msra.mxu0 %v174
  %1416 = vmatprep.subr.bf16.mxu0 %v171
  %1417 = vmatpush1.bf16.msra.mxu0 %v170
  %1418 = vmatprep.subr.bf16.mxu0 %v167
  %1419 = vmatpush1.bf16.msra.mxu0 %v166
  %1420 = vmatprep.subr.bf16.mxu0 0
  %1421 = vmatpush2.bf16.msra.mxu0 0
  %1422 = vmatprep.subr.bf16.mxu0 0
  %1423 = vmatpush2.bf16.msra.mxu0 0
  %1424 = vmatprep.subr.bf16.mxu0 0
  %1425 = vmatpush2.bf16.msra.mxu0 0
  %1426 = vmatprep.subr.bf16.mxu0 0
  %1427 = vmatpush2.bf16.msra.mxu0 0
  %1428 = vmatprep.subr.bf16.mxu0 0
  %1429 = vmatpush2.bf16.msra.mxu0 0
  %1430 = vmatprep.subr.bf16.mxu0 0
  %1431 = vmatpush2.bf16.msra.mxu0 0
  %1432 = vmatprep.subr.bf16.mxu0 0
  %1433 = vmatpush2.bf16.msra.mxu0 0
  %1434 = vmatprep.subr.bf16.mxu0 0
  %1435 = vmatpush2.bf16.msra.mxu0 0
  %1436 = vmatprep.mubr.bf16.mxu0 0
  %1437 = vmatmul.mubr.bf16.gmra.mxu0 %v1341
  %v1438 = vpop.f32.mrf.mxu0
  %v1439 = vadd.f32 0.0, %v1438
  %v1440 = vpop.f32.mrf.mxu0
  %v1441 = vadd.f32 0.0, %v1440
  %v1442 = vpop.f32.mrf.mxu0
  %v1443 = vadd.f32 0.0, %v1442
  %v1444 = vpop.f32.mrf.mxu0
  %v1445 = vadd.f32 0.0, %v1444
  %1446 = vdwg.mxu0
  %v1447 = vadd.f32 %v1353, %v1396
  %v1448 = vadd.f32 %v1354, %v1398
  %v1449 = vadd.f32 %v1355, %v1439
  %v1450 = vadd.f32 %v1356, %v1441
  %v1451 = vadd.f32 %v1357, %v1400
  %v1452 = vadd.f32 %v1358, %v1402
  %v1453 = vadd.f32 %v1359, %v1443
  %v1454 = vadd.f32 %v1360, %v1445
  %v1455 = vxor.u32 %v1447, 2147483648
  %v1456 = vxor.u32 %v1451, 2147483648
  %v1457 = vmul.f32 %v1455, 1.442695
  %v1458 = vpow.pop %v1457
  %v1459 = vmul.f32 %v1456, 1.442695
  %v1460 = vpow.pop %v1459
  %v1461 = vadd.f32 %v1458, 1.0
  %v1462 = vadd.f32 %v1460, 1.0
  %v1463 = vrcp.pop %v1461
  %v1464 = vmul.f32 1.0, %v1463
  %v1465 = vrcp.pop %v1462
  %v1466 = vmul.f32 1.0, %v1465
  %v1467 = vxor.u32 %v1448, 2147483648
  %v1468 = vxor.u32 %v1452, 2147483648
  %v1469 = vmul.f32 %v1467, 1.442695
  %v1470 = vpow.pop %v1469
  %v1471 = vmul.f32 %v1468, 1.442695
  %v1472 = vpow.pop %v1471
  %v1473 = vadd.f32 %v1470, 1.0
  %v1474 = vadd.f32 %v1472, 1.0
  %v1475 = vrcp.pop %v1473
  %v1476 = vmul.f32 1.0, %v1475
  %v1477 = vrcp.pop %v1474
  %v1478 = vmul.f32 1.0, %v1477
  %v1479 = vtanh.pop %v1449
  %v1480 = vtanh.pop %v1453
  %v1481 = vxor.u32 %v1450, 2147483648
  %v1482 = vxor.u32 %v1454, 2147483648
  %v1483 = vmul.f32 %v1481, 1.442695
  %v1484 = vpow.pop %v1483
  %v1485 = vmul.f32 %v1482, 1.442695
  %v1486 = vpow.pop %v1485
  %v1487 = vadd.f32 %v1484, 1.0
  %v1488 = vadd.f32 %v1486, 1.0
  %v1489 = vrcp.pop %v1487
  %v1490 = vmul.f32 1.0, %v1489
  %v1491 = vrcp.pop %v1488
  %v1492 = vmul.f32 1.0, %v1491
  %v1493 = vmul.f32 %v1476, %v1335
  %v1494 = vmul.f32 %v1478, %v1336
  %v1495 = vmul.f32 %v1464, %v1479
  %v1496 = vmul.f32 %v1466, %v1480
  %v1497 = vadd.f32 %v1493, %v1495
  %v1498 = vadd.f32 %v1494, %v1496
  %v1499 = vtanh.pop %v1497
  %v1500 = vtanh.pop %v1498
  %v1501 = vmul.f32 %v1490, %v1499
  %v1502 = vmul.f32 %v1492, %v1500
  %v1503 = vpack.c.bf16 %v1502, %v1501
  %v1505 = vunpack.c.l.b16 %v1503
  %v1506 = vunpack.c.h.b16 %v1503
  %v1507 = vpack.c.b16 %v1505, %v1505
  %v1508 = vpack.c.b16 %v1506, %v1506
  %s1511 = scalar_lea.vmem [#allocation3], 56
  %1512 = vst [vmem:[%s1511] sm:$0xf] %v1507
  %1513 = vst [vmem:[%s1511 + $0x4] sm:$0xf] %v1508
  %v1514 = vld [vmem:[%s3] sm:$0xff]
  %v1515 = vld [vmem:[%s3 + $0x8] sm:$0xff]
  %v1516 = vld [vmem:[%s3 + $0x10] sm:$0xff]
  %v1517 = vld [vmem:[%s3 + $0x18] sm:$0xff]
  %v1518 = vld [vmem:[%s3 + $0x20] sm:$0xff]
  %v1519 = vld [vmem:[%s3 + $0x28] sm:$0xff]
  %v1520 = vld [vmem:[%s3 + $0x30] sm:$0xff]
  %v1521 = vld [vmem:[%s3 + $0x38] sm:$0xff]
  %v1522 = vld [vmem:[%s3 + $0x40] sm:$0xff]
  %v1523 = vld [vmem:[%s3 + $0x48] sm:$0xff]
  %v1524 = vld [vmem:[%s3 + $0x50] sm:$0xff]
  %v1525 = vld [vmem:[%s3 + $0x58] sm:$0xff]
  %v1526 = vld [vmem:[%s3 + $0x60] sm:$0xff]
  %v1527 = vld [vmem:[%s3 + $0x68] sm:$0xff]
  %v1528 = vld [vmem:[%s3 + $0x70] sm:$0xff]
  %v1529 = vld [vmem:[%s3 + $0x78] sm:$0xff]
  %v1530 = vld [vmem:[%s3 + $0x80] sm:$0xff]
  %v1531 = vld [vmem:[%s3 + $0x88] sm:$0xff]
  %v1532 = vld [vmem:[%s3 + $0x90] sm:$0xff]
  %v1533 = vld [vmem:[%s3 + $0x98] sm:$0xff]
  %v1534 = vld [vmem:[%s3 + $0xa0] sm:$0xff]
  %v1535 = vld [vmem:[%s3 + $0xa8] sm:$0xff]
  %v1536 = vld [vmem:[%s3 + $0xb0] sm:$0xff]
  %v1537 = vld [vmem:[%s3 + $0xb8] sm:$0xff]
  %v1538 = vld [vmem:[%s3 + $0xc0] sm:$0xff]
  %v1539 = vld [vmem:[%s3 + $0xc8] sm:$0xff]
  %v1540 = vld [vmem:[%s3 + $0xd0] sm:$0xff]
  %v1541 = vld [vmem:[%s3 + $0xd8] sm:$0xff]
  %v1542 = vld [vmem:[%s3 + $0xe0] sm:$0xff]
  %v1543 = vld [vmem:[%s3 + $0xe8] sm:$0xff]
  %v1544 = vld [vmem:[%s3 + $0xf0] sm:$0xff]
  %v1545 = vld [vmem:[%s3 + $0xf8] sm:$0xff]
  %v1546 = vld [vmem:[#allocation3] sm:$0xf]
  %v1547 = vld [vmem:[#allocation3 + $0x4] sm:$0xf]
  %v1548 = vld [vmem:[#allocation3 + $0x8] sm:$0xf]
  %v1549 = vld [vmem:[#allocation3 + $0xc] sm:$0xf]
  %v1550 = vld [vmem:[#allocation3 + $0x10] sm:$0xf]
  %v1551 = vld [vmem:[#allocation3 + $0x14] sm:$0xf]
  %v1552 = vld [vmem:[#allocation3 + $0x18] sm:$0xf]
  %v1553 = vld [vmem:[#allocation3 + $0x1c] sm:$0xf]
  %v1554 = vld [vmem:[#allocation3 + $0x20] sm:$0xf]
  %v1555 = vld [vmem:[#allocation3 + $0x24] sm:$0xf]
  %v1556 = vld [vmem:[#allocation3 + $0x28] sm:$0xf]
  %v1557 = vld [vmem:[#allocation3 + $0x2c] sm:$0xf]
  %v1558 = vld [vmem:[#allocation3 + $0x30] sm:$0xf]
  %v1559 = vld [vmem:[#allocation3 + $0x34] sm:$0xf]
  %v1560 = vld [vmem:[#allocation3 + $0x38] sm:$0xf]
  %v1561 = vld [vmem:[#allocation3 + $0x3c] sm:$0xf]
  %v1562 = vld [vmem:[%s2] sm:$0xff]
  %v1563 = vld [vmem:[%s2 + $0x8] sm:$0xff]
  %v1564 = vld [vmem:[%s2 + $0x10] sm:$0xff]
  %v1565 = vld [vmem:[%s2 + $0x18] sm:$0xff]
  %v1566 = vld [vmem:[%s2 + $0x20] sm:$0xff]
  %v1567 = vld [vmem:[%s2 + $0x28] sm:$0xff]
  %v1568 = vld [vmem:[%s2 + $0x30] sm:$0xff]
  %v1569 = vld [vmem:[%s2 + $0x38] sm:$0xff]
  %v1570 = vld [vmem:[%s2 + $0x40] sm:$0xff]
  %v1571 = vld [vmem:[%s2 + $0x48] sm:$0xff]
  %v1572 = vld [vmem:[%s2 + $0x50] sm:$0xff]
  %v1573 = vld [vmem:[%s2 + $0x58] sm:$0xff]
  %v1574 = vld [vmem:[%s2 + $0x60] sm:$0xff]
  %v1575 = vld [vmem:[%s2 + $0x68] sm:$0xff]
  %v1576 = vld [vmem:[%s2 + $0x70] sm:$0xff]
  %v1577 = vld [vmem:[%s2 + $0x78] sm:$0xff]
  %v1578 = vld [vmem:[%s2 + $0x80] sm:$0xff]
  %v1579 = vld [vmem:[%s2 + $0x88] sm:$0xff]
  %v1580 = vld [vmem:[%s2 + $0x90] sm:$0xff]
  %v1581 = vld [vmem:[%s2 + $0x98] sm:$0xff]
  %v1582 = vld [vmem:[%s2 + $0xa0] sm:$0xff]
  %v1583 = vld [vmem:[%s2 + $0xa8] sm:$0xff]
  %v1584 = vld [vmem:[%s2 + $0xb0] sm:$0xff]
  %v1585 = vld [vmem:[%s2 + $0xb8] sm:$0xff]
  %v1586 = vld [vmem:[%s2 + $0xc0] sm:$0xff]
  %v1587 = vld [vmem:[%s2 + $0xc8] sm:$0xff]
  %v1588 = vld [vmem:[%s2 + $0xd0] sm:$0xff]
  %v1589 = vld [vmem:[%s2 + $0xd8] sm:$0xff]
  %v1590 = vld [vmem:[%s2 + $0xe0] sm:$0xff]
  %v1591 = vld [vmem:[%s2 + $0xe8] sm:$0xff]
  %v1592 = vld [vmem:[%s2 + $0xf0] sm:$0xff]
  %v1593 = vld [vmem:[%s2 + $0xf8] sm:$0xff]
  %v1594 = vld [vmem:[%s4] sm:$0xf]
  %v1596 = vlaneseq
  %v1597 = vshrl.u32 %v1596, 7
  %v1598 = vsub.s32 0, %v1597
  %v1599 = vrot.slane %v1594, %v1598
  %v1600 = vlaneseq
  %v1601 = vshrl.u32 %v1600, 7
  %v1602 = vsub.s32 1, %v1601
  %v1603 = vrot.slane %v1594, %v1602
  %v1604 = vlaneseq
  %v1605 = vshrl.u32 %v1604, 7
  %v1606 = vsub.s32 2, %v1605
  %v1607 = vrot.slane %v1594, %v1606
  %v1608 = vlaneseq
  %v1609 = vshrl.u32 %v1608, 7
  %v1610 = vsub.s32 3, %v1609
  %v1611 = vrot.slane %v1594, %v1610
  %v1632 = vunpack.c.l.b16 %v1546
  %v1633 = vunpack.c.l.b16 %v1547
  %v1634 = vunpack.c.l.b16 %v1548
  %v1635 = vunpack.c.l.b16 %v1549
  %v1636 = vunpack.c.l.b16 %v1550
  %v1637 = vunpack.c.l.b16 %v1551
  %v1638 = vunpack.c.l.b16 %v1552
  %v1639 = vunpack.c.l.b16 %v1553
  %v1640 = vunpack.c.l.b16 %v1554
  %v1641 = vunpack.c.l.b16 %v1555
  %v1642 = vunpack.c.l.b16 %v1556
  %v1643 = vunpack.c.l.b16 %v1557
  %v1644 = vunpack.c.l.b16 %v1558
  %v1645 = vunpack.c.l.b16 %v1559
  %v1646 = vunpack.c.l.b16 %v1560
  %v1647 = vunpack.c.l.b16 %v1561
  %v1648 = vpack.c.b16 %v1633, %v1632
  %v1649 = vpack.c.b16 %v1635, %v1634
  %v1650 = vpack.c.b16 %v1637, %v1636
  %v1651 = vpack.c.b16 %v1639, %v1638
  %v1652 = vpack.c.b16 %v1641, %v1640
  %v1653 = vpack.c.b16 %v1643, %v1642
  %v1654 = vpack.c.b16 %v1645, %v1644
  %v1655 = vpack.c.b16 %v1647, %v1646
  %v1696 = vunpack.c.l.b16 %v1562
  %v1697 = vunpack.c.h.b16 %v1562
  %v1698 = vunpack.c.l.b16 %v1563
  %v1699 = vunpack.c.h.b16 %v1563
  %v1700 = vunpack.c.l.b16 %v1564
  %v1701 = vunpack.c.h.b16 %v1564
  %v1702 = vunpack.c.l.b16 %v1565
  %v1703 = vunpack.c.h.b16 %v1565
  %v1704 = vunpack.c.l.b16 %v1566
  %v1705 = vunpack.c.h.b16 %v1566
  %v1706 = vunpack.c.l.b16 %v1567
  %v1707 = vunpack.c.h.b16 %v1567
  %v1708 = vunpack.c.l.b16 %v1568
  %v1709 = vunpack.c.h.b16 %v1568
  %v1710 = vunpack.c.l.b16 %v1569
  %v1711 = vunpack.c.h.b16 %v1569
  %v1712 = vunpack.c.l.b16 %v1570
  %v1713 = vunpack.c.h.b16 %v1570
  %v1714 = vunpack.c.l.b16 %v1571
  %v1715 = vunpack.c.h.b16 %v1571
  %v1716 = vunpack.c.l.b16 %v1572
  %v1717 = vunpack.c.h.b16 %v1572
  %v1718 = vunpack.c.l.b16 %v1573
  %v1719 = vunpack.c.h.b16 %v1573
  %v1720 = vunpack.c.l.b16 %v1574
  %v1721 = vunpack.c.h.b16 %v1574
  %v1722 = vunpack.c.l.b16 %v1575
  %v1723 = vunpack.c.h.b16 %v1575
  %v1724 = vunpack.c.l.b16 %v1576
  %v1725 = vunpack.c.h.b16 %v1576
  %v1726 = vunpack.c.l.b16 %v1577
  %v1727 = vunpack.c.h.b16 %v1577
  %v1728 = vunpack.c.l.b16 %v1578
  %v1729 = vunpack.c.h.b16 %v1578
  %v1730 = vunpack.c.l.b16 %v1579
  %v1731 = vunpack.c.h.b16 %v1579
  %v1732 = vunpack.c.l.b16 %v1580
  %v1733 = vunpack.c.h.b16 %v1580
  %v1734 = vunpack.c.l.b16 %v1581
  %v1735 = vunpack.c.h.b16 %v1581
  %v1736 = vunpack.c.l.b16 %v1582
  %v1737 = vunpack.c.h.b16 %v1582
  %v1738 = vunpack.c.l.b16 %v1583
  %v1739 = vunpack.c.h.b16 %v1583
  %v1740 = vunpack.c.l.b16 %v1584
  %v1741 = vunpack.c.h.b16 %v1584
  %v1742 = vunpack.c.l.b16 %v1585
  %v1743 = vunpack.c.h.b16 %v1585
  %v1744 = vunpack.c.l.b16 %v1586
  %v1745 = vunpack.c.h.b16 %v1586
  %v1746 = vunpack.c.l.b16 %v1587
  %v1747 = vunpack.c.h.b16 %v1587
  %v1748 = vunpack.c.l.b16 %v1588
  %v1749 = vunpack.c.h.b16 %v1588
  %v1750 = vunpack.c.l.b16 %v1589
  %v1751 = vunpack.c.h.b16 %v1589
  %v1752 = vunpack.c.l.b16 %v1590
  %v1753 = vunpack.c.h.b16 %v1590
  %v1754 = vunpack.c.l.b16 %v1591
  %v1755 = vunpack.c.h.b16 %v1591
  %v1756 = vunpack.c.l.b16 %v1592
  %v1757 = vunpack.c.h.b16 %v1592
  %v1758 = vunpack.c.l.b16 %v1593
  %v1759 = vunpack.c.h.b16 %v1593
  %v1760 = vpack.c.b16 %v1700, %v1696
  %v1761 = vpack.c.b16 %v1701, %v1697
  %v1762 = vpack.c.b16 %v1702, %v1698
  %v1763 = vpack.c.b16 %v1703, %v1699
  %v1764 = vpack.c.b16 %v1708, %v1704
  %v1765 = vpack.c.b16 %v1709, %v1705
  %v1766 = vpack.c.b16 %v1710, %v1706
  %v1767 = vpack.c.b16 %v1711, %v1707
  %v1768 = vpack.c.b16 %v1716, %v1712
  %v1769 = vpack.c.b16 %v1717, %v1713
  %v1770 = vpack.c.b16 %v1718, %v1714
  %v1771 = vpack.c.b16 %v1719, %v1715
  %v1772 = vpack.c.b16 %v1724, %v1720
  %v1773 = vpack.c.b16 %v1725, %v1721
  %v1774 = vpack.c.b16 %v1726, %v1722
  %v1775 = vpack.c.b16 %v1727, %v1723
  %v1776 = vpack.c.b16 %v1732, %v1728
  %v1777 = vpack.c.b16 %v1733, %v1729
  %v1778 = vpack.c.b16 %v1734, %v1730
  %v1779 = vpack.c.b16 %v1735, %v1731
  %v1780 = vpack.c.b16 %v1740, %v1736
  %v1781 = vpack.c.b16 %v1741, %v1737
  %v1782 = vpack.c.b16 %v1742, %v1738
  %v1783 = vpack.c.b16 %v1743, %v1739
  %v1784 = vpack.c.b16 %v1748, %v1744
  %v1785 = vpack.c.b16 %v1749, %v1745
  %v1786 = vpack.c.b16 %v1750, %v1746
  %v1787 = vpack.c.b16 %v1751, %v1747
  %v1788 = vpack.c.b16 %v1756, %v1752
  %v1789 = vpack.c.b16 %v1757, %v1753
  %v1790 = vpack.c.b16 %v1758, %v1754
  %v1791 = vpack.c.b16 %v1759, %v1755
  %1824 = vmatprep.subr.bf16.mxu0 %v1789
  %1825 = vmatpush1.bf16.msra.mxu0 %v1788
  %1826 = vmatprep.subr.bf16.mxu0 %v1785
  %1827 = vmatpush1.bf16.msra.mxu0 %v1784
  %1828 = vmatprep.subr.bf16.mxu0 %v1781
  %1829 = vmatpush1.bf16.msra.mxu0 %v1780
  %1830 = vmatprep.subr.bf16.mxu0 %v1777
  %1831 = vmatpush1.bf16.msra.mxu0 %v1776
  %1832 = vmatprep.subr.bf16.mxu0 %v1773
  %1833 = vmatpush1.bf16.msra.mxu0 %v1772
  %1834 = vmatprep.subr.bf16.mxu0 %v1769
  %1835 = vmatpush1.bf16.msra.mxu0 %v1768
  %1836 = vmatprep.subr.bf16.mxu0 %v1765
  %1837 = vmatpush1.bf16.msra.mxu0 %v1764
  %1838 = vmatprep.subr.bf16.mxu0 %v1761
  %1839 = vmatpush1.bf16.msra.mxu0 %v1760
  %1840 = vmatprep.subr.bf16.mxu0 0
  %1841 = vmatpush2.bf16.msra.mxu0 0
  %1842 = vmatprep.subr.bf16.mxu0 0
  %1843 = vmatpush2.bf16.msra.mxu0 0
  %1844 = vmatprep.subr.bf16.mxu0 0
  %1845 = vmatpush2.bf16.msra.mxu0 0
  %1846 = vmatprep.subr.bf16.mxu0 0
  %1847 = vmatpush2.bf16.msra.mxu0 0
  %1848 = vmatprep.subr.bf16.mxu0 0
  %1849 = vmatpush2.bf16.msra.mxu0 0
  %1850 = vmatprep.subr.bf16.mxu0 0
  %1851 = vmatpush2.bf16.msra.mxu0 0
  %1852 = vmatprep.subr.bf16.mxu0 0
  %1853 = vmatpush2.bf16.msra.mxu0 0
  %1854 = vmatprep.subr.bf16.mxu0 0
  %1855 = vmatpush2.bf16.msra.mxu0 0
  %1856 = vmatprep.mubr.bf16.mxu0 0
  %1857 = vmatmul.mubr.bf16.gmra.mxu0 %v1648
  %v1858 = vpop.f32.mrf.mxu0
  %v1859 = vadd.f32 %v1599, %v1858
  %v1860 = vpop.f32.mrf.mxu0
  %v1861 = vadd.f32 %v1603, %v1860
  %v1862 = vpop.f32.mrf.mxu0
  %v1863 = vadd.f32 %v1599, %v1862
  %v1864 = vpop.f32.mrf.mxu0
  %v1865 = vadd.f32 %v1603, %v1864
  %1866 = vmatprep.mubr.bf16.mxu0 0
  %1867 = vmatmul.mubr.bf16.gmra.mxu0 %v1649
  %v1868 = vpop.f32.mrf.mxu0
  %v1869 = vadd.f32 %v1599, %v1868
  %v1870 = vpop.f32.mrf.mxu0
  %v1871 = vadd.f32 %v1603, %v1870
  %v1872 = vpop.f32.mrf.mxu0
  %v1873 = vadd.f32 %v1599, %v1872
  %v1874 = vpop.f32.mrf.mxu0
  %v1875 = vadd.f32 %v1603, %v1874
  %1876 = vmatprep.mubr.bf16.mxu0 0
  %1877 = vmatmul.mubr.bf16.gmra.mxu0 %v1650
  %v1878 = vpop.f32.mrf.mxu0
  %v1879 = vadd.f32 %v1599, %v1878
  %v1880 = vpop.f32.mrf.mxu0
  %v1881 = vadd.f32 %v1603, %v1880
  %v1882 = vpop.f32.mrf.mxu0
  %v1883 = vadd.f32 %v1599, %v1882
  %v1884 = vpop.f32.mrf.mxu0
  %v1885 = vadd.f32 %v1603, %v1884
  %1886 = vmatprep.mubr.bf16.mxu0 0
  %1887 = vmatmul.mubr.bf16.gmra.mxu0 %v1651
  %v1888 = vpop.f32.mrf.mxu0
  %v1889 = vadd.f32 %v1599, %v1888
  %v1890 = vpop.f32.mrf.mxu0
  %v1891 = vadd.f32 %v1603, %v1890
  %v1892 = vpop.f32.mrf.mxu0
  %v1893 = vadd.f32 %v1599, %v1892
  %v1894 = vpop.f32.mrf.mxu0
  %v1895 = vadd.f32 %v1603, %v1894
  %1896 = vmatprep.mubr.bf16.mxu0 0
  %1897 = vmatmul.mubr.bf16.gmra.mxu0 %v1652
  %v1898 = vpop.f32.mrf.mxu0
  %v1899 = vadd.f32 %v1599, %v1898
  %v1900 = vpop.f32.mrf.mxu0
  %v1901 = vadd.f32 %v1603, %v1900
  %v1902 = vpop.f32.mrf.mxu0
  %v1903 = vadd.f32 %v1599, %v1902
  %v1904 = vpop.f32.mrf.mxu0
  %v1905 = vadd.f32 %v1603, %v1904
  %1906 = vmatprep.mubr.bf16.mxu0 0
  %1907 = vmatmul.mubr.bf16.gmra.mxu0 %v1653
  %v1908 = vpop.f32.mrf.mxu0
  %v1909 = vadd.f32 %v1599, %v1908
  %v1910 = vpop.f32.mrf.mxu0
  %v1911 = vadd.f32 %v1603, %v1910
  %v1912 = vpop.f32.mrf.mxu0
  %v1913 = vadd.f32 %v1599, %v1912
  %v1914 = vpop.f32.mrf.mxu0
  %v1915 = vadd.f32 %v1603, %v1914
  %1916 = vmatprep.mubr.bf16.mxu0 0
  %1917 = vmatmul.mubr.bf16.gmra.mxu0 %v1654
  %v1918 = vpop.f32.mrf.mxu0
  %v1919 = vadd.f32 %v1599, %v1918
  %v1920 = vpop.f32.mrf.mxu0
  %v1921 = vadd.f32 %v1603, %v1920
  %v1922 = vpop.f32.mrf.mxu0
  %v1923 = vadd.f32 %v1599, %v1922
  %v1924 = vpop.f32.mrf.mxu0
  %v1925 = vadd.f32 %v1603, %v1924
  %1926 = vmatprep.mubr.bf16.mxu0 0
  %1927 = vmatmul.mubr.bf16.gmra.mxu0 %v1655
  %v1928 = vpop.f32.mrf.mxu0
  %v1929 = vadd.f32 %v1599, %v1928
  %v1930 = vpop.f32.mrf.mxu0
  %v1931 = vadd.f32 %v1603, %v1930
  %v1932 = vpop.f32.mrf.mxu0
  %v1933 = vadd.f32 %v1599, %v1932
  %v1934 = vpop.f32.mrf.mxu0
  %v1935 = vadd.f32 %v1603, %v1934
  %1936 = vdwg.mxu0
  %1937 = vmatprep.subr.bf16.mxu0 %v1791
  %1938 = vmatpush1.bf16.msra.mxu0 %v1790
  %1939 = vmatprep.subr.bf16.mxu0 %v1787
  %1940 = vmatpush1.bf16.msra.mxu0 %v1786
  %1941 = vmatprep.subr.bf16.mxu0 %v1783
  %1942 = vmatpush1.bf16.msra.mxu0 %v1782
  %1943 = vmatprep.subr.bf16.mxu0 %v1779
  %1944 = vmatpush1.bf16.msra.mxu0 %v1778
  %1945 = vmatprep.subr.bf16.mxu0 %v1775
  %1946 = vmatpush1.bf16.msra.mxu0 %v1774
  %1947 = vmatprep.subr.bf16.mxu0 %v1771
  %1948 = vmatpush1.bf16.msra.mxu0 %v1770
  %1949 = vmatprep.subr.bf16.mxu0 %v1767
  %1950 = vmatpush1.bf16.msra.mxu0 %v1766
  %1951 = vmatprep.subr.bf16.mxu0 %v1763
  %1952 = vmatpush1.bf16.msra.mxu0 %v1762
  %1953 = vmatprep.subr.bf16.mxu0 0
  %1954 = vmatpush2.bf16.msra.mxu0 0
  %1955 = vmatprep.subr.bf16.mxu0 0
  %1956 = vmatpush2.bf16.msra.mxu0 0
  %1957 = vmatprep.subr.bf16.mxu0 0
  %1958 = vmatpush2.bf16.msra.mxu0 0
  %1959 = vmatprep.subr.bf16.mxu0 0
  %1960 = vmatpush2.bf16.msra.mxu0 0
  %1961 = vmatprep.subr.bf16.mxu0 0
  %1962 = vmatpush2.bf16.msra.mxu0 0
  %1963 = vmatprep.subr.bf16.mxu0 0
  %1964 = vmatpush2.bf16.msra.mxu0 0
  %1965 = vmatprep.subr.bf16.mxu0 0
  %1966 = vmatpush2.bf16.msra.mxu0 0
  %1967 = vmatprep.subr.bf16.mxu0 0
  %1968 = vmatpush2.bf16.msra.mxu0 0
  %1969 = vmatprep.mubr.bf16.mxu0 0
  %1970 = vmatmul.mubr.bf16.gmra.mxu0 %v1648
  %v1971 = vpop.f32.mrf.mxu0
  %v1972 = vadd.f32 %v1607, %v1971
  %v1973 = vpop.f32.mrf.mxu0
  %v1974 = vadd.f32 %v1611, %v1973
  %v1975 = vpop.f32.mrf.mxu0
  %v1976 = vadd.f32 %v1607, %v1975
  %v1977 = vpop.f32.mrf.mxu0
  %v1978 = vadd.f32 %v1611, %v1977
  %1979 = vmatprep.mubr.bf16.mxu0 0
  %1980 = vmatmul.mubr.bf16.gmra.mxu0 %v1649
  %v1981 = vpop.f32.mrf.mxu0
  %v1982 = vadd.f32 %v1607, %v1981
  %v1983 = vpop.f32.mrf.mxu0
  %v1984 = vadd.f32 %v1611, %v1983
  %v1985 = vpop.f32.mrf.mxu0
  %v1986 = vadd.f32 %v1607, %v1985
  %v1987 = vpop.f32.mrf.mxu0
  %v1988 = vadd.f32 %v1611, %v1987
  %1989 = vmatprep.mubr.bf16.mxu0 0
  %1990 = vmatmul.mubr.bf16.gmra.mxu0 %v1650
  %v1991 = vpop.f32.mrf.mxu0
  %v1992 = vadd.f32 %v1607, %v1991
  %v1993 = vpop.f32.mrf.mxu0
  %v1994 = vadd.f32 %v1611, %v1993
  %v1995 = vpop.f32.mrf.mxu0
  %v1996 = vadd.f32 %v1607, %v1995
  %v1997 = vpop.f32.mrf.mxu0
  %v1998 = vadd.f32 %v1611, %v1997
  %1999 = vmatprep.mubr.bf16.mxu0 0
  %2000 = vmatmul.mubr.bf16.gmra.mxu0 %v1651
  %v2001 = vpop.f32.mrf.mxu0
  %v2002 = vadd.f32 %v1607, %v2001
  %v2003 = vpop.f32.mrf.mxu0
  %v2004 = vadd.f32 %v1611, %v2003
  %v2005 = vpop.f32.mrf.mxu0
  %v2006 = vadd.f32 %v1607, %v2005
  %v2007 = vpop.f32.mrf.mxu0
  %v2008 = vadd.f32 %v1611, %v2007
  %2009 = vmatprep.mubr.bf16.mxu0 0
  %2010 = vmatmul.mubr.bf16.gmra.mxu0 %v1652
  %v2011 = vpop.f32.mrf.mxu0
  %v2012 = vadd.f32 %v1607, %v2011
  %v2013 = vpop.f32.mrf.mxu0
  %v2014 = vadd.f32 %v1611, %v2013
  %v2015 = vpop.f32.mrf.mxu0
  %v2016 = vadd.f32 %v1607, %v2015
  %v2017 = vpop.f32.mrf.mxu0
  %v2018 = vadd.f32 %v1611, %v2017
  %2019 = vmatprep.mubr.bf16.mxu0 0
  %2020 = vmatmul.mubr.bf16.gmra.mxu0 %v1653
  %v2021 = vpop.f32.mrf.mxu0
  %v2022 = vadd.f32 %v1607, %v2021
  %v2023 = vpop.f32.mrf.mxu0
  %v2024 = vadd.f32 %v1611, %v2023
  %v2025 = vpop.f32.mrf.mxu0
  %v2026 = vadd.f32 %v1607, %v2025
  %v2027 = vpop.f32.mrf.mxu0
  %v2028 = vadd.f32 %v1611, %v2027
  %2029 = vmatprep.mubr.bf16.mxu0 0
  %2030 = vmatmul.mubr.bf16.gmra.mxu0 %v1654
  %v2031 = vpop.f32.mrf.mxu0
  %v2032 = vadd.f32 %v1607, %v2031
  %v2033 = vpop.f32.mrf.mxu0
  %v2034 = vadd.f32 %v1611, %v2033
  %v2035 = vpop.f32.mrf.mxu0
  %v2036 = vadd.f32 %v1607, %v2035
  %v2037 = vpop.f32.mrf.mxu0
  %v2038 = vadd.f32 %v1611, %v2037
  %2039 = vmatprep.mubr.bf16.mxu0 0
  %2040 = vmatmul.mubr.bf16.gmra.mxu0 %v1655
  %v2041 = vpop.f32.mrf.mxu0
  %v2042 = vadd.f32 %v1607, %v2041
  %v2043 = vpop.f32.mrf.mxu0
  %v2044 = vadd.f32 %v1611, %v2043
  %v2045 = vpop.f32.mrf.mxu0
  %v2046 = vadd.f32 %v1607, %v2045
  %v2047 = vpop.f32.mrf.mxu0
  %v2048 = vadd.f32 %v1611, %v2047
  %2049 = vdwg.mxu0
  %2050 = vst [vmem:[#allocation2] sm:$0xff] %v1859
  %2051 = vst [vmem:[#allocation2 + $0x8] sm:$0xff] %v1861
  %2052 = vst [vmem:[#allocation2 + $0x10] sm:$0xff] %v1972
  %2053 = vst [vmem:[#allocation2 + $0x18] sm:$0xff] %v1974
  %2054 = vst [vmem:[#allocation2 + $0x20] sm:$0xff] %v1863
  %2055 = vst [vmem:[#allocation2 + $0x28] sm:$0xff] %v1865
  %2056 = vst [vmem:[#allocation2 + $0x30] sm:$0xff] %v1976
  %2057 = vst [vmem:[#allocation2 + $0x38] sm:$0xff] %v1978
  %2058 = vst [vmem:[#allocation2 + $0x40] sm:$0xff] %v1869
  %2059 = vst [vmem:[#allocation2 + $0x48] sm:$0xff] %v1871
  %2060 = vst [vmem:[#allocation2 + $0x50] sm:$0xff] %v1982
  %2061 = vst [vmem:[#allocation2 + $0x58] sm:$0xff] %v1984
  %2062 = vst [vmem:[#allocation2 + $0x60] sm:$0xff] %v1873
  %2063 = vst [vmem:[#allocation2 + $0x68] sm:$0xff] %v1875
  %2064 = vst [vmem:[#allocation2 + $0x70] sm:$0xff] %v1986
  %2065 = vst [vmem:[#allocation2 + $0x78] sm:$0xff] %v1988
  %2066 = vst [vmem:[#allocation2 + $0x80] sm:$0xff] %v1879
  %2067 = vst [vmem:[#allocation2 + $0x88] sm:$0xff] %v1881
  %2068 = vst [vmem:[#allocation2 + $0x90] sm:$0xff] %v1992
  %2069 = vst [vmem:[#allocation2 + $0x98] sm:$0xff] %v1994
  %2070 = vst [vmem:[#allocation2 + $0xa0] sm:$0xff] %v1883
  %2071 = vst [vmem:[#allocation2 + $0xa8] sm:$0xff] %v1885
  %2072 = vst [vmem:[#allocation2 + $0xb0] sm:$0xff] %v1996
  %2073 = vst [vmem:[#allocation2 + $0xb8] sm:$0xff] %v1998
  %2074 = vst [vmem:[#allocation2 + $0xc0] sm:$0xff] %v1889
  %2075 = vst [vmem:[#allocation2 + $0xc8] sm:$0xff] %v1891
  %2076 = vst [vmem:[#allocation2 + $0xd0] sm:$0xff] %v2002
  %2077 = vst [vmem:[#allocation2 + $0xd8] sm:$0xff] %v2004
  %2078 = vst [vmem:[#allocation2 + $0xe0] sm:$0xff] %v1893
  %2079 = vst [vmem:[#allocation2 + $0xe8] sm:$0xff] %v1895
  %2080 = vst [vmem:[#allocation2 + $0xf0] sm:$0xff] %v2006
  %2081 = vst [vmem:[#allocation2 + $0xf8] sm:$0xff] %v2008
  %2082 = vst [vmem:[#allocation2 + $0x100] sm:$0xff] %v1899
  %2083 = vst [vmem:[#allocation2 + $0x108] sm:$0xff] %v1901
  %2084 = vst [vmem:[#allocation2 + $0x110] sm:$0xff] %v2012
  %2085 = vst [vmem:[#allocation2 + $0x118] sm:$0xff] %v2014
  %2086 = vst [vmem:[#allocation2 + $0x120] sm:$0xff] %v1903
  %2087 = vst [vmem:[#allocation2 + $0x128] sm:$0xff] %v1905
  %2088 = vst [vmem:[#allocation2 + $0x130] sm:$0xff] %v2016
  %2089 = vst [vmem:[#allocation2 + $0x138] sm:$0xff] %v2018
  %2090 = vst [vmem:[#allocation2 + $0x140] sm:$0xff] %v1909
  %2091 = vst [vmem:[#allocation2 + $0x148] sm:$0xff] %v1911
  %2092 = vst [vmem:[#allocation2 + $0x150] sm:$0xff] %v2022
  %2093 = vst [vmem:[#allocation2 + $0x158] sm:$0xff] %v2024
  %2094 = vst [vmem:[#allocation2 + $0x160] sm:$0xff] %v1913
  %2095 = vst [vmem:[#allocation2 + $0x168] sm:$0xff] %v1915
  %2096 = vst [vmem:[#allocation2 + $0x170] sm:$0xff] %v2026
  %2097 = vst [vmem:[#allocation2 + $0x178] sm:$0xff] %v2028
  %2098 = vst [vmem:[#allocation2 + $0x180] sm:$0xff] %v1919
  %2099 = vst [vmem:[#allocation2 + $0x188] sm:$0xff] %v1921
  %2100 = vst [vmem:[#allocation2 + $0x190] sm:$0xff] %v2032
  %2101 = vst [vmem:[#allocation2 + $0x198] sm:$0xff] %v2034
  %2102 = vst [vmem:[#allocation2 + $0x1a0] sm:$0xff] %v1923
  %2103 = vst [vmem:[#allocation2 + $0x1a8] sm:$0xff] %v1925
  %2104 = vst [vmem:[#allocation2 + $0x1b0] sm:$0xff] %v2036
  %2105 = vst [vmem:[#allocation2 + $0x1b8] sm:$0xff] %v2038
  %2106 = vst [vmem:[#allocation2 + $0x1c0] sm:$0xff] %v1929
  %2107 = vst [vmem:[#allocation2 + $0x1c8] sm:$0xff] %v1931
  %2108 = vst [vmem:[#allocation2 + $0x1d0] sm:$0xff] %v2042
  %2109 = vst [vmem:[#allocation2 + $0x1d8] sm:$0xff] %v2044
  %2110 = vst [vmem:[#allocation2 + $0x1e0] sm:$0xff] %v1933
  %2111 = vst [vmem:[#allocation2 + $0x1e8] sm:$0xff] %v1935
  %2112 = vst [vmem:[#allocation2 + $0x1f0] sm:$0xff] %v2046
  %2113 = vst [vmem:[#allocation2 + $0x1f8] sm:$0xff] %v2048
  %v2114 = vld [vmem:[#allocation2] sm:$0xff]
  %v2115 = vld [vmem:[#allocation2 + $0x8] sm:$0xff]
  %v2116 = vld [vmem:[#allocation2 + $0x10] sm:$0xff]
  %v2117 = vld [vmem:[#allocation2 + $0x18] sm:$0xff]
  %v2118 = vld [vmem:[#allocation2 + $0x20] sm:$0xff]
  %v2119 = vld [vmem:[#allocation2 + $0x28] sm:$0xff]
  %v2120 = vld [vmem:[#allocation2 + $0x30] sm:$0xff]
  %v2121 = vld [vmem:[#allocation2 + $0x38] sm:$0xff]
  %v2154 = vunpack.c.l.b16 %v1514
  %v2155 = vunpack.c.h.b16 %v1514
  %v2156 = vunpack.c.l.b16 %v1515
  %v2157 = vunpack.c.h.b16 %v1515
  %v2158 = vunpack.c.l.b16 %v1516
  %v2159 = vunpack.c.h.b16 %v1516
  %v2160 = vunpack.c.l.b16 %v1517
  %v2161 = vunpack.c.h.b16 %v1517
  %v2162 = vunpack.c.l.b16 %v1518
  %v2163 = vunpack.c.h.b16 %v1518
  %v2164 = vunpack.c.l.b16 %v1519
  %v2165 = vunpack.c.h.b16 %v1519
  %v2166 = vunpack.c.l.b16 %v1520
  %v2167 = vunpack.c.h.b16 %v1520
  %v2168 = vunpack.c.l.b16 %v1521
  %v2169 = vunpack.c.h.b16 %v1521
  %v2170 = vunpack.c.l.b16 %v1522
  %v2171 = vunpack.c.h.b16 %v1522
  %v2172 = vunpack.c.l.b16 %v1523
  %v2173 = vunpack.c.h.b16 %v1523
  %v2174 = vunpack.c.l.b16 %v1524
  %v2175 = vunpack.c.h.b16 %v1524
  %v2176 = vunpack.c.l.b16 %v1525
  %v2177 = vunpack.c.h.b16 %v1525
  %v2178 = vunpack.c.l.b16 %v1526
  %v2179 = vunpack.c.h.b16 %v1526
  %v2180 = vunpack.c.l.b16 %v1527
  %v2181 = vunpack.c.h.b16 %v1527
  %v2182 = vunpack.c.l.b16 %v1528
  %v2183 = vunpack.c.h.b16 %v1528
  %v2184 = vunpack.c.l.b16 %v1529
  %v2185 = vunpack.c.h.b16 %v1529
  %v2186 = vunpack.c.l.b16 %v1530
  %v2187 = vunpack.c.h.b16 %v1530
  %v2188 = vunpack.c.l.b16 %v1531
  %v2189 = vunpack.c.h.b16 %v1531
  %v2190 = vunpack.c.l.b16 %v1532
  %v2191 = vunpack.c.h.b16 %v1532
  %v2192 = vunpack.c.l.b16 %v1533
  %v2193 = vunpack.c.h.b16 %v1533
  %v2194 = vunpack.c.l.b16 %v1534
  %v2195 = vunpack.c.h.b16 %v1534
  %v2196 = vunpack.c.l.b16 %v1535
  %v2197 = vunpack.c.h.b16 %v1535
  %v2198 = vunpack.c.l.b16 %v1536
  %v2199 = vunpack.c.h.b16 %v1536
  %v2200 = vunpack.c.l.b16 %v1537
  %v2201 = vunpack.c.h.b16 %v1537
  %v2202 = vunpack.c.l.b16 %v1538
  %v2203 = vunpack.c.h.b16 %v1538
  %v2204 = vunpack.c.l.b16 %v1539
  %v2205 = vunpack.c.h.b16 %v1539
  %v2206 = vunpack.c.l.b16 %v1540
  %v2207 = vunpack.c.h.b16 %v1540
  %v2208 = vunpack.c.l.b16 %v1541
  %v2209 = vunpack.c.h.b16 %v1541
  %v2210 = vunpack.c.l.b16 %v1542
  %v2211 = vunpack.c.h.b16 %v1542
  %v2212 = vunpack.c.l.b16 %v1543
  %v2213 = vunpack.c.h.b16 %v1543
  %v2214 = vunpack.c.l.b16 %v1544
  %v2215 = vunpack.c.h.b16 %v1544
  %v2216 = vunpack.c.l.b16 %v1545
  %v2217 = vunpack.c.h.b16 %v1545
  %v2218 = vpack.c.b16 %v2158, %v2154
  %v2219 = vpack.c.b16 %v2159, %v2155
  %v2220 = vpack.c.b16 %v2160, %v2156
  %v2221 = vpack.c.b16 %v2161, %v2157
  %v2222 = vpack.c.b16 %v2166, %v2162
  %v2223 = vpack.c.b16 %v2167, %v2163
  %v2224 = vpack.c.b16 %v2168, %v2164
  %v2225 = vpack.c.b16 %v2169, %v2165
  %v2226 = vpack.c.b16 %v2174, %v2170
  %v2227 = vpack.c.b16 %v2175, %v2171
  %v2228 = vpack.c.b16 %v2176, %v2172
  %v2229 = vpack.c.b16 %v2177, %v2173
  %v2230 = vpack.c.b16 %v2182, %v2178
  %v2231 = vpack.c.b16 %v2183, %v2179
  %v2232 = vpack.c.b16 %v2184, %v2180
  %v2233 = vpack.c.b16 %v2185, %v2181
  %v2234 = vpack.c.b16 %v2190, %v2186
  %v2235 = vpack.c.b16 %v2191, %v2187
  %v2236 = vpack.c.b16 %v2192, %v2188
  %v2237 = vpack.c.b16 %v2193, %v2189
  %v2238 = vpack.c.b16 %v2198, %v2194
  %v2239 = vpack.c.b16 %v2199, %v2195
  %v2240 = vpack.c.b16 %v2200, %v2196
  %v2241 = vpack.c.b16 %v2201, %v2197
  %v2242 = vpack.c.b16 %v2206, %v2202
  %v2243 = vpack.c.b16 %v2207, %v2203
  %v2244 = vpack.c.b16 %v2208, %v2204
  %v2245 = vpack.c.b16 %v2209, %v2205
  %v2246 = vpack.c.b16 %v2214, %v2210
  %v2247 = vpack.c.b16 %v2215, %v2211
  %v2248 = vpack.c.b16 %v2216, %v2212
  %v2249 = vpack.c.b16 %v2217, %v2213
  %2282 = vmatprep.subr.bf16.mxu0 %v2247
  %2283 = vmatpush1.bf16.msra.mxu0 %v2246
  %2284 = vmatprep.subr.bf16.mxu0 %v2243
  %2285 = vmatpush1.bf16.msra.mxu0 %v2242
  %2286 = vmatprep.subr.bf16.mxu0 %v2239
  %2287 = vmatpush1.bf16.msra.mxu0 %v2238
  %2288 = vmatprep.subr.bf16.mxu0 %v2235
  %2289 = vmatpush1.bf16.msra.mxu0 %v2234
  %2290 = vmatprep.subr.bf16.mxu0 %v2231
  %2291 = vmatpush1.bf16.msra.mxu0 %v2230
  %2292 = vmatprep.subr.bf16.mxu0 %v2227
  %2293 = vmatpush1.bf16.msra.mxu0 %v2226
  %2294 = vmatprep.subr.bf16.mxu0 %v2223
  %2295 = vmatpush1.bf16.msra.mxu0 %v2222
  %2296 = vmatprep.subr.bf16.mxu0 %v2219
  %2297 = vmatpush1.bf16.msra.mxu0 %v2218
  %2298 = vmatprep.subr.bf16.mxu0 0
  %2299 = vmatpush2.bf16.msra.mxu0 0
  %2300 = vmatprep.subr.bf16.mxu0 0
  %2301 = vmatpush2.bf16.msra.mxu0 0
  %2302 = vmatprep.subr.bf16.mxu0 0
  %2303 = vmatpush2.bf16.msra.mxu0 0
  %2304 = vmatprep.subr.bf16.mxu0 0
  %2305 = vmatpush2.bf16.msra.mxu0 0
  %2306 = vmatprep.subr.bf16.mxu0 0
  %2307 = vmatpush2.bf16.msra.mxu0 0
  %2308 = vmatprep.subr.bf16.mxu0 0
  %2309 = vmatpush2.bf16.msra.mxu0 0
  %2310 = vmatprep.subr.bf16.mxu0 0
  %2311 = vmatpush2.bf16.msra.mxu0 0
  %2312 = vmatprep.subr.bf16.mxu0 0
  %2313 = vmatpush2.bf16.msra.mxu0 0
  %2314 = vmatprep.mubr.bf16.mxu0 0
  %2315 = vmatmul.mubr.bf16.gmra.mxu0 0
  %v2316 = vpop.f32.mrf.mxu0
  %v2317 = vadd.f32 0.0, %v2316
  %v2318 = vpop.f32.mrf.mxu0
  %v2319 = vadd.f32 0.0, %v2318
  %v2320 = vpop.f32.mrf.mxu0
  %v2321 = vadd.f32 0.0, %v2320
  %v2322 = vpop.f32.mrf.mxu0
  %v2323 = vadd.f32 0.0, %v2322
  %2324 = vdwg.mxu0
  %2325 = vmatprep.subr.bf16.mxu0 %v2249
  %2326 = vmatpush1.bf16.msra.mxu0 %v2248
  %2327 = vmatprep.subr.bf16.mxu0 %v2245
  %2328 = vmatpush1.bf16.msra.mxu0 %v2244
  %2329 = vmatprep.subr.bf16.mxu0 %v2241
  %2330 = vmatpush1.bf16.msra.mxu0 %v2240
  %2331 = vmatprep.subr.bf16.mxu0 %v2237
  %2332 = vmatpush1.bf16.msra.mxu0 %v2236
  %2333 = vmatprep.subr.bf16.mxu0 %v2233
  %2334 = vmatpush1.bf16.msra.mxu0 %v2232
  %2335 = vmatprep.subr.bf16.mxu0 %v2229
  %2336 = vmatpush1.bf16.msra.mxu0 %v2228
  %2337 = vmatprep.subr.bf16.mxu0 %v2225
  %2338 = vmatpush1.bf16.msra.mxu0 %v2224
  %2339 = vmatprep.subr.bf16.mxu0 %v2221
  %2340 = vmatpush1.bf16.msra.mxu0 %v2220
  %2341 = vmatprep.subr.bf16.mxu0 0
  %2342 = vmatpush2.bf16.msra.mxu0 0
  %2343 = vmatprep.subr.bf16.mxu0 0
  %2344 = vmatpush2.bf16.msra.mxu0 0
  %2345 = vmatprep.subr.bf16.mxu0 0
  %2346 = vmatpush2.bf16.msra.mxu0 0
  %2347 = vmatprep.subr.bf16.mxu0 0
  %2348 = vmatpush2.bf16.msra.mxu0 0
  %2349 = vmatprep.subr.bf16.mxu0 0
  %2350 = vmatpush2.bf16.msra.mxu0 0
  %2351 = vmatprep.subr.bf16.mxu0 0
  %2352 = vmatpush2.bf16.msra.mxu0 0
  %2353 = vmatprep.subr.bf16.mxu0 0
  %2354 = vmatpush2.bf16.msra.mxu0 0
  %2355 = vmatprep.subr.bf16.mxu0 0
  %2356 = vmatpush2.bf16.msra.mxu0 0
  %2357 = vmatprep.mubr.bf16.mxu0 0
  %2358 = vmatmul.mubr.bf16.gmra.mxu0 0
  %v2359 = vpop.f32.mrf.mxu0
  %v2360 = vadd.f32 0.0, %v2359
  %v2361 = vpop.f32.mrf.mxu0
  %v2362 = vadd.f32 0.0, %v2361
  %v2363 = vpop.f32.mrf.mxu0
  %v2364 = vadd.f32 0.0, %v2363
  %v2365 = vpop.f32.mrf.mxu0
  %v2366 = vadd.f32 0.0, %v2365
  %2367 = vdwg.mxu0
  %v2368 = vadd.f32 %v2114, %v2317
  %v2369 = vadd.f32 %v2115, %v2319
  %v2370 = vadd.f32 %v2116, %v2360
  %v2371 = vadd.f32 %v2117, %v2362
  %v2372 = vadd.f32 %v2118, %v2321
  %v2373 = vadd.f32 %v2119, %v2323
  %v2374 = vadd.f32 %v2120, %v2364
  %v2375 = vadd.f32 %v2121, %v2366
  %v2376 = vxor.u32 %v2368, 2147483648
  %v2377 = vxor.u32 %v2372, 2147483648
  %v2378 = vmul.f32 %v2376, 1.442695
  %v2379 = vpow.pop %v2378
  %v2380 = vmul.f32 %v2377, 1.442695
  %v2381 = vpow.pop %v2380
  %v2382 = vadd.f32 %v2379, 1.0
  %v2383 = vadd.f32 %v2381, 1.0
  %v2384 = vrcp.pop %v2382
  %v2385 = vmul.f32 1.0, %v2384
  %v2386 = vrcp.pop %v2383
  %v2387 = vmul.f32 1.0, %v2386
  %v2388 = vxor.u32 %v2369, 2147483648
  %v2389 = vxor.u32 %v2373, 2147483648
  %v2390 = vmul.f32 %v2388, 1.442695
  %v2391 = vpow.pop %v2390
  %v2392 = vmul.f32 %v2389, 1.442695
  %v2393 = vpow.pop %v2392
  %v2394 = vadd.f32 %v2391, 1.0
  %v2395 = vadd.f32 %v2393, 1.0
  %v2396 = vrcp.pop %v2394
  %v2397 = vmul.f32 1.0, %v2396
  %v2398 = vrcp.pop %v2395
  %v2399 = vmul.f32 1.0, %v2398
  %v2400 = vtanh.pop %v2370
  %v2401 = vtanh.pop %v2374
  %v2402 = vxor.u32 %v2371, 2147483648
  %v2403 = vxor.u32 %v2375, 2147483648
  %v2404 = vmul.f32 %v2402, 1.442695
  %v2405 = vpow.pop %v2404
  %v2406 = vmul.f32 %v2403, 1.442695
  %v2407 = vpow.pop %v2406
  %v2408 = vadd.f32 %v2405, 1.0
  %v2409 = vadd.f32 %v2407, 1.0
  %v2410 = vrcp.pop %v2408
  %v2411 = vmul.f32 1.0, %v2410
  %v2412 = vrcp.pop %v2409
  %v2413 = vmul.f32 1.0, %v2412
  %v2414 = vmul.f32 %v2397, 0.0
  %v2415 = vmul.f32 %v2399, 0.0
  %v2416 = vmul.f32 %v2385, %v2400
  %v2417 = vmul.f32 %v2387, %v2401
  %v2418 = vadd.f32 %v2414, %v2416
  %v2419 = vadd.f32 %v2415, %v2417
  %v2420 = vtanh.pop %v2418
  %v2421 = vtanh.pop %v2419
  %v2422 = vmul.f32 %v2411, %v2420
  %v2423 = vmul.f32 %v2413, %v2421
  %s2424 = scalar_lea.vmem [#allocation2], 64
  %v2425 = vld [vmem:[%s2424] sm:$0xff]
  %v2426 = vld [vmem:[%s2424 + $0x8] sm:$0xff]
  %v2427 = vld [vmem:[%s2424 + $0x10] sm:$0xff]
  %v2428 = vld [vmem:[%s2424 + $0x18] sm:$0xff]
  %v2429 = vld [vmem:[%s2424 + $0x20] sm:$0xff]
  %v2430 = vld [vmem:[%s2424 + $0x28] sm:$0xff]
  %v2431 = vld [vmem:[%s2424 + $0x30] sm:$0xff]
  %v2432 = vld [vmem:[%s2424 + $0x38] sm:$0xff]
  %v2433 = vpack.c.bf16 %v2423, %v2422
  %2434 = vmatprep.subr.bf16.mxu0 %v2247
  %2435 = vmatpush1.bf16.msra.mxu0 %v2246
  %2436 = vmatprep.subr.bf16.mxu0 %v2243
  %2437 = vmatpush1.bf16.msra.mxu0 %v2242
  %2438 = vmatprep.subr.bf16.mxu0 %v2239
  %2439 = vmatpush1.bf16.msra.mxu0 %v2238
  %2440 = vmatprep.subr.bf16.mxu0 %v2235
  %2441 = vmatpush1.bf16.msra.mxu0 %v2234
  %2442 = vmatprep.subr.bf16.mxu0 %v2231
  %2443 = vmatpush1.bf16.msra.mxu0 %v2230
  %2444 = vmatprep.subr.bf16.mxu0 %v2227
  %2445 = vmatpush1.bf16.msra.mxu0 %v2226
  %2446 = vmatprep.subr.bf16.mxu0 %v2223
  %2447 = vmatpush1.bf16.msra.mxu0 %v2222
  %2448 = vmatprep.subr.bf16.mxu0 %v2219
  %2449 = vmatpush1.bf16.msra.mxu0 %v2218
  %2450 = vmatprep.subr.bf16.mxu0 0
  %2451 = vmatpush2.bf16.msra.mxu0 0
  %2452 = vmatprep.subr.bf16.mxu0 0
  %2453 = vmatpush2.bf16.msra.mxu0 0
  %2454 = vmatprep.subr.bf16.mxu0 0
  %2455 = vmatpush2.bf16.msra.mxu0 0
  %2456 = vmatprep.subr.bf16.mxu0 0
  %2457 = vmatpush2.bf16.msra.mxu0 0
  %2458 = vmatprep.subr.bf16.mxu0 0
  %2459 = vmatpush2.bf16.msra.mxu0 0
  %2460 = vmatprep.subr.bf16.mxu0 0
  %2461 = vmatpush2.bf16.msra.mxu0 0
  %2462 = vmatprep.subr.bf16.mxu0 0
  %2463 = vmatpush2.bf16.msra.mxu0 0
  %2464 = vmatprep.subr.bf16.mxu0 0
  %2465 = vmatpush2.bf16.msra.mxu0 0
  %2466 = vmatprep.mubr.bf16.mxu0 0
  %2467 = vmatmul.mubr.bf16.gmra.mxu0 %v2433
  %v2468 = vpop.f32.mrf.mxu0
  %v2469 = vadd.f32 0.0, %v2468
  %v2470 = vpop.f32.mrf.mxu0
  %v2471 = vadd.f32 0.0, %v2470
  %v2472 = vpop.f32.mrf.mxu0
  %v2473 = vadd.f32 0.0, %v2472
  %v2474 = vpop.f32.mrf.mxu0
  %v2475 = vadd.f32 0.0, %v2474
  %2476 = vdwg.mxu0
  %2477 = vmatprep.subr.bf16.mxu0 %v2249
  %2478 = vmatpush1.bf16.msra.mxu0 %v2248
  %2479 = vmatprep.subr.bf16.mxu0 %v2245
  %2480 = vmatpush1.bf16.msra.mxu0 %v2244
  %2481 = vmatprep.subr.bf16.mxu0 %v2241
  %2482 = vmatpush1.bf16.msra.mxu0 %v2240
  %2483 = vmatprep.subr.bf16.mxu0 %v2237
  %2484 = vmatpush1.bf16.msra.mxu0 %v2236
  %2485 = vmatprep.subr.bf16.mxu0 %v2233
  %2486 = vmatpush1.bf16.msra.mxu0 %v2232
  %2487 = vmatprep.subr.bf16.mxu0 %v2229
  %2488 = vmatpush1.bf16.msra.mxu0 %v2228
  %2489 = vmatprep.subr.bf16.mxu0 %v2225
  %2490 = vmatpush1.bf16.msra.mxu0 %v2224
  %2491 = vmatprep.subr.bf16.mxu0 %v2221
  %2492 = vmatpush1.bf16.msra.mxu0 %v2220
  %2493 = vmatprep.subr.bf16.mxu0 0
  %2494 = vmatpush2.bf16.msra.mxu0 0
  %2495 = vmatprep.subr.bf16.mxu0 0
  %2496 = vmatpush2.bf16.msra.mxu0 0
  %2497 = vmatprep.subr.bf16.mxu0 0
  %2498 = vmatpush2.bf16.msra.mxu0 0
  %2499 = vmatprep.subr.bf16.mxu0 0
  %2500 = vmatpush2.bf16.msra.mxu0 0
  %2501 = vmatprep.subr.bf16.mxu0 0
  %2502 = vmatpush2.bf16.msra.mxu0 0
  %2503 = vmatprep.subr.bf16.mxu0 0
  %2504 = vmatpush2.bf16.msra.mxu0 0
  %2505 = vmatprep.subr.bf16.mxu0 0
  %2506 = vmatpush2.bf16.msra.mxu0 0
  %2507 = vmatprep.subr.bf16.mxu0 0
  %2508 = vmatpush2.bf16.msra.mxu0 0
  %2509 = vmatprep.mubr.bf16.mxu0 0
  %2510 = vmatmul.mubr.bf16.gmra.mxu0 %v2433
  %v2511 = vpop.f32.mrf.mxu0
  %v2512 = vadd.f32 0.0, %v2511
  %v2513 = vpop.f32.mrf.mxu0
  %v2514 = vadd.f32 0.0, %v2513
  %v2515 = vpop.f32.mrf.mxu0
  %v2516 = vadd.f32 0.0, %v2515
  %v2517 = vpop.f32.mrf.mxu0
  %v2518 = vadd.f32 0.0, %v2517
  %2519 = vdwg.mxu0
  %v2520 = vadd.f32 %v2425, %v2469
  %v2521 = vadd.f32 %v2426, %v2471
  %v2522 = vadd.f32 %v2427, %v2512
  %v2523 = vadd.f32 %v2428, %v2514
  %v2524 = vadd.f32 %v2429, %v2473
  %v2525 = vadd.f32 %v2430, %v2475
  %v2526 = vadd.f32 %v2431, %v2516
  %v2527 = vadd.f32 %v2432, %v2518
  %v2528 = vxor.u32 %v2520, 2147483648
  %v2529 = vxor.u32 %v2524, 2147483648
  %v2530 = vmul.f32 %v2528, 1.442695
  %v2531 = vpow.pop %v2530
  %v2532 = vmul.f32 %v2529, 1.442695
  %v2533 = vpow.pop %v2532
  %v2534 = vadd.f32 %v2531, 1.0
  %v2535 = vadd.f32 %v2533, 1.0
  %v2536 = vrcp.pop %v2534
  %v2537 = vmul.f32 1.0, %v2536
  %v2538 = vrcp.pop %v2535
  %v2539 = vmul.f32 1.0, %v2538
  %v2540 = vxor.u32 %v2521, 2147483648
  %v2541 = vxor.u32 %v2525, 2147483648
  %v2542 = vmul.f32 %v2540, 1.442695
  %v2543 = vpow.pop %v2542
  %v2544 = vmul.f32 %v2541, 1.442695
  %v2545 = vpow.pop %v2544
  %v2546 = vadd.f32 %v2543, 1.0
  %v2547 = vadd.f32 %v2545, 1.0
  %v2548 = vrcp.pop %v2546
  %v2549 = vmul.f32 1.0, %v2548
  %v2550 = vrcp.pop %v2547
  %v2551 = vmul.f32 1.0, %v2550
  %v2552 = vtanh.pop %v2522
  %v2553 = vtanh.pop %v2526
  %v2554 = vxor.u32 %v2523, 2147483648
  %v2555 = vxor.u32 %v2527, 2147483648
  %v2556 = vmul.f32 %v2554, 1.442695
  %v2557 = vpow.pop %v2556
  %v2558 = vmul.f32 %v2555, 1.442695
  %v2559 = vpow.pop %v2558
  %v2560 = vadd.f32 %v2557, 1.0
  %v2561 = vadd.f32 %v2559, 1.0
  %v2562 = vrcp.pop %v2560
  %v2563 = vmul.f32 1.0, %v2562
  %v2564 = vrcp.pop %v2561
  %v2565 = vmul.f32 1.0, %v2564
  %v2566 = vmul.f32 %v2549, %v2418
  %v2567 = vmul.f32 %v2551, %v2419
  %v2568 = vmul.f32 %v2537, %v2552
  %v2569 = vmul.f32 %v2539, %v2553
  %v2570 = vadd.f32 %v2566, %v2568
  %v2571 = vadd.f32 %v2567, %v2569
  %v2572 = vtanh.pop %v2570
  %v2573 = vtanh.pop %v2571
  %v2574 = vmul.f32 %v2563, %v2572
  %v2575 = vmul.f32 %v2565, %v2573
  %s2576 = scalar_lea.vmem [#allocation2], 128
  %v2577 = vld [vmem:[%s2576] sm:$0xff]
  %v2578 = vld [vmem:[%s2576 + $0x8] sm:$0xff]
  %v2579 = vld [vmem:[%s2576 + $0x10] sm:$0xff]
  %v2580 = vld [vmem:[%s2576 + $0x18] sm:$0xff]
  %v2581 = vld [vmem:[%s2576 + $0x20] sm:$0xff]
  %v2582 = vld [vmem:[%s2576 + $0x28] sm:$0xff]
  %v2583 = vld [vmem:[%s2576 + $0x30] sm:$0xff]
  %v2584 = vld [vmem:[%s2576 + $0x38] sm:$0xff]
  %v2585 = vpack.c.bf16 %v2575, %v2574
  %2586 = vmatprep.subr.bf16.mxu0 %v2247
  %2587 = vmatpush1.bf16.msra.mxu0 %v2246
  %2588 = vmatprep.subr.bf16.mxu0 %v2243
  %2589 = vmatpush1.bf16.msra.mxu0 %v2242
  %2590 = vmatprep.subr.bf16.mxu0 %v2239
  %2591 = vmatpush1.bf16.msra.mxu0 %v2238
  %2592 = vmatprep.subr.bf16.mxu0 %v2235
  %2593 = vmatpush1.bf16.msra.mxu0 %v2234
  %2594 = vmatprep.subr.bf16.mxu0 %v2231
  %2595 = vmatpush1.bf16.msra.mxu0 %v2230
  %2596 = vmatprep.subr.bf16.mxu0 %v2227
  %2597 = vmatpush1.bf16.msra.mxu0 %v2226
  %2598 = vmatprep.subr.bf16.mxu0 %v2223
  %2599 = vmatpush1.bf16.msra.mxu0 %v2222
  %2600 = vmatprep.subr.bf16.mxu0 %v2219
  %2601 = vmatpush1.bf16.msra.mxu0 %v2218
  %2602 = vmatprep.subr.bf16.mxu0 0
  %2603 = vmatpush2.bf16.msra.mxu0 0
  %2604 = vmatprep.subr.bf16.mxu0 0
  %2605 = vmatpush2.bf16.msra.mxu0 0
  %2606 = vmatprep.subr.bf16.mxu0 0
  %2607 = vmatpush2.bf16.msra.mxu0 0
  %2608 = vmatprep.subr.bf16.mxu0 0
  %2609 = vmatpush2.bf16.msra.mxu0 0
  %2610 = vmatprep.subr.bf16.mxu0 0
  %2611 = vmatpush2.bf16.msra.mxu0 0
  %2612 = vmatprep.subr.bf16.mxu0 0
  %2613 = vmatpush2.bf16.msra.mxu0 0
  %2614 = vmatprep.subr.bf16.mxu0 0
  %2615 = vmatpush2.bf16.msra.mxu0 0
  %2616 = vmatprep.subr.bf16.mxu0 0
  %2617 = vmatpush2.bf16.msra.mxu0 0
  %2618 = vmatprep.mubr.bf16.mxu0 0
  %2619 = vmatmul.mubr.bf16.gmra.mxu0 %v2585
  %v2620 = vpop.f32.mrf.mxu0
  %v2621 = vadd.f32 0.0, %v2620
  %v2622 = vpop.f32.mrf.mxu0
  %v2623 = vadd.f32 0.0, %v2622
  %v2624 = vpop.f32.mrf.mxu0
  %v2625 = vadd.f32 0.0, %v2624
  %v2626 = vpop.f32.mrf.mxu0
  %v2627 = vadd.f32 0.0, %v2626
  %2628 = vdwg.mxu0
  %2629 = vmatprep.subr.bf16.mxu0 %v2249
  %2630 = vmatpush1.bf16.msra.mxu0 %v2248
  %2631 = vmatprep.subr.bf16.mxu0 %v2245
  %2632 = vmatpush1.bf16.msra.mxu0 %v2244
  %2633 = vmatprep.subr.bf16.mxu0 %v2241
  %2634 = vmatpush1.bf16.msra.mxu0 %v2240
  %2635 = vmatprep.subr.bf16.mxu0 %v2237
  %2636 = vmatpush1.bf16.msra.mxu0 %v2236
  %2637 = vmatprep.subr.bf16.mxu0 %v2233
  %2638 = vmatpush1.bf16.msra.mxu0 %v2232
  %2639 = vmatprep.subr.bf16.mxu0 %v2229
  %2640 = vmatpush1.bf16.msra.mxu0 %v2228
  %2641 = vmatprep.subr.bf16.mxu0 %v2225
  %2642 = vmatpush1.bf16.msra.mxu0 %v2224
  %2643 = vmatprep.subr.bf16.mxu0 %v2221
  %2644 = vmatpush1.bf16.msra.mxu0 %v2220
  %2645 = vmatprep.subr.bf16.mxu0 0
  %2646 = vmatpush2.bf16.msra.mxu0 0
  %2647 = vmatprep.subr.bf16.mxu0 0
  %2648 = vmatpush2.bf16.msra.mxu0 0
  %2649 = vmatprep.subr.bf16.mxu0 0
  %2650 = vmatpush2.bf16.msra.mxu0 0
  %2651 = vmatprep.subr.bf16.mxu0 0
  %2652 = vmatpush2.bf16.msra.mxu0 0
  %2653 = vmatprep.subr.bf16.mxu0 0
  %2654 = vmatpush2.bf16.msra.mxu0 0
  %2655 = vmatprep.subr.bf16.mxu0 0
  %2656 = vmatpush2.bf16.msra.mxu0 0
  %2657 = vmatprep.subr.bf16.mxu0 0
  %2658 = vmatpush2.bf16.msra.mxu0 0
  %2659 = vmatprep.subr.bf16.mxu0 0
  %2660 = vmatpush2.bf16.msra.mxu0 0
  %2661 = vmatprep.mubr.bf16.mxu0 0
  %2662 = vmatmul.mubr.bf16.gmra.mxu0 %v2585
  %v2663 = vpop.f32.mrf.mxu0
  %v2664 = vadd.f32 0.0, %v2663
  %v2665 = vpop.f32.mrf.mxu0
  %v2666 = vadd.f32 0.0, %v2665
  %v2667 = vpop.f32.mrf.mxu0
  %v2668 = vadd.f32 0.0, %v2667
  %v2669 = vpop.f32.mrf.mxu0
  %v2670 = vadd.f32 0.0, %v2669
  %2671 = vdwg.mxu0
  %v2672 = vadd.f32 %v2577, %v2621
  %v2673 = vadd.f32 %v2578, %v2623
  %v2674 = vadd.f32 %v2579, %v2664
  %v2675 = vadd.f32 %v2580, %v2666
  %v2676 = vadd.f32 %v2581, %v2625
  %v2677 = vadd.f32 %v2582, %v2627
  %v2678 = vadd.f32 %v2583, %v2668
  %v2679 = vadd.f32 %v2584, %v2670
  %v2680 = vxor.u32 %v2672, 2147483648
  %v2681 = vxor.u32 %v2676, 2147483648
  %v2682 = vmul.f32 %v2680, 1.442695
  %v2683 = vpow.pop %v2682
  %v2684 = vmul.f32 %v2681, 1.442695
  %v2685 = vpow.pop %v2684
  %v2686 = vadd.f32 %v2683, 1.0
  %v2687 = vadd.f32 %v2685, 1.0
  %v2688 = vrcp.pop %v2686
  %v2689 = vmul.f32 1.0, %v2688
  %v2690 = vrcp.pop %v2687
  %v2691 = vmul.f32 1.0, %v2690
  %v2692 = vxor.u32 %v2673, 2147483648
  %v2693 = vxor.u32 %v2677, 2147483648
  %v2694 = vmul.f32 %v2692, 1.442695
  %v2695 = vpow.pop %v2694
  %v2696 = vmul.f32 %v2693, 1.442695
  %v2697 = vpow.pop %v2696
  %v2698 = vadd.f32 %v2695, 1.0
  %v2699 = vadd.f32 %v2697, 1.0
  %v2700 = vrcp.pop %v2698
  %v2701 = vmul.f32 1.0, %v2700
  %v2702 = vrcp.pop %v2699
  %v2703 = vmul.f32 1.0, %v2702
  %v2704 = vtanh.pop %v2674
  %v2705 = vtanh.pop %v2678
  %v2706 = vxor.u32 %v2675, 2147483648
  %v2707 = vxor.u32 %v2679, 2147483648
  %v2708 = vmul.f32 %v2706, 1.442695
  %v2709 = vpow.pop %v2708
  %v2710 = vmul.f32 %v2707, 1.442695
  %v2711 = vpow.pop %v2710
  %v2712 = vadd.f32 %v2709, 1.0
  %v2713 = vadd.f32 %v2711, 1.0
  %v2714 = vrcp.pop %v2712
  %v2715 = vmul.f32 1.0, %v2714
  %v2716 = vrcp.pop %v2713
  %v2717 = vmul.f32 1.0, %v2716
  %v2718 = vmul.f32 %v2701, %v2570
  %v2719 = vmul.f32 %v2703, %v2571
  %v2720 = vmul.f32 %v2689, %v2704
  %v2721 = vmul.f32 %v2691, %v2705
  %v2722 = vadd.f32 %v2718, %v2720
  %v2723 = vadd.f32 %v2719, %v2721
  %v2724 = vtanh.pop %v2722
  %v2725 = vtanh.pop %v2723
  %v2726 = vmul.f32 %v2715, %v2724
  %v2727 = vmul.f32 %v2717, %v2725
  %s2728 = scalar_lea.vmem [#allocation2], 192
  %v2729 = vld [vmem:[%s2728] sm:$0xff]
  %v2730 = vld [vmem:[%s2728 + $0x8] sm:$0xff]
  %v2731 = vld [vmem:[%s2728 + $0x10] sm:$0xff]
  %v2732 = vld [vmem:[%s2728 + $0x18] sm:$0xff]
  %v2733 = vld [vmem:[%s2728 + $0x20] sm:$0xff]
  %v2734 = vld [vmem:[%s2728 + $0x28] sm:$0xff]
  %v2735 = vld [vmem:[%s2728 + $0x30] sm:$0xff]
  %v2736 = vld [vmem:[%s2728 + $0x38] sm:$0xff]
  %v2737 = vpack.c.bf16 %v2727, %v2726
  %2738 = vmatprep.subr.bf16.mxu0 %v2247
  %2739 = vmatpush1.bf16.msra.mxu0 %v2246
  %2740 = vmatprep.subr.bf16.mxu0 %v2243
  %2741 = vmatpush1.bf16.msra.mxu0 %v2242
  %2742 = vmatprep.subr.bf16.mxu0 %v2239
  %2743 = vmatpush1.bf16.msra.mxu0 %v2238
  %2744 = vmatprep.subr.bf16.mxu0 %v2235
  %2745 = vmatpush1.bf16.msra.mxu0 %v2234
  %2746 = vmatprep.subr.bf16.mxu0 %v2231
  %2747 = vmatpush1.bf16.msra.mxu0 %v2230
  %2748 = vmatprep.subr.bf16.mxu0 %v2227
  %2749 = vmatpush1.bf16.msra.mxu0 %v2226
  %2750 = vmatprep.subr.bf16.mxu0 %v2223
  %2751 = vmatpush1.bf16.msra.mxu0 %v2222
  %2752 = vmatprep.subr.bf16.mxu0 %v2219
  %2753 = vmatpush1.bf16.msra.mxu0 %v2218
  %2754 = vmatprep.subr.bf16.mxu0 0
  %2755 = vmatpush2.bf16.msra.mxu0 0
  %2756 = vmatprep.subr.bf16.mxu0 0
  %2757 = vmatpush2.bf16.msra.mxu0 0
  %2758 = vmatprep.subr.bf16.mxu0 0
  %2759 = vmatpush2.bf16.msra.mxu0 0
  %2760 = vmatprep.subr.bf16.mxu0 0
  %2761 = vmatpush2.bf16.msra.mxu0 0
  %2762 = vmatprep.subr.bf16.mxu0 0
  %2763 = vmatpush2.bf16.msra.mxu0 0
  %2764 = vmatprep.subr.bf16.mxu0 0
  %2765 = vmatpush2.bf16.msra.mxu0 0
  %2766 = vmatprep.subr.bf16.mxu0 0
  %2767 = vmatpush2.bf16.msra.mxu0 0
  %2768 = vmatprep.subr.bf16.mxu0 0
  %2769 = vmatpush2.bf16.msra.mxu0 0
  %2770 = vmatprep.mubr.bf16.mxu0 0
  %2771 = vmatmul.mubr.bf16.gmra.mxu0 %v2737
  %v2772 = vpop.f32.mrf.mxu0
  %v2773 = vadd.f32 0.0, %v2772
  %v2774 = vpop.f32.mrf.mxu0
  %v2775 = vadd.f32 0.0, %v2774
  %v2776 = vpop.f32.mrf.mxu0
  %v2777 = vadd.f32 0.0, %v2776
  %v2778 = vpop.f32.mrf.mxu0
  %v2779 = vadd.f32 0.0, %v2778
  %2780 = vdwg.mxu0
  %2781 = vmatprep.subr.bf16.mxu0 %v2249
  %2782 = vmatpush1.bf16.msra.mxu0 %v2248
  %2783 = vmatprep.subr.bf16.mxu0 %v2245
  %2784 = vmatpush1.bf16.msra.mxu0 %v2244
  %2785 = vmatprep.subr.bf16.mxu0 %v2241
  %2786 = vmatpush1.bf16.msra.mxu0 %v2240
  %2787 = vmatprep.subr.bf16.mxu0 %v2237
  %2788 = vmatpush1.bf16.msra.mxu0 %v2236
  %2789 = vmatprep.subr.bf16.mxu0 %v2233
  %2790 = vmatpush1.bf16.msra.mxu0 %v2232
  %2791 = vmatprep.subr.bf16.mxu0 %v2229
  %2792 = vmatpush1.bf16.msra.mxu0 %v2228
  %2793 = vmatprep.subr.bf16.mxu0 %v2225
  %2794 = vmatpush1.bf16.msra.mxu0 %v2224
  %2795 = vmatprep.subr.bf16.mxu0 %v2221
  %2796 = vmatpush1.bf16.msra.mxu0 %v2220
  %2797 = vmatprep.subr.bf16.mxu0 0
  %2798 = vmatpush2.bf16.msra.mxu0 0
  %2799 = vmatprep.subr.bf16.mxu0 0
  %2800 = vmatpush2.bf16.msra.mxu0 0
  %2801 = vmatprep.subr.bf16.mxu0 0
  %2802 = vmatpush2.bf16.msra.mxu0 0
  %2803 = vmatprep.subr.bf16.mxu0 0
  %2804 = vmatpush2.bf16.msra.mxu0 0
  %2805 = vmatprep.subr.bf16.mxu0 0
  %2806 = vmatpush2.bf16.msra.mxu0 0
  %2807 = vmatprep.subr.bf16.mxu0 0
  %2808 = vmatpush2.bf16.msra.mxu0 0
  %2809 = vmatprep.subr.bf16.mxu0 0
  %2810 = vmatpush2.bf16.msra.mxu0 0
  %2811 = vmatprep.subr.bf16.mxu0 0
  %2812 = vmatpush2.bf16.msra.mxu0 0
  %2813 = vmatprep.mubr.bf16.mxu0 0
  %2814 = vmatmul.mubr.bf16.gmra.mxu0 %v2737
  %v2815 = vpop.f32.mrf.mxu0
  %v2816 = vadd.f32 0.0, %v2815
  %v2817 = vpop.f32.mrf.mxu0
  %v2818 = vadd.f32 0.0, %v2817
  %v2819 = vpop.f32.mrf.mxu0
  %v2820 = vadd.f32 0.0, %v2819
  %v2821 = vpop.f32.mrf.mxu0
  %v2822 = vadd.f32 0.0, %v2821
  %2823 = vdwg.mxu0
  %v2824 = vadd.f32 %v2729, %v2773
  %v2825 = vadd.f32 %v2730, %v2775
  %v2826 = vadd.f32 %v2731, %v2816
  %v2827 = vadd.f32 %v2732, %v2818
  %v2828 = vadd.f32 %v2733, %v2777
  %v2829 = vadd.f32 %v2734, %v2779
  %v2830 = vadd.f32 %v2735, %v2820
  %v2831 = vadd.f32 %v2736, %v2822
  %v2832 = vxor.u32 %v2824, 2147483648
  %v2833 = vxor.u32 %v2828, 2147483648
  %v2834 = vmul.f32 %v2832, 1.442695
  %v2835 = vpow.pop %v2834
  %v2836 = vmul.f32 %v2833, 1.442695
  %v2837 = vpow.pop %v2836
  %v2838 = vadd.f32 %v2835, 1.0
  %v2839 = vadd.f32 %v2837, 1.0
  %v2840 = vrcp.pop %v2838
  %v2841 = vmul.f32 1.0, %v2840
  %v2842 = vrcp.pop %v2839
  %v2843 = vmul.f32 1.0, %v2842
  %v2844 = vxor.u32 %v2825, 2147483648
  %v2845 = vxor.u32 %v2829, 2147483648
  %v2846 = vmul.f32 %v2844, 1.442695
  %v2847 = vpow.pop %v2846
  %v2848 = vmul.f32 %v2845, 1.442695
  %v2849 = vpow.pop %v2848
  %v2850 = vadd.f32 %v2847, 1.0
  %v2851 = vadd.f32 %v2849, 1.0
  %v2852 = vrcp.pop %v2850
  %v2853 = vmul.f32 1.0, %v2852
  %v2854 = vrcp.pop %v2851
  %v2855 = vmul.f32 1.0, %v2854
  %v2856 = vtanh.pop %v2826
  %v2857 = vtanh.pop %v2830
  %v2858 = vxor.u32 %v2827, 2147483648
  %v2859 = vxor.u32 %v2831, 2147483648
  %v2860 = vmul.f32 %v2858, 1.442695
  %v2861 = vpow.pop %v2860
  %v2862 = vmul.f32 %v2859, 1.442695
  %v2863 = vpow.pop %v2862
  %v2864 = vadd.f32 %v2861, 1.0
  %v2865 = vadd.f32 %v2863, 1.0
  %v2866 = vrcp.pop %v2864
  %v2867 = vmul.f32 1.0, %v2866
  %v2868 = vrcp.pop %v2865
  %v2869 = vmul.f32 1.0, %v2868
  %v2870 = vmul.f32 %v2853, %v2722
  %v2871 = vmul.f32 %v2855, %v2723
  %v2872 = vmul.f32 %v2841, %v2856
  %v2873 = vmul.f32 %v2843, %v2857
  %v2874 = vadd.f32 %v2870, %v2872
  %v2875 = vadd.f32 %v2871, %v2873
  %v2876 = vtanh.pop %v2874
  %v2877 = vtanh.pop %v2875
  %v2878 = vmul.f32 %v2867, %v2876
  %v2879 = vmul.f32 %v2869, %v2877
  %s2880 = scalar_lea.vmem [#allocation2], 256
  %v2881 = vld [vmem:[%s2880] sm:$0xff]
  %v2882 = vld [vmem:[%s2880 + $0x8] sm:$0xff]
  %v2883 = vld [vmem:[%s2880 + $0x10] sm:$0xff]
  %v2884 = vld [vmem:[%s2880 + $0x18] sm:$0xff]
  %v2885 = vld [vmem:[%s2880 + $0x20] sm:$0xff]
  %v2886 = vld [vmem:[%s2880 + $0x28] sm:$0xff]
  %v2887 = vld [vmem:[%s2880 + $0x30] sm:$0xff]
  %v2888 = vld [vmem:[%s2880 + $0x38] sm:$0xff]
  %v2889 = vpack.c.bf16 %v2879, %v2878
  %2890 = vmatprep.subr.bf16.mxu0 %v2247
  %2891 = vmatpush1.bf16.msra.mxu0 %v2246
  %2892 = vmatprep.subr.bf16.mxu0 %v2243
  %2893 = vmatpush1.bf16.msra.mxu0 %v2242
  %2894 = vmatprep.subr.bf16.mxu0 %v2239
  %2895 = vmatpush1.bf16.msra.mxu0 %v2238
  %2896 = vmatprep.subr.bf16.mxu0 %v2235
  %2897 = vmatpush1.bf16.msra.mxu0 %v2234
  %2898 = vmatprep.subr.bf16.mxu0 %v2231
  %2899 = vmatpush1.bf16.msra.mxu0 %v2230
  %2900 = vmatprep.subr.bf16.mxu0 %v2227
  %2901 = vmatpush1.bf16.msra.mxu0 %v2226
  %2902 = vmatprep.subr.bf16.mxu0 %v2223
  %2903 = vmatpush1.bf16.msra.mxu0 %v2222
  %2904 = vmatprep.subr.bf16.mxu0 %v2219
  %2905 = vmatpush1.bf16.msra.mxu0 %v2218
  %2906 = vmatprep.subr.bf16.mxu0 0
  %2907 = vmatpush2.bf16.msra.mxu0 0
  %2908 = vmatprep.subr.bf16.mxu0 0
  %2909 = vmatpush2.bf16.msra.mxu0 0
  %2910 = vmatprep.subr.bf16.mxu0 0
  %2911 = vmatpush2.bf16.msra.mxu0 0
  %2912 = vmatprep.subr.bf16.mxu0 0
  %2913 = vmatpush2.bf16.msra.mxu0 0
  %2914 = vmatprep.subr.bf16.mxu0 0
  %2915 = vmatpush2.bf16.msra.mxu0 0
  %2916 = vmatprep.subr.bf16.mxu0 0
  %2917 = vmatpush2.bf16.msra.mxu0 0
  %2918 = vmatprep.subr.bf16.mxu0 0
  %2919 = vmatpush2.bf16.msra.mxu0 0
  %2920 = vmatprep.subr.bf16.mxu0 0
  %2921 = vmatpush2.bf16.msra.mxu0 0
  %2922 = vmatprep.mubr.bf16.mxu0 0
  %2923 = vmatmul.mubr.bf16.gmra.mxu0 %v2889
  %v2924 = vpop.f32.mrf.mxu0
  %v2925 = vadd.f32 0.0, %v2924
  %v2926 = vpop.f32.mrf.mxu0
  %v2927 = vadd.f32 0.0, %v2926
  %v2928 = vpop.f32.mrf.mxu0
  %v2929 = vadd.f32 0.0, %v2928
  %v2930 = vpop.f32.mrf.mxu0
  %v2931 = vadd.f32 0.0, %v2930
  %2932 = vdwg.mxu0
  %2933 = vmatprep.subr.bf16.mxu0 %v2249
  %2934 = vmatpush1.bf16.msra.mxu0 %v2248
  %2935 = vmatprep.subr.bf16.mxu0 %v2245
  %2936 = vmatpush1.bf16.msra.mxu0 %v2244
  %2937 = vmatprep.subr.bf16.mxu0 %v2241
  %2938 = vmatpush1.bf16.msra.mxu0 %v2240
  %2939 = vmatprep.subr.bf16.mxu0 %v2237
  %2940 = vmatpush1.bf16.msra.mxu0 %v2236
  %2941 = vmatprep.subr.bf16.mxu0 %v2233
  %2942 = vmatpush1.bf16.msra.mxu0 %v2232
  %2943 = vmatprep.subr.bf16.mxu0 %v2229
  %2944 = vmatpush1.bf16.msra.mxu0 %v2228
  %2945 = vmatprep.subr.bf16.mxu0 %v2225
  %2946 = vmatpush1.bf16.msra.mxu0 %v2224
  %2947 = vmatprep.subr.bf16.mxu0 %v2221
  %2948 = vmatpush1.bf16.msra.mxu0 %v2220
  %2949 = vmatprep.subr.bf16.mxu0 0
  %2950 = vmatpush2.bf16.msra.mxu0 0
  %2951 = vmatprep.subr.bf16.mxu0 0
  %2952 = vmatpush2.bf16.msra.mxu0 0
  %2953 = vmatprep.subr.bf16.mxu0 0
  %2954 = vmatpush2.bf16.msra.mxu0 0
  %2955 = vmatprep.subr.bf16.mxu0 0
  %2956 = vmatpush2.bf16.msra.mxu0 0
  %2957 = vmatprep.subr.bf16.mxu0 0
  %2958 = vmatpush2.bf16.msra.mxu0 0
  %2959 = vmatprep.subr.bf16.mxu0 0
  %2960 = vmatpush2.bf16.msra.mxu0 0
  %2961 = vmatprep.subr.bf16.mxu0 0
  %2962 = vmatpush2.bf16.msra.mxu0 0
  %2963 = vmatprep.subr.bf16.mxu0 0
  %2964 = vmatpush2.bf16.msra.mxu0 0
  %2965 = vmatprep.mubr.bf16.mxu0 0
  %2966 = vmatmul.mubr.bf16.gmra.mxu0 %v2889
  %v2967 = vpop.f32.mrf.mxu0
  %v2968 = vadd.f32 0.0, %v2967
  %v2969 = vpop.f32.mrf.mxu0
  %v2970 = vadd.f32 0.0, %v2969
  %v2971 = vpop.f32.mrf.mxu0
  %v2972 = vadd.f32 0.0, %v2971
  %v2973 = vpop.f32.mrf.mxu0
  %v2974 = vadd.f32 0.0, %v2973
  %2975 = vdwg.mxu0
  %v2976 = vadd.f32 %v2881, %v2925
  %v2977 = vadd.f32 %v2882, %v2927
  %v2978 = vadd.f32 %v2883, %v2968
  %v2979 = vadd.f32 %v2884, %v2970
  %v2980 = vadd.f32 %v2885, %v2929
  %v2981 = vadd.f32 %v2886, %v2931
  %v2982 = vadd.f32 %v2887, %v2972
  %v2983 = vadd.f32 %v2888, %v2974
  %v2984 = vxor.u32 %v2976, 2147483648
  %v2985 = vxor.u32 %v2980, 2147483648
  %v2986 = vmul.f32 %v2984, 1.442695
  %v2987 = vpow.pop %v2986
  %v2988 = vmul.f32 %v2985, 1.442695
  %v2989 = vpow.pop %v2988
  %v2990 = vadd.f32 %v2987, 1.0
  %v2991 = vadd.f32 %v2989, 1.0
  %v2992 = vrcp.pop %v2990
  %v2993 = vmul.f32 1.0, %v2992
  %v2994 = vrcp.pop %v2991
  %v2995 = vmul.f32 1.0, %v2994
  %v2996 = vxor.u32 %v2977, 2147483648
  %v2997 = vxor.u32 %v2981, 2147483648
  %v2998 = vmul.f32 %v2996, 1.442695
  %v2999 = vpow.pop %v2998
  %v3000 = vmul.f32 %v2997, 1.442695
  %v3001 = vpow.pop %v3000
  %v3002 = vadd.f32 %v2999, 1.0
  %v3003 = vadd.f32 %v3001, 1.0
  %v3004 = vrcp.pop %v3002
  %v3005 = vmul.f32 1.0, %v3004
  %v3006 = vrcp.pop %v3003
  %v3007 = vmul.f32 1.0, %v3006
  %v3008 = vtanh.pop %v2978
  %v3009 = vtanh.pop %v2982
  %v3010 = vxor.u32 %v2979, 2147483648
  %v3011 = vxor.u32 %v2983, 2147483648
  %v3012 = vmul.f32 %v3010, 1.442695
  %v3013 = vpow.pop %v3012
  %v3014 = vmul.f32 %v3011, 1.442695
  %v3015 = vpow.pop %v3014
  %v3016 = vadd.f32 %v3013, 1.0
  %v3017 = vadd.f32 %v3015, 1.0
  %v3018 = vrcp.pop %v3016
  %v3019 = vmul.f32 1.0, %v3018
  %v3020 = vrcp.pop %v3017
  %v3021 = vmul.f32 1.0, %v3020
  %v3022 = vmul.f32 %v3005, %v2874
  %v3023 = vmul.f32 %v3007, %v2875
  %v3024 = vmul.f32 %v2993, %v3008
  %v3025 = vmul.f32 %v2995, %v3009
  %v3026 = vadd.f32 %v3022, %v3024
  %v3027 = vadd.f32 %v3023, %v3025
  %v3028 = vtanh.pop %v3026
  %v3029 = vtanh.pop %v3027
  %v3030 = vmul.f32 %v3019, %v3028
  %v3031 = vmul.f32 %v3021, %v3029
  %s3032 = scalar_lea.vmem [#allocation2], 320
  %v3033 = vld [vmem:[%s3032] sm:$0xff]
  %v3034 = vld [vmem:[%s3032 + $0x8] sm:$0xff]
  %v3035 = vld [vmem:[%s3032 + $0x10] sm:$0xff]
  %v3036 = vld [vmem:[%s3032 + $0x18] sm:$0xff]
  %v3037 = vld [vmem:[%s3032 + $0x20] sm:$0xff]
  %v3038 = vld [vmem:[%s3032 + $0x28] sm:$0xff]
  %v3039 = vld [vmem:[%s3032 + $0x30] sm:$0xff]
  %v3040 = vld [vmem:[%s3032 + $0x38] sm:$0xff]
  %v3041 = vpack.c.bf16 %v3031, %v3030
  %3042 = vmatprep.subr.bf16.mxu0 %v2247
  %3043 = vmatpush1.bf16.msra.mxu0 %v2246
  %3044 = vmatprep.subr.bf16.mxu0 %v2243
  %3045 = vmatpush1.bf16.msra.mxu0 %v2242
  %3046 = vmatprep.subr.bf16.mxu0 %v2239
  %3047 = vmatpush1.bf16.msra.mxu0 %v2238
  %3048 = vmatprep.subr.bf16.mxu0 %v2235
  %3049 = vmatpush1.bf16.msra.mxu0 %v2234
  %3050 = vmatprep.subr.bf16.mxu0 %v2231
  %3051 = vmatpush1.bf16.msra.mxu0 %v2230
  %3052 = vmatprep.subr.bf16.mxu0 %v2227
  %3053 = vmatpush1.bf16.msra.mxu0 %v2226
  %3054 = vmatprep.subr.bf16.mxu0 %v2223
  %3055 = vmatpush1.bf16.msra.mxu0 %v2222
  %3056 = vmatprep.subr.bf16.mxu0 %v2219
  %3057 = vmatpush1.bf16.msra.mxu0 %v2218
  %3058 = vmatprep.subr.bf16.mxu0 0
  %3059 = vmatpush2.bf16.msra.mxu0 0
  %3060 = vmatprep.subr.bf16.mxu0 0
  %3061 = vmatpush2.bf16.msra.mxu0 0
  %3062 = vmatprep.subr.bf16.mxu0 0
  %3063 = vmatpush2.bf16.msra.mxu0 0
  %3064 = vmatprep.subr.bf16.mxu0 0
  %3065 = vmatpush2.bf16.msra.mxu0 0
  %3066 = vmatprep.subr.bf16.mxu0 0
  %3067 = vmatpush2.bf16.msra.mxu0 0
  %3068 = vmatprep.subr.bf16.mxu0 0
  %3069 = vmatpush2.bf16.msra.mxu0 0
  %3070 = vmatprep.subr.bf16.mxu0 0
  %3071 = vmatpush2.bf16.msra.mxu0 0
  %3072 = vmatprep.subr.bf16.mxu0 0
  %3073 = vmatpush2.bf16.msra.mxu0 0
  %3074 = vmatprep.mubr.bf16.mxu0 0
  %3075 = vmatmul.mubr.bf16.gmra.mxu0 %v3041
  %v3076 = vpop.f32.mrf.mxu0
  %v3077 = vadd.f32 0.0, %v3076
  %v3078 = vpop.f32.mrf.mxu0
  %v3079 = vadd.f32 0.0, %v3078
  %v3080 = vpop.f32.mrf.mxu0
  %v3081 = vadd.f32 0.0, %v3080
  %v3082 = vpop.f32.mrf.mxu0
  %v3083 = vadd.f32 0.0, %v3082
  %3084 = vdwg.mxu0
  %3085 = vmatprep.subr.bf16.mxu0 %v2249
  %3086 = vmatpush1.bf16.msra.mxu0 %v2248
  %3087 = vmatprep.subr.bf16.mxu0 %v2245
  %3088 = vmatpush1.bf16.msra.mxu0 %v2244
  %3089 = vmatprep.subr.bf16.mxu0 %v2241
  %3090 = vmatpush1.bf16.msra.mxu0 %v2240
  %3091 = vmatprep.subr.bf16.mxu0 %v2237
  %3092 = vmatpush1.bf16.msra.mxu0 %v2236
  %3093 = vmatprep.subr.bf16.mxu0 %v2233
  %3094 = vmatpush1.bf16.msra.mxu0 %v2232
  %3095 = vmatprep.subr.bf16.mxu0 %v2229
  %3096 = vmatpush1.bf16.msra.mxu0 %v2228
  %3097 = vmatprep.subr.bf16.mxu0 %v2225
  %3098 = vmatpush1.bf16.msra.mxu0 %v2224
  %3099 = vmatprep.subr.bf16.mxu0 %v2221
  %3100 = vmatpush1.bf16.msra.mxu0 %v2220
  %3101 = vmatprep.subr.bf16.mxu0 0
  %3102 = vmatpush2.bf16.msra.mxu0 0
  %3103 = vmatprep.subr.bf16.mxu0 0
  %3104 = vmatpush2.bf16.msra.mxu0 0
  %3105 = vmatprep.subr.bf16.mxu0 0
  %3106 = vmatpush2.bf16.msra.mxu0 0
  %3107 = vmatprep.subr.bf16.mxu0 0
  %3108 = vmatpush2.bf16.msra.mxu0 0
  %3109 = vmatprep.subr.bf16.mxu0 0
  %3110 = vmatpush2.bf16.msra.mxu0 0
  %3111 = vmatprep.subr.bf16.mxu0 0
  %3112 = vmatpush2.bf16.msra.mxu0 0
  %3113 = vmatprep.subr.bf16.mxu0 0
  %3114 = vmatpush2.bf16.msra.mxu0 0
  %3115 = vmatprep.subr.bf16.mxu0 0
  %3116 = vmatpush2.bf16.msra.mxu0 0
  %3117 = vmatprep.mubr.bf16.mxu0 0
  %3118 = vmatmul.mubr.bf16.gmra.mxu0 %v3041
  %v3119 = vpop.f32.mrf.mxu0
  %v3120 = vadd.f32 0.0, %v3119
  %v3121 = vpop.f32.mrf.mxu0
  %v3122 = vadd.f32 0.0, %v3121
  %v3123 = vpop.f32.mrf.mxu0
  %v3124 = vadd.f32 0.0, %v3123
  %v3125 = vpop.f32.mrf.mxu0
  %v3126 = vadd.f32 0.0, %v3125
  %3127 = vdwg.mxu0
  %v3128 = vadd.f32 %v3033, %v3077
  %v3129 = vadd.f32 %v3034, %v3079
  %v3130 = vadd.f32 %v3035, %v3120
  %v3131 = vadd.f32 %v3036, %v3122
  %v3132 = vadd.f32 %v3037, %v3081
  %v3133 = vadd.f32 %v3038, %v3083
  %v3134 = vadd.f32 %v3039, %v3124
  %v3135 = vadd.f32 %v3040, %v3126
  %v3136 = vxor.u32 %v3128, 2147483648
  %v3137 = vxor.u32 %v3132, 2147483648
  %v3138 = vmul.f32 %v3136, 1.442695
  %v3139 = vpow.pop %v3138
  %v3140 = vmul.f32 %v3137, 1.442695
  %v3141 = vpow.pop %v3140
  %v3142 = vadd.f32 %v3139, 1.0
  %v3143 = vadd.f32 %v3141, 1.0
  %v3144 = vrcp.pop %v3142
  %v3145 = vmul.f32 1.0, %v3144
  %v3146 = vrcp.pop %v3143
  %v3147 = vmul.f32 1.0, %v3146
  %v3148 = vxor.u32 %v3129, 2147483648
  %v3149 = vxor.u32 %v3133, 2147483648
  %v3150 = vmul.f32 %v3148, 1.442695
  %v3151 = vpow.pop %v3150
  %v3152 = vmul.f32 %v3149, 1.442695
  %v3153 = vpow.pop %v3152
  %v3154 = vadd.f32 %v3151, 1.0
  %v3155 = vadd.f32 %v3153, 1.0
  %v3156 = vrcp.pop %v3154
  %v3157 = vmul.f32 1.0, %v3156
  %v3158 = vrcp.pop %v3155
  %v3159 = vmul.f32 1.0, %v3158
  %v3160 = vtanh.pop %v3130
  %v3161 = vtanh.pop %v3134
  %v3162 = vxor.u32 %v3131, 2147483648
  %v3163 = vxor.u32 %v3135, 2147483648
  %v3164 = vmul.f32 %v3162, 1.442695
  %v3165 = vpow.pop %v3164
  %v3166 = vmul.f32 %v3163, 1.442695
  %v3167 = vpow.pop %v3166
  %v3168 = vadd.f32 %v3165, 1.0
  %v3169 = vadd.f32 %v3167, 1.0
  %v3170 = vrcp.pop %v3168
  %v3171 = vmul.f32 1.0, %v3170
  %v3172 = vrcp.pop %v3169
  %v3173 = vmul.f32 1.0, %v3172
  %v3174 = vmul.f32 %v3157, %v3026
  %v3175 = vmul.f32 %v3159, %v3027
  %v3176 = vmul.f32 %v3145, %v3160
  %v3177 = vmul.f32 %v3147, %v3161
  %v3178 = vadd.f32 %v3174, %v3176
  %v3179 = vadd.f32 %v3175, %v3177
  %v3180 = vtanh.pop %v3178
  %v3181 = vtanh.pop %v3179
  %v3182 = vmul.f32 %v3171, %v3180
  %v3183 = vmul.f32 %v3173, %v3181
  %s3184 = scalar_lea.vmem [#allocation2], 384
  %v3185 = vld [vmem:[%s3184] sm:$0xff]
  %v3186 = vld [vmem:[%s3184 + $0x8] sm:$0xff]
  %v3187 = vld [vmem:[%s3184 + $0x10] sm:$0xff]
  %v3188 = vld [vmem:[%s3184 + $0x18] sm:$0xff]
  %v3189 = vld [vmem:[%s3184 + $0x20] sm:$0xff]
  %v3190 = vld [vmem:[%s3184 + $0x28] sm:$0xff]
  %v3191 = vld [vmem:[%s3184 + $0x30] sm:$0xff]
  %v3192 = vld [vmem:[%s3184 + $0x38] sm:$0xff]
  %v3193 = vpack.c.bf16 %v3183, %v3182
  %3194 = vmatprep.subr.bf16.mxu0 %v2247
  %3195 = vmatpush1.bf16.msra.mxu0 %v2246
  %3196 = vmatprep.subr.bf16.mxu0 %v2243
  %3197 = vmatpush1.bf16.msra.mxu0 %v2242
  %3198 = vmatprep.subr.bf16.mxu0 %v2239
  %3199 = vmatpush1.bf16.msra.mxu0 %v2238
  %3200 = vmatprep.subr.bf16.mxu0 %v2235
  %3201 = vmatpush1.bf16.msra.mxu0 %v2234
  %3202 = vmatprep.subr.bf16.mxu0 %v2231
  %3203 = vmatpush1.bf16.msra.mxu0 %v2230
  %3204 = vmatprep.subr.bf16.mxu0 %v2227
  %3205 = vmatpush1.bf16.msra.mxu0 %v2226
  %3206 = vmatprep.subr.bf16.mxu0 %v2223
  %3207 = vmatpush1.bf16.msra.mxu0 %v2222
  %3208 = vmatprep.subr.bf16.mxu0 %v2219
  %3209 = vmatpush1.bf16.msra.mxu0 %v2218
  %3210 = vmatprep.subr.bf16.mxu0 0
  %3211 = vmatpush2.bf16.msra.mxu0 0
  %3212 = vmatprep.subr.bf16.mxu0 0
  %3213 = vmatpush2.bf16.msra.mxu0 0
  %3214 = vmatprep.subr.bf16.mxu0 0
  %3215 = vmatpush2.bf16.msra.mxu0 0
  %3216 = vmatprep.subr.bf16.mxu0 0
  %3217 = vmatpush2.bf16.msra.mxu0 0
  %3218 = vmatprep.subr.bf16.mxu0 0
  %3219 = vmatpush2.bf16.msra.mxu0 0
  %3220 = vmatprep.subr.bf16.mxu0 0
  %3221 = vmatpush2.bf16.msra.mxu0 0
  %3222 = vmatprep.subr.bf16.mxu0 0
  %3223 = vmatpush2.bf16.msra.mxu0 0
  %3224 = vmatprep.subr.bf16.mxu0 0
  %3225 = vmatpush2.bf16.msra.mxu0 0
  %3226 = vmatprep.mubr.bf16.mxu0 0
  %3227 = vmatmul.mubr.bf16.gmra.mxu0 %v3193
  %v3228 = vpop.f32.mrf.mxu0
  %v3229 = vadd.f32 0.0, %v3228
  %v3230 = vpop.f32.mrf.mxu0
  %v3231 = vadd.f32 0.0, %v3230
  %v3232 = vpop.f32.mrf.mxu0
  %v3233 = vadd.f32 0.0, %v3232
  %v3234 = vpop.f32.mrf.mxu0
  %v3235 = vadd.f32 0.0, %v3234
  %3236 = vdwg.mxu0
  %3237 = vmatprep.subr.bf16.mxu0 %v2249
  %3238 = vmatpush1.bf16.msra.mxu0 %v2248
  %3239 = vmatprep.subr.bf16.mxu0 %v2245
  %3240 = vmatpush1.bf16.msra.mxu0 %v2244
  %3241 = vmatprep.subr.bf16.mxu0 %v2241
  %3242 = vmatpush1.bf16.msra.mxu0 %v2240
  %3243 = vmatprep.subr.bf16.mxu0 %v2237
  %3244 = vmatpush1.bf16.msra.mxu0 %v2236
  %3245 = vmatprep.subr.bf16.mxu0 %v2233
  %3246 = vmatpush1.bf16.msra.mxu0 %v2232
  %3247 = vmatprep.subr.bf16.mxu0 %v2229
  %3248 = vmatpush1.bf16.msra.mxu0 %v2228
  %3249 = vmatprep.subr.bf16.mxu0 %v2225
  %3250 = vmatpush1.bf16.msra.mxu0 %v2224
  %3251 = vmatprep.subr.bf16.mxu0 %v2221
  %3252 = vmatpush1.bf16.msra.mxu0 %v2220
  %3253 = vmatprep.subr.bf16.mxu0 0
  %3254 = vmatpush2.bf16.msra.mxu0 0
  %3255 = vmatprep.subr.bf16.mxu0 0
  %3256 = vmatpush2.bf16.msra.mxu0 0
  %3257 = vmatprep.subr.bf16.mxu0 0
  %3258 = vmatpush2.bf16.msra.mxu0 0
  %3259 = vmatprep.subr.bf16.mxu0 0
  %3260 = vmatpush2.bf16.msra.mxu0 0
  %3261 = vmatprep.subr.bf16.mxu0 0
  %3262 = vmatpush2.bf16.msra.mxu0 0
  %3263 = vmatprep.subr.bf16.mxu0 0
  %3264 = vmatpush2.bf16.msra.mxu0 0
  %3265 = vmatprep.subr.bf16.mxu0 0
  %3266 = vmatpush2.bf16.msra.mxu0 0
  %3267 = vmatprep.subr.bf16.mxu0 0
  %3268 = vmatpush2.bf16.msra.mxu0 0
  %3269 = vmatprep.mubr.bf16.mxu0 0
  %3270 = vmatmul.mubr.bf16.gmra.mxu0 %v3193
  %v3271 = vpop.f32.mrf.mxu0
  %v3272 = vadd.f32 0.0, %v3271
  %v3273 = vpop.f32.mrf.mxu0
  %v3274 = vadd.f32 0.0, %v3273
  %v3275 = vpop.f32.mrf.mxu0
  %v3276 = vadd.f32 0.0, %v3275
  %v3277 = vpop.f32.mrf.mxu0
  %v3278 = vadd.f32 0.0, %v3277
  %3279 = vdwg.mxu0
  %v3280 = vadd.f32 %v3185, %v3229
  %v3281 = vadd.f32 %v3186, %v3231
  %v3282 = vadd.f32 %v3187, %v3272
  %v3283 = vadd.f32 %v3188, %v3274
  %v3284 = vadd.f32 %v3189, %v3233
  %v3285 = vadd.f32 %v3190, %v3235
  %v3286 = vadd.f32 %v3191, %v3276
  %v3287 = vadd.f32 %v3192, %v3278
  %v3288 = vxor.u32 %v3280, 2147483648
  %v3289 = vxor.u32 %v3284, 2147483648
  %v3290 = vmul.f32 %v3288, 1.442695
  %v3291 = vpow.pop %v3290
  %v3292 = vmul.f32 %v3289, 1.442695
  %v3293 = vpow.pop %v3292
  %v3294 = vadd.f32 %v3291, 1.0
  %v3295 = vadd.f32 %v3293, 1.0
  %v3296 = vrcp.pop %v3294
  %v3297 = vmul.f32 1.0, %v3296
  %v3298 = vrcp.pop %v3295
  %v3299 = vmul.f32 1.0, %v3298
  %v3300 = vxor.u32 %v3281, 2147483648
  %v3301 = vxor.u32 %v3285, 2147483648
  %v3302 = vmul.f32 %v3300, 1.442695
  %v3303 = vpow.pop %v3302
  %v3304 = vmul.f32 %v3301, 1.442695
  %v3305 = vpow.pop %v3304
  %v3306 = vadd.f32 %v3303, 1.0
  %v3307 = vadd.f32 %v3305, 1.0
  %v3308 = vrcp.pop %v3306
  %v3309 = vmul.f32 1.0, %v3308
  %v3310 = vrcp.pop %v3307
  %v3311 = vmul.f32 1.0, %v3310
  %v3312 = vtanh.pop %v3282
  %v3313 = vtanh.pop %v3286
  %v3314 = vxor.u32 %v3283, 2147483648
  %v3315 = vxor.u32 %v3287, 2147483648
  %v3316 = vmul.f32 %v3314, 1.442695
  %v3317 = vpow.pop %v3316
  %v3318 = vmul.f32 %v3315, 1.442695
  %v3319 = vpow.pop %v3318
  %v3320 = vadd.f32 %v3317, 1.0
  %v3321 = vadd.f32 %v3319, 1.0
  %v3322 = vrcp.pop %v3320
  %v3323 = vmul.f32 1.0, %v3322
  %v3324 = vrcp.pop %v3321
  %v3325 = vmul.f32 1.0, %v3324
  %v3326 = vmul.f32 %v3309, %v3178
  %v3327 = vmul.f32 %v3311, %v3179
  %v3328 = vmul.f32 %v3297, %v3312
  %v3329 = vmul.f32 %v3299, %v3313
  %v3330 = vadd.f32 %v3326, %v3328
  %v3331 = vadd.f32 %v3327, %v3329
  %v3332 = vtanh.pop %v3330
  %v3333 = vtanh.pop %v3331
  %v3334 = vmul.f32 %v3323, %v3332
  %v3335 = vmul.f32 %v3325, %v3333
  %s3336 = scalar_lea.vmem [#allocation2], 448
  %v3337 = vld [vmem:[%s3336] sm:$0xff]
  %v3338 = vld [vmem:[%s3336 + $0x8] sm:$0xff]
  %v3339 = vld [vmem:[%s3336 + $0x10] sm:$0xff]
  %v3340 = vld [vmem:[%s3336 + $0x18] sm:$0xff]
  %v3341 = vld [vmem:[%s3336 + $0x20] sm:$0xff]
  %v3342 = vld [vmem:[%s3336 + $0x28] sm:$0xff]
  %v3343 = vld [vmem:[%s3336 + $0x30] sm:$0xff]
  %v3344 = vld [vmem:[%s3336 + $0x38] sm:$0xff]
  %v3345 = vpack.c.bf16 %v3335, %v3334
  %3346 = vmatprep.subr.bf16.mxu0 %v2247
  %3347 = vmatpush1.bf16.msra.mxu0 %v2246
  %3348 = vmatprep.subr.bf16.mxu0 %v2243
  %3349 = vmatpush1.bf16.msra.mxu0 %v2242
  %3350 = vmatprep.subr.bf16.mxu0 %v2239
  %3351 = vmatpush1.bf16.msra.mxu0 %v2238
  %3352 = vmatprep.subr.bf16.mxu0 %v2235
  %3353 = vmatpush1.bf16.msra.mxu0 %v2234
  %3354 = vmatprep.subr.bf16.mxu0 %v2231
  %3355 = vmatpush1.bf16.msra.mxu0 %v2230
  %3356 = vmatprep.subr.bf16.mxu0 %v2227
  %3357 = vmatpush1.bf16.msra.mxu0 %v2226
  %3358 = vmatprep.subr.bf16.mxu0 %v2223
  %3359 = vmatpush1.bf16.msra.mxu0 %v2222
  %3360 = vmatprep.subr.bf16.mxu0 %v2219
  %3361 = vmatpush1.bf16.msra.mxu0 %v2218
  %3362 = vmatprep.subr.bf16.mxu0 0
  %3363 = vmatpush2.bf16.msra.mxu0 0
  %3364 = vmatprep.subr.bf16.mxu0 0
  %3365 = vmatpush2.bf16.msra.mxu0 0
  %3366 = vmatprep.subr.bf16.mxu0 0
  %3367 = vmatpush2.bf16.msra.mxu0 0
  %3368 = vmatprep.subr.bf16.mxu0 0
  %3369 = vmatpush2.bf16.msra.mxu0 0
  %3370 = vmatprep.subr.bf16.mxu0 0
  %3371 = vmatpush2.bf16.msra.mxu0 0
  %3372 = vmatprep.subr.bf16.mxu0 0
  %3373 = vmatpush2.bf16.msra.mxu0 0
  %3374 = vmatprep.subr.bf16.mxu0 0
  %3375 = vmatpush2.bf16.msra.mxu0 0
  %3376 = vmatprep.subr.bf16.mxu0 0
  %3377 = vmatpush2.bf16.msra.mxu0 0
  %3378 = vmatprep.mubr.bf16.mxu0 0
  %3379 = vmatmul.mubr.bf16.gmra.mxu0 %v3345
  %v3380 = vpop.f32.mrf.mxu0
  %v3381 = vadd.f32 0.0, %v3380
  %v3382 = vpop.f32.mrf.mxu0
  %v3383 = vadd.f32 0.0, %v3382
  %v3384 = vpop.f32.mrf.mxu0
  %v3385 = vadd.f32 0.0, %v3384
  %v3386 = vpop.f32.mrf.mxu0
  %v3387 = vadd.f32 0.0, %v3386
  %3388 = vdwg.mxu0
  %3389 = vmatprep.subr.bf16.mxu0 %v2249
  %3390 = vmatpush1.bf16.msra.mxu0 %v2248
  %3391 = vmatprep.subr.bf16.mxu0 %v2245
  %3392 = vmatpush1.bf16.msra.mxu0 %v2244
  %3393 = vmatprep.subr.bf16.mxu0 %v2241
  %3394 = vmatpush1.bf16.msra.mxu0 %v2240
  %3395 = vmatprep.subr.bf16.mxu0 %v2237
  %3396 = vmatpush1.bf16.msra.mxu0 %v2236
  %3397 = vmatprep.subr.bf16.mxu0 %v2233
  %3398 = vmatpush1.bf16.msra.mxu0 %v2232
  %3399 = vmatprep.subr.bf16.mxu0 %v2229
  %3400 = vmatpush1.bf16.msra.mxu0 %v2228
  %3401 = vmatprep.subr.bf16.mxu0 %v2225
  %3402 = vmatpush1.bf16.msra.mxu0 %v2224
  %3403 = vmatprep.subr.bf16.mxu0 %v2221
  %3404 = vmatpush1.bf16.msra.mxu0 %v2220
  %3405 = vmatprep.subr.bf16.mxu0 0
  %3406 = vmatpush2.bf16.msra.mxu0 0
  %3407 = vmatprep.subr.bf16.mxu0 0
  %3408 = vmatpush2.bf16.msra.mxu0 0
  %3409 = vmatprep.subr.bf16.mxu0 0
  %3410 = vmatpush2.bf16.msra.mxu0 0
  %3411 = vmatprep.subr.bf16.mxu0 0
  %3412 = vmatpush2.bf16.msra.mxu0 0
  %3413 = vmatprep.subr.bf16.mxu0 0
  %3414 = vmatpush2.bf16.msra.mxu0 0
  %3415 = vmatprep.subr.bf16.mxu0 0
  %3416 = vmatpush2.bf16.msra.mxu0 0
  %3417 = vmatprep.subr.bf16.mxu0 0
  %3418 = vmatpush2.bf16.msra.mxu0 0
  %3419 = vmatprep.subr.bf16.mxu0 0
  %3420 = vmatpush2.bf16.msra.mxu0 0
  %3421 = vmatprep.mubr.bf16.mxu0 0
  %3422 = vmatmul.mubr.bf16.gmra.mxu0 %v3345
  %v3423 = vpop.f32.mrf.mxu0
  %v3424 = vadd.f32 0.0, %v3423
  %v3425 = vpop.f32.mrf.mxu0
  %v3426 = vadd.f32 0.0, %v3425
  %v3427 = vpop.f32.mrf.mxu0
  %v3428 = vadd.f32 0.0, %v3427
  %v3429 = vpop.f32.mrf.mxu0
  %v3430 = vadd.f32 0.0, %v3429
  %3431 = vdwg.mxu0
  %v3432 = vadd.f32 %v3337, %v3381
  %v3433 = vadd.f32 %v3338, %v3383
  %v3434 = vadd.f32 %v3339, %v3424
  %v3435 = vadd.f32 %v3340, %v3426
  %v3436 = vadd.f32 %v3341, %v3385
  %v3437 = vadd.f32 %v3342, %v3387
  %v3438 = vadd.f32 %v3343, %v3428
  %v3439 = vadd.f32 %v3344, %v3430
  %v3440 = vxor.u32 %v3432, 2147483648
  %v3441 = vxor.u32 %v3436, 2147483648
  %v3442 = vmul.f32 %v3440, 1.442695
  %v3443 = vpow.pop %v3442
  %v3444 = vmul.f32 %v3441, 1.442695
  %v3445 = vpow.pop %v3444
  %v3446 = vadd.f32 %v3443, 1.0
  %v3447 = vadd.f32 %v3445, 1.0
  %v3448 = vrcp.pop %v3446
  %v3449 = vmul.f32 1.0, %v3448
  %v3450 = vrcp.pop %v3447
  %v3451 = vmul.f32 1.0, %v3450
  %v3452 = vxor.u32 %v3433, 2147483648
  %v3453 = vxor.u32 %v3437, 2147483648
  %v3454 = vmul.f32 %v3452, 1.442695
  %v3455 = vpow.pop %v3454
  %v3456 = vmul.f32 %v3453, 1.442695
  %v3457 = vpow.pop %v3456
  %v3458 = vadd.f32 %v3455, 1.0
  %v3459 = vadd.f32 %v3457, 1.0
  %v3460 = vrcp.pop %v3458
  %v3461 = vmul.f32 1.0, %v3460
  %v3462 = vrcp.pop %v3459
  %v3463 = vmul.f32 1.0, %v3462
  %v3464 = vtanh.pop %v3434
  %v3465 = vtanh.pop %v3438
  %v3466 = vxor.u32 %v3435, 2147483648
  %v3467 = vxor.u32 %v3439, 2147483648
  %v3468 = vmul.f32 %v3466, 1.442695
  %v3469 = vpow.pop %v3468
  %v3470 = vmul.f32 %v3467, 1.442695
  %v3471 = vpow.pop %v3470
  %v3472 = vadd.f32 %v3469, 1.0
  %v3473 = vadd.f32 %v3471, 1.0
  %v3474 = vrcp.pop %v3472
  %v3475 = vmul.f32 1.0, %v3474
  %v3476 = vrcp.pop %v3473
  %v3477 = vmul.f32 1.0, %v3476
  %v3478 = vmul.f32 %v3461, %v3330
  %v3479 = vmul.f32 %v3463, %v3331
  %v3480 = vmul.f32 %v3449, %v3464
  %v3481 = vmul.f32 %v3451, %v3465
  %v3482 = vadd.f32 %v3478, %v3480
  %v3483 = vadd.f32 %v3479, %v3481
  %v3484 = vtanh.pop %v3482
  %v3485 = vtanh.pop %v3483
  %v3486 = vmul.f32 %v3475, %v3484
  %v3487 = vmul.f32 %v3477, %v3485
  %v3488 = vld [vmem:[%s5] sm:$0x1]
  %v3490 = vlaneseq
  %v3491 = vshrl.u32 %v3490, 7
  %v3492 = vsub.s32 0, %v3491
  %v3493 = vrot.slane %v3488, %v3492
  %v3495 = vmul.f32 %v3486, %v3493
  %v3496 = vmul.f32 %v3487, %v3493
  %3497 = vadd.xlane.f32.xlu0 %v3495
  %v3498 = vpop.xlane.xlu0 %3497
  %3499 = vadd.xlane.f32.xlu0 %v3496
  %v3500 = vpop.xlane.xlu0 %3499
  %s3501 = sld [smem:[#allocation4]]
  %v3502 = vstv %s3501
  %v3503 = vadd.f32 %v3498, %v3502
  %v3504 = vadd.f32 %v3500, %v3502
  %3505 = vst [vmem:[%s7] sm:$0xff] %v3503
  %3506 = vst [vmem:[%s7 + $0x8] sm:$0xff] %v3504
  // Predicated region
  $region30: #{lstm_model_forward.1} parent=0 // pred_check
    _
  $region31: #{lstm_model_forward.1} parent=0 // pred_check_branch
    %3508 = sbr.rel (0) target = $region33
  $region32: #{lstm_model_forward.1} parent=0 // pred_region
    _
  $region33: #{lstm_model_forward.1} parent=0 // pred_fallthru
    _
  // Predicated region
  $region34: #{lstm_model_forward.1} parent=0 // pred_check
    _
  $region35: #{lstm_model_forward.1} parent=0 // pred_check_branch
    %3510 = sbr.rel (0) target = $region37
  $region36: #{lstm_model_forward.1} parent=0 // pred_region
    _
  $region37: #{lstm_model_forward.1} parent=0 // pred_fallthru
    _

</llo_original>
